<compile_context>
chip_gen: v6e
topology: v6e:2x2x1
jax: 0.10.0
libtpu: 0.0.40
codegen_flags: <defaults>
</compile_context>

<pallas_src>
import functools

import jax
import jax.numpy as jnp
from jax import lax
from jax.experimental import pallas as pl
from jax.experimental.pallas import tpu as pltpu


# Raised scoped-VMEM cap: fits under v7x's 64 MiB physical VMEM and lifts the
# 16 / 32 MiB defaults on v5e / v6e.
_VMEM_LIMIT_BYTES = 56 * 1024 * 1024

# Cap on the live f32 conv intermediate per row chunk (v7x / v5e VMEM pressure).
_CONV_F32_BUDGET_BYTES = 2 * 1024 * 1024


def _bn_train(x, gamma=None, beta=None, eps=1e-5):
    """BatchNorm1d in training mode (biased batch statistics), f32 math."""
    mu = jnp.mean(x, axis=0, keepdims=True)
    xc = x - mu
    var = jnp.mean(xc * xc, axis=0, keepdims=True)
    y = xc * lax.rsqrt(var + eps)
    if gamma is not None:
        y = y * gamma + beta
    return y


# ---------------------------------------------------------------------------
# Kernel 1: conv stem (3x3, pad 1) + ReLU + global average pool
# ---------------------------------------------------------------------------
def _backbone_kernel(xpad_ref, cw_ref, cb_ref, feat_ref, *, h, w, cin,
                     rows_per_chunk, inv_hw):
    """One "parallel" grid step = one num_ftrs column tile.

    The 3x3 conv is computed as 9 shifted accumulating matmuls directly from
    the padded NHWC image (read from HBM once).  Spatial rows are processed in
    chunks so the live f32 intermediate stays small; bias+ReLU is applied per
    pixel, then partial GAP sums are accumulated.
    """
    b = xpad_ref.shape[0]
    tn = feat_ref.shape[1]
    rc = rows_per_chunk
    n_chunks = h // rc

    bias = cb_ref[...]                                           # (1, tn) f32
    # 9 per-shift weight slices, hoisted (tiny: 9 * (cin, tn) bf16).
    wsl = [cw_ref[s * cin:(s + 1) * cin, :] for s in range(9)]

    acc = jnp.zeros((b, tn), jnp.float32)
    # Static (fully unrolled) chunk loop -> every slice below is static.
    # TODO(synk): at large resolutions make this an extra "arbitrary" grid axis
    # with halo'd row bands so the image itself can be tiled out of VMEM.
    for c in range(n_chunks):
        r0 = c * rc
        band = xpad_ref[:, r0:r0 + rc + 2, :, :]                 # (B, rc+2, W+2, Cin) bf16
        y = jnp.zeros((b * rc * w, tn), jnp.float32)
        for dy in range(3):
            for dx in range(3):
                xs = band[:, dy:dy + rc, dx:dx + w, :]
                xs = xs.reshape(b * rc * w, cin)                 # bf16
                y = y + jnp.dot(xs, wsl[dy * 3 + dx],
                                preferred_element_type=jnp.float32)
        y = jnp.maximum(y + bias, 0.0)                           # bias + ReLU, f32
        acc = acc + y.reshape(b, rc * w, tn).sum(axis=1)         # partial GAP sum

    feat_ref[...] = acc * inv_hw


def _backbone_features(xpad, conv_w, conv_b):
    """Pooled backbone features (B, num_ftrs) f32 from a padded bf16 NHWC image."""
    b, hp, wp, cin = xpad.shape
    h, w = hp - 2, wp - 2
    num_ftrs = conv_w.shape[1]

    # Lane-dense column tile; with num_ftrs > 128 the grid splits and the
    # "parallel" semantics shard it across a v7x chip's two TensorCores.
    tn = 128 if num_ftrs % 128 == 0 else num_ftrs

    # Largest row chunk whose f32 conv intermediate stays under budget.
    budget_rows = max(1, _CONV_F32_BUDGET_BYTES // (b * w * tn * 4))
    rows_per_chunk = max(d for d in range(1, h + 1)
                         if h % d == 0 and d <= budget_rows)

    kernel = functools.partial(
        _backbone_kernel, h=h, w=w, cin=cin,
        rows_per_chunk=rows_per_chunk, inv_hw=1.0 / float(h * w))

    # TODO(synk): mark the constant-index image / weight specs single-buffered
    # (pipeline_mode=pl.Buffered(1)) on 64 MiB-VMEM parts once sized up.
    return pl.pallas_call(
        kernel,
        out_shape=jax.ShapeDtypeStruct((b, num_ftrs), jnp.float32),
        grid=(num_ftrs // tn,),
        in_specs=[
            pl.BlockSpec((b, hp, wp, cin), lambda n: (0, 0, 0, 0)),  # whole image
            pl.BlockSpec((9 * cin, tn), lambda n: (0, n)),           # conv weights
            pl.BlockSpec((1, tn), lambda n: (0, n)),                 # conv bias
        ],
        out_specs=pl.BlockSpec((b, tn), lambda n: (0, n)),
        compiler_params=pltpu.CompilerParams(
            dimension_semantics=("parallel",),
            vmem_limit_bytes=_VMEM_LIMIT_BYTES),
    )(xpad, conv_w, conv_b)


# ---------------------------------------------------------------------------
# Kernel 2: MoCo v3 projection + prediction MLPs (training path)
# ---------------------------------------------------------------------------
def _head_kernel(feat_ref, w1_ref, w2_ref, w3_ref, wp1_ref, wp2_ref, vec_ref,
                 out_ref, *, ph, pd, od):
    """Projection head (Linear->BN->ReLU x2 -> Linear -> BN(affine=False)) then
    prediction head (Linear->BN->ReLU -> Linear(+bias)); bf16 MXU, f32 BN."""

    def lin(x, w_ref):
        return jnp.dot(x.astype(jnp.bfloat16), w_ref[...],
                       preferred_element_type=jnp.float32)

    def bn_relu(x, row, d):
        g = vec_ref[row:row + 1, :d]
        b = vec_ref[row + 1:row + 2, :d]
        return jnp.maximum(_bn_train(x, g, b), 0.0)

    f = feat_ref[...]                                            # (B, num_ftrs) f32
    hdn = bn_relu(lin(f, w1_ref), 0, ph)
    hdn = bn_relu(lin(hdn, w2_ref), 2, ph)
    z = _bn_train(lin(hdn, w3_ref))                              # final BN, affine=False
    q = bn_relu(lin(z, wp1_ref), 4, pd)
    q = lin(q, wp2_ref) + vec_ref[6:7, :od]                      # final linear bias
    out_ref[...] = q


def _head_forward(feat, params):
    b = feat.shape[0]
    ph = params["w1"].shape[1]
    pd = params["wp1"].shape[1]
    od = params["wp2"].shape[1]
    weights = [params[n] for n in ("w1", "w2", "w3", "wp1", "wp2")]
    vec = params["head_vec"]

    def whole(a):
        return pl.BlockSpec(a.shape, lambda i: (0, 0))

    # TODO(synk): at production sizes, batch both MoCo views (and the momentum
    # encoder forward) through this call so the head matmuls see M >= 128 rows.
    return pl.pallas_call(
        functools.partial(_head_kernel, ph=ph, pd=pd, od=od),
        out_shape=jax.ShapeDtypeStruct((b, od), jnp.float32),
        grid=(1,),
        in_specs=[whole(feat)] + [whole(wgt) for wgt in weights] + [whole(vec)],
        out_specs=pl.BlockSpec((b, od), lambda i: (0, 0)),
        compiler_params=pltpu.CompilerParams(
            dimension_semantics=("arbitrary",),
            vmem_limit_bytes=_VMEM_LIMIT_BYTES),
    )(feat, *weights, vec)


# ---------------------------------------------------------------------------
# Forward wrapper + deterministic parameter init
# ---------------------------------------------------------------------------
def mocov3_forward(x_nchw, params, training=True):
    """training=True -> predictor(projection(backbone(x))); else backbone(x)."""
    # NCHW -> padded NHWC, cast to bf16 (MXU operand dtype).
    # TODO(synk): padding + bf16 cast happen host-side (small, read-once); the
    # 9x im2col HBM read amplification of the previous version is eliminated.
    x = jnp.transpose(x_nchw, (0, 2, 3, 1))
    xpad = jnp.pad(x, ((0, 0), (1, 1), (1, 1), (0, 0))).astype(jnp.bfloat16)

    feat = _backbone_features(xpad, params["conv_w"], params["conv_b"])
    if not training:
        return feat
    return _head_forward(feat, params)


def init_params(key, *, cin=4, num_ftrs=128, proj_hidden=256, pred_hidden=256,
                out_dim=128):
    """Deterministic synthetic parameters (matmul weights bf16, the rest f32)."""
    ks = jax.random.split(key, 8)
    s = 0.05

    def w(k_, shape):
        return (s * jax.random.normal(k_, shape, jnp.float32)).astype(jnp.bfloat16)

    dmax = max(proj_hidden, pred_hidden, out_dim)

    def row(v, d):
        return jnp.pad(v, (0, dmax - d))[None, :]

    # Packed per-feature vectors: [g1, be1, g2, be2, gp1, bep1, bp2]  (7, DMAX)
    head_vec = jnp.concatenate([
        row(jnp.ones((proj_hidden,), jnp.float32), proj_hidden),
        row(jnp.zeros((proj_hidden,), jnp.float32), proj_hidden),
        row(jnp.ones((proj_hidden,), jnp.float32), proj_hidden),
        row(jnp.zeros((proj_hidden,), jnp.float32), proj_hidden),
        row(jnp.ones((pred_hidden,), jnp.float32), pred_hidden),
        row(jnp.zeros((pred_hidden,), jnp.float32), pred_hidden),
        row(jnp.zeros((out_dim,), jnp.float32), out_dim),
    ], axis=0)

    return {
        # conv stem: weights laid out (9*Cin, num_ftrs) for the 9 shifted matmuls
        "conv_w": w(ks[0], (9 * cin, num_ftrs)),
        "conv_b": s * jax.random.normal(ks[1], (1, num_ftrs), jnp.float32),
        # projection head (bias-free linears, final BN affine=False)
        "w1": w(ks[2], (num_ftrs, proj_hidden)),
        "w2": w(ks[3], (proj_hidden, proj_hidden)),
        "w3": w(ks[4], (proj_hidden, out_dim)),
        # prediction head (bias-free first linear, final linear carries the bias)
        "wp1": w(ks[5], (out_dim, pred_hidden)),
        "wp2": w(ks[6], (pred_hidden, out_dim)),
        "head_vec": head_vec,
    }


if __name__ == "__main__":
    key = jax.random.PRNGKey(0)
    kx, kp = jax.random.split(key)

    B, Cin, H, W = 2, 4, 16, 16
    num_ftrs, proj_hidden, pred_hidden, proj_dim = 128, 256, 256, 128

    x = jax.random.normal(kx, (B, Cin, H, W), jnp.float32)   # PyTorch-style NCHW
    params = init_params(kp, cin=Cin, num_ftrs=num_ftrs, proj_hidden=proj_hidden,
                         pred_hidden=pred_hidden, out_dim=proj_dim)

    fwd = jax.jit(mocov3_forward, static_argnames=("training",))
    out_train = jax.block_until_ready(fwd(x, params, training=True))
    out_eval = jax.block_until_ready(fwd(x, params, training=False))

    assert out_train.shape == (B, proj_dim)
    assert out_eval.shape == (B, num_ftrs)
    assert jnp.all(jnp.isfinite(out_train)) and jnp.all(jnp.isfinite(out_eval))
    print("KERNEL_OK")
</pallas_src>

<mosaic_0001>
module attributes {stable_mosaic.version = 11 : i64} {
  func.func @_backbone_kernel(%arg0: i32, %arg1: memref<2x18x18x4xbf16, #tpu.memory_space<vmem>>, %arg2: memref<36x128xbf16, #tpu.memory_space<vmem>>, %arg3: memref<1x128xf32, #tpu.memory_space<vmem>>, %arg4: memref<2x128xf32, #tpu.memory_space<vmem>>) attributes {dimension_semantics = [#tpu.dimension_semantics<parallel>], iteration_bounds = array<i64: 1>, scalar_prefetch = 0 : i64, scratch_operands = 0 : i64, tpu.core_type = #tpu.core_type<tc>, window_params = [{pipeline_mode = #tpu.pipeline_mode<synchronous>, transform_indices = @transform_0, window_bounds = array<i64: 2, 18, 18, 4>}, {transform_indices = @transform_1, window_bounds = array<i64: 36, 128>}, {transform_indices = @transform_2, window_bounds = array<i64: 1, 128>}, {transform_indices = @transform_3, window_bounds = array<i64: 2, 128>}]} {
    %c0 = arith.constant 0 : index
    %c0_0 = arith.constant 0 : index
    %0 = vector.load %arg3[%c0, %c0_0] : memref<1x128xf32, #tpu.memory_space<vmem>>, vector<1x128xf32>
    %c0_1 = arith.constant 0 : index
    %c0_2 = arith.constant 0 : index
    %1 = vector.load %arg2[%c0_1, %c0_2] : memref<36x128xbf16, #tpu.memory_space<vmem>>, vector<4x128xbf16>
    %c4 = arith.constant 4 : index
    %c0_3 = arith.constant 0 : index
    %2 = vector.load %arg2[%c4, %c0_3] : memref<36x128xbf16, #tpu.memory_space<vmem>>, vector<4x128xbf16>
    %c8 = arith.constant 8 : index
    %c0_4 = arith.constant 0 : index
    %3 = vector.load %arg2[%c8, %c0_4] : memref<36x128xbf16, #tpu.memory_space<vmem>>, vector<4x128xbf16>
    %c12 = arith.constant 12 : index
    %c0_5 = arith.constant 0 : index
    %4 = vector.load %arg2[%c12, %c0_5] : memref<36x128xbf16, #tpu.memory_space<vmem>>, vector<4x128xbf16>
    %c16 = arith.constant 16 : index
    %c0_6 = arith.constant 0 : index
    %5 = vector.load %arg2[%c16, %c0_6] : memref<36x128xbf16, #tpu.memory_space<vmem>>, vector<4x128xbf16>
    %c20 = arith.constant 20 : index
    %c0_7 = arith.constant 0 : index
    %6 = vector.load %arg2[%c20, %c0_7] : memref<36x128xbf16, #tpu.memory_space<vmem>>, vector<4x128xbf16>
    %c24 = arith.constant 24 : index
    %c0_8 = arith.constant 0 : index
    %7 = vector.load %arg2[%c24, %c0_8] : memref<36x128xbf16, #tpu.memory_space<vmem>>, vector<4x128xbf16>
    %c28 = arith.constant 28 : index
    %c0_9 = arith.constant 0 : index
    %8 = vector.load %arg2[%c28, %c0_9] : memref<36x128xbf16, #tpu.memory_space<vmem>>, vector<4x128xbf16>
    %c32 = arith.constant 32 : index
    %c0_10 = arith.constant 0 : index
    %9 = vector.load %arg2[%c32, %c0_10] : memref<36x128xbf16, #tpu.memory_space<vmem>>, vector<4x128xbf16>
    %cst = arith.constant 0.000000e+00 : f32
    %10 = vector.broadcast %cst : f32 to vector<2x128xf32>
    %c0_11 = arith.constant 0 : index
    %c0_12 = arith.constant 0 : index
    %c0_13 = arith.constant 0 : index
    %c0_14 = arith.constant 0 : index
    %11 = vector.load %arg1[%c0_11, %c0_12, %c0_13, %c0_14] : memref<2x18x18x4xbf16, #tpu.memory_space<vmem>>, vector<2x18x18x4xbf16>
    %cst_15 = arith.constant 0.000000e+00 : f32
    %12 = vector.broadcast %cst_15 : f32 to vector<512x128xf32>
    %13 = vector.extract_strided_slice %11 {offsets = [0, 0, 0, 0], sizes = [2, 16, 16, 4], strides = [1, 1, 1, 1]} : vector<2x18x18x4xbf16> to vector<2x16x16x4xbf16>
    %14 = vector.shape_cast %13 : vector<2x16x16x4xbf16> to vector<512x4xbf16>
    %cst_16 = arith.constant dense<0.000000e+00> : vector<512x128xf32>
    %15 = tpu.matmul %14, %1, %cst_16 {dimension_numbers = #tpu.dot_dimension_numbers<[1], [0], [0], [1], [0, 0, 1, 1], [], []>} : vector<512x4xbf16>, vector<4x128xbf16>, vector<512x128xf32> -> vector<512x128xf32>
    %16 = arith.addf %12, %15 : vector<512x128xf32>
    %17 = vector.extract_strided_slice %11 {offsets = [0, 0, 1, 0], sizes = [2, 16, 16, 4], strides = [1, 1, 1, 1]} : vector<2x18x18x4xbf16> to vector<2x16x16x4xbf16>
    %18 = vector.shape_cast %17 : vector<2x16x16x4xbf16> to vector<512x4xbf16>
    %cst_17 = arith.constant dense<0.000000e+00> : vector<512x128xf32>
    %19 = tpu.matmul %18, %2, %cst_17 {dimension_numbers = #tpu.dot_dimension_numbers<[1], [0], [0], [1], [0, 0, 1, 1], [], []>} : vector<512x4xbf16>, vector<4x128xbf16>, vector<512x128xf32> -> vector<512x128xf32>
    %20 = arith.addf %16, %19 : vector<512x128xf32>
    %21 = vector.extract_strided_slice %11 {offsets = [0, 0, 2, 0], sizes = [2, 16, 16, 4], strides = [1, 1, 1, 1]} : vector<2x18x18x4xbf16> to vector<2x16x16x4xbf16>
    %22 = vector.shape_cast %21 : vector<2x16x16x4xbf16> to vector<512x4xbf16>
    %cst_18 = arith.constant dense<0.000000e+00> : vector<512x128xf32>
    %23 = tpu.matmul %22, %3, %cst_18 {dimension_numbers = #tpu.dot_dimension_numbers<[1], [0], [0], [1], [0, 0, 1, 1], [], []>} : vector<512x4xbf16>, vector<4x128xbf16>, vector<512x128xf32> -> vector<512x128xf32>
    %24 = arith.addf %20, %23 : vector<512x128xf32>
    %25 = vector.extract_strided_slice %11 {offsets = [0, 1, 0, 0], sizes = [2, 16, 16, 4], strides = [1, 1, 1, 1]} : vector<2x18x18x4xbf16> to vector<2x16x16x4xbf16>
    %26 = vector.shape_cast %25 : vector<2x16x16x4xbf16> to vector<512x4xbf16>
    %cst_19 = arith.constant dense<0.000000e+00> : vector<512x128xf32>
    %27 = tpu.matmul %26, %4, %cst_19 {dimension_numbers = #tpu.dot_dimension_numbers<[1], [0], [0], [1], [0, 0, 1, 1], [], []>} : vector<512x4xbf16>, vector<4x128xbf16>, vector<512x128xf32> -> vector<512x128xf32>
    %28 = arith.addf %24, %27 : vector<512x128xf32>
    %29 = vector.extract_strided_slice %11 {offsets = [0, 1, 1, 0], sizes = [2, 16, 16, 4], strides = [1, 1, 1, 1]} : vector<2x18x18x4xbf16> to vector<2x16x16x4xbf16>
    %30 = vector.shape_cast %29 : vector<2x16x16x4xbf16> to vector<512x4xbf16>
    %cst_20 = arith.constant dense<0.000000e+00> : vector<512x128xf32>
    %31 = tpu.matmul %30, %5, %cst_20 {dimension_numbers = #tpu.dot_dimension_numbers<[1], [0], [0], [1], [0, 0, 1, 1], [], []>} : vector<512x4xbf16>, vector<4x128xbf16>, vector<512x128xf32> -> vector<512x128xf32>
    %32 = arith.addf %28, %31 : vector<512x128xf32>
    %33 = vector.extract_strided_slice %11 {offsets = [0, 1, 2, 0], sizes = [2, 16, 16, 4], strides = [1, 1, 1, 1]} : vector<2x18x18x4xbf16> to vector<2x16x16x4xbf16>
    %34 = vector.shape_cast %33 : vector<2x16x16x4xbf16> to vector<512x4xbf16>
    %cst_21 = arith.constant dense<0.000000e+00> : vector<512x128xf32>
    %35 = tpu.matmul %34, %6, %cst_21 {dimension_numbers = #tpu.dot_dimension_numbers<[1], [0], [0], [1], [0, 0, 1, 1], [], []>} : vector<512x4xbf16>, vector<4x128xbf16>, vector<512x128xf32> -> vector<512x128xf32>
    %36 = arith.addf %32, %35 : vector<512x128xf32>
    %37 = vector.extract_strided_slice %11 {offsets = [0, 2, 0, 0], sizes = [2, 16, 16, 4], strides = [1, 1, 1, 1]} : vector<2x18x18x4xbf16> to vector<2x16x16x4xbf16>
    %38 = vector.shape_cast %37 : vector<2x16x16x4xbf16> to vector<512x4xbf16>
    %cst_22 = arith.constant dense<0.000000e+00> : vector<512x128xf32>
    %39 = tpu.matmul %38, %7, %cst_22 {dimension_numbers = #tpu.dot_dimension_numbers<[1], [0], [0], [1], [0, 0, 1, 1], [], []>} : vector<512x4xbf16>, vector<4x128xbf16>, vector<512x128xf32> -> vector<512x128xf32>
    %40 = arith.addf %36, %39 : vector<512x128xf32>
    %41 = vector.extract_strided_slice %11 {offsets = [0, 2, 1, 0], sizes = [2, 16, 16, 4], strides = [1, 1, 1, 1]} : vector<2x18x18x4xbf16> to vector<2x16x16x4xbf16>
    %42 = vector.shape_cast %41 : vector<2x16x16x4xbf16> to vector<512x4xbf16>
    %cst_23 = arith.constant dense<0.000000e+00> : vector<512x128xf32>
    %43 = tpu.matmul %42, %8, %cst_23 {dimension_numbers = #tpu.dot_dimension_numbers<[1], [0], [0], [1], [0, 0, 1, 1], [], []>} : vector<512x4xbf16>, vector<4x128xbf16>, vector<512x128xf32> -> vector<512x128xf32>
    %44 = arith.addf %40, %43 : vector<512x128xf32>
    %45 = vector.extract_strided_slice %11 {offsets = [0, 2, 2, 0], sizes = [2, 16, 16, 4], strides = [1, 1, 1, 1]} : vector<2x18x18x4xbf16> to vector<2x16x16x4xbf16>
    %46 = vector.shape_cast %45 : vector<2x16x16x4xbf16> to vector<512x4xbf16>
    %cst_24 = arith.constant dense<0.000000e+00> : vector<512x128xf32>
    %47 = tpu.matmul %46, %9, %cst_24 {dimension_numbers = #tpu.dot_dimension_numbers<[1], [0], [0], [1], [0, 0, 1, 1], [], []>} : vector<512x4xbf16>, vector<4x128xbf16>, vector<512x128xf32> -> vector<512x128xf32>
    %48 = arith.addf %44, %47 : vector<512x128xf32>
    %49 = vector.broadcast %0 : vector<1x128xf32> to vector<512x128xf32>
    %50 = arith.addf %48, %49 : vector<512x128xf32>
    %cst_25 = arith.constant 0.000000e+00 : f32
    %51 = vector.broadcast %cst_25 : f32 to vector<512x128xf32>
    %52 = arith.maximumf %50, %51 : vector<512x128xf32>
    %53 = vector.shape_cast %52 : vector<512x128xf32> to vector<2x256x128xf32>
    %cst_26 = arith.constant dense<0.000000e+00> : vector<2x128xf32>
    %54 = vector.multi_reduction <add>, %53, %cst_26 [1] : vector<2x256x128xf32> to vector<2x128xf32>
    %55 = arith.addf %10, %54 : vector<2x128xf32>
    %cst_27 = arith.constant 3.906250e-03 : f32
    %56 = vector.broadcast %cst_27 : f32 to vector<2x128xf32>
    %57 = arith.mulf %55, %56 : vector<2x128xf32>
    %c0_28 = arith.constant 0 : index
    %c0_29 = arith.constant 0 : index
    %58 = vector.load %arg4[%c0_28, %c0_29] : memref<2x128xf32, #tpu.memory_space<vmem>>, vector<2x128xf32>
    tpu.vector_store %arg4[%c0_28, %c0_29], %57 {strides = array<i32>} : memref<2x128xf32, #tpu.memory_space<vmem>>, vector<2x128xf32>,
    return
  }
  func.func @transform_0(%arg0: i32) -> (i32, i32, i32, i32) {
    %c0_i32 = arith.constant 0 : i32
    %c0_i32_0 = arith.constant 0 : i32
    %c0_i32_1 = arith.constant 0 : i32
    %c0_i32_2 = arith.constant 0 : i32
    %c0_i32_3 = arith.constant 0 : i32
    return %c0_i32, %c0_i32_0, %c0_i32_1, %c0_i32_2 : i32, i32, i32, i32
  }
  func.func @transform_1(%arg0: i32) -> (i32, i32) {
    %c0_i32 = arith.constant 0 : i32
    %c0_i32_0 = arith.constant 0 : i32
    return %c0_i32, %arg0 : i32, i32
  }
  func.func @transform_2(%arg0: i32) -> (i32, i32) {
    %c0_i32 = arith.constant 0 : i32
    %c0_i32_0 = arith.constant 0 : i32
    return %c0_i32, %arg0 : i32, i32
  }
  func.func @transform_3(%arg0: i32) -> (i32, i32) {
    %c0_i32 = arith.constant 0 : i32
    %c0_i32_0 = arith.constant 0 : i32
    return %c0_i32, %arg0 : i32, i32
  }
}

module attributes {stable_mosaic.version = 11 : i64} {
  func.func @_head_kernel(%arg0: i32, %arg1: memref<2x128xf32, #tpu.memory_space<vmem>>, %arg2: memref<128x256xbf16, #tpu.memory_space<vmem>>, %arg3: memref<256x256xbf16, #tpu.memory_space<vmem>>, %arg4: memref<256x128xbf16, #tpu.memory_space<vmem>>, %arg5: memref<128x256xbf16, #tpu.memory_space<vmem>>, %arg6: memref<256x128xbf16, #tpu.memory_space<vmem>>, %arg7: memref<7x256xf32, #tpu.memory_space<vmem>>, %arg8: memref<2x128xf32, #tpu.memory_space<vmem>>) attributes {dimension_semantics = [#tpu.dimension_semantics<arbitrary>], iteration_bounds = array<i64: 1>, scalar_prefetch = 0 : i64, scratch_operands = 0 : i64, tpu.core_type = #tpu.core_type<tc>, window_params = [{pipeline_mode = #tpu.pipeline_mode<synchronous>, transform_indices = @transform_0, window_bounds = array<i64: 2, 128>}, {pipeline_mode = #tpu.pipeline_mode<synchronous>, transform_indices = @transform_1, window_bounds = array<i64: 128, 256>}, {pipeline_mode = #tpu.pipeline_mode<synchronous>, transform_indices = @transform_2, window_bounds = array<i64: 256, 256>}, {pipeline_mode = #tpu.pipeline_mode<synchronous>, transform_indices = @transform_3, window_bounds = array<i64: 256, 128>}, {pipeline_mode = #tpu.pipeline_mode<synchronous>, transform_indices = @transform_4, window_bounds = array<i64: 128, 256>}, {pipeline_mode = #tpu.pipeline_mode<synchronous>, transform_indices = @transform_5, window_bounds = array<i64: 256, 128>}, {pipeline_mode = #tpu.pipeline_mode<synchronous>, transform_indices = @transform_6, window_bounds = array<i64: 7, 256>}, {pipeline_mode = #tpu.pipeline_mode<synchronous>, transform_indices = @transform_7, window_bounds = array<i64: 2, 128>}]} {
    %c0 = arith.constant 0 : index
    %c0_0 = arith.constant 0 : index
    %0 = vector.load %arg1[%c0, %c0_0] : memref<2x128xf32, #tpu.memory_space<vmem>>, vector<2x128xf32>
    %1 = arith.truncf %0 : vector<2x128xf32> to vector<2x128xbf16>
    %c0_1 = arith.constant 0 : index
    %c0_2 = arith.constant 0 : index
    %2 = vector.load %arg2[%c0_1, %c0_2] : memref<128x256xbf16, #tpu.memory_space<vmem>>, vector<128x256xbf16>
    %cst = arith.constant dense<0.000000e+00> : vector<2x256xf32>
    %3 = tpu.matmul %1, %2, %cst {dimension_numbers = #tpu.dot_dimension_numbers<[1], [0], [0], [1], [0, 0, 1, 1], [], []>} : vector<2x128xbf16>, vector<128x256xbf16>, vector<2x256xf32> -> vector<2x256xf32>
    %c0_3 = arith.constant 0 : index
    %c0_4 = arith.constant 0 : index
    %4 = vector.load %arg7[%c0_3, %c0_4] : memref<7x256xf32, #tpu.memory_space<vmem>>, vector<1x256xf32>
    %c1 = arith.constant 1 : index
    %c0_5 = arith.constant 0 : index
    %5 = vector.load %arg7[%c1, %c0_5] : memref<7x256xf32, #tpu.memory_space<vmem>>, vector<1x256xf32>
    %cst_6 = arith.constant dense<0.000000e+00> : vector<256xf32>
    %6 = vector.multi_reduction <add>, %3, %cst_6 [0] : vector<2x256xf32> to vector<256xf32>
    %7 = vector.shape_cast %6 : vector<256xf32> to vector<1x256xf32>
    %cst_7 = arith.constant 2.000000e+00 : f32
    %8 = vector.broadcast %cst_7 : f32 to vector<1x256xf32>
    %9 = arith.divf %7, %8 : vector<1x256xf32>
    %10 = vector.broadcast %9 : vector<1x256xf32> to vector<2x256xf32>
    %11 = arith.subf %3, %10 : vector<2x256xf32>
    %12 = arith.mulf %11, %11 : vector<2x256xf32>
    %cst_8 = arith.constant dense<0.000000e+00> : vector<256xf32>
    %13 = vector.multi_reduction <add>, %12, %cst_8 [0] : vector<2x256xf32> to vector<256xf32>
    %14 = vector.shape_cast %13 : vector<256xf32> to vector<1x256xf32>
    %cst_9 = arith.constant 2.000000e+00 : f32
    %15 = vector.broadcast %cst_9 : f32 to vector<1x256xf32>
    %16 = arith.divf %14, %15 : vector<1x256xf32>
    %cst_10 = arith.constant 9.99999974E-6 : f32
    %17 = vector.broadcast %cst_10 : f32 to vector<1x256xf32>
    %18 = arith.addf %16, %17 : vector<1x256xf32>
    %19 = math.rsqrt %18 : vector<1x256xf32>
    %20 = vector.broadcast %19 : vector<1x256xf32> to vector<2x256xf32>
    %21 = arith.mulf %11, %20 : vector<2x256xf32>
    %22 = vector.broadcast %4 : vector<1x256xf32> to vector<2x256xf32>
    %23 = arith.mulf %21, %22 : vector<2x256xf32>
    %24 = vector.broadcast %5 : vector<1x256xf32> to vector<2x256xf32>
    %25 = arith.addf %23, %24 : vector<2x256xf32>
    %cst_11 = arith.constant 0.000000e+00 : f32
    %26 = vector.broadcast %cst_11 : f32 to vector<2x256xf32>
    %27 = arith.maximumf %25, %26 : vector<2x256xf32>
    %28 = arith.truncf %27 : vector<2x256xf32> to vector<2x256xbf16>
    %c0_12 = arith.constant 0 : index
    %c0_13 = arith.constant 0 : index
    %29 = vector.load %arg3[%c0_12, %c0_13] : memref<256x256xbf16, #tpu.memory_space<vmem>>, vector<256x256xbf16>
    %cst_14 = arith.constant dense<0.000000e+00> : vector<2x256xf32>
    %30 = tpu.matmul %28, %29, %cst_14 {dimension_numbers = #tpu.dot_dimension_numbers<[1], [0], [0], [1], [0, 0, 1, 1], [], []>} : vector<2x256xbf16>, vector<256x256xbf16>, vector<2x256xf32> -> vector<2x256xf32>
    %c2 = arith.constant 2 : index
    %c0_15 = arith.constant 0 : index
    %31 = vector.load %arg7[%c2, %c0_15] : memref<7x256xf32, #tpu.memory_space<vmem>>, vector<1x256xf32>
    %c3 = arith.constant 3 : index
    %c0_16 = arith.constant 0 : index
    %32 = vector.load %arg7[%c3, %c0_16] : memref<7x256xf32, #tpu.memory_space<vmem>>, vector<1x256xf32>
    %cst_17 = arith.constant dense<0.000000e+00> : vector<256xf32>
    %33 = vector.multi_reduction <add>, %30, %cst_17 [0] : vector<2x256xf32> to vector<256xf32>
    %34 = vector.shape_cast %33 : vector<256xf32> to vector<1x256xf32>
    %cst_18 = arith.constant 2.000000e+00 : f32
    %35 = vector.broadcast %cst_18 : f32 to vector<1x256xf32>
    %36 = arith.divf %34, %35 : vector<1x256xf32>
    %37 = vector.broadcast %36 : vector<1x256xf32> to vector<2x256xf32>
    %38 = arith.subf %30, %37 : vector<2x256xf32>
    %39 = arith.mulf %38, %38 : vector<2x256xf32>
    %cst_19 = arith.constant dense<0.000000e+00> : vector<256xf32>
    %40 = vector.multi_reduction <add>, %39, %cst_19 [0] : vector<2x256xf32> to vector<256xf32>
    %41 = vector.shape_cast %40 : vector<256xf32> to vector<1x256xf32>
    %cst_20 = arith.constant 2.000000e+00 : f32
    %42 = vector.broadcast %cst_20 : f32 to vector<1x256xf32>
    %43 = arith.divf %41, %42 : vector<1x256xf32>
    %cst_21 = arith.constant 9.99999974E-6 : f32
    %44 = vector.broadcast %cst_21 : f32 to vector<1x256xf32>
    %45 = arith.addf %43, %44 : vector<1x256xf32>
    %46 = math.rsqrt %45 : vector<1x256xf32>
    %47 = vector.broadcast %46 : vector<1x256xf32> to vector<2x256xf32>
    %48 = arith.mulf %38, %47 : vector<2x256xf32>
    %49 = vector.broadcast %31 : vector<1x256xf32> to vector<2x256xf32>
    %50 = arith.mulf %48, %49 : vector<2x256xf32>
    %51 = vector.broadcast %32 : vector<1x256xf32> to vector<2x256xf32>
    %52 = arith.addf %50, %51 : vector<2x256xf32>
    %cst_22 = arith.constant 0.000000e+00 : f32
    %53 = vector.broadcast %cst_22 : f32 to vector<2x256xf32>
    %54 = arith.maximumf %52, %53 : vector<2x256xf32>
    %55 = arith.truncf %54 : vector<2x256xf32> to vector<2x256xbf16>
    %c0_23 = arith.constant 0 : index
    %c0_24 = arith.constant 0 : index
    %56 = vector.load %arg4[%c0_23, %c0_24] : memref<256x128xbf16, #tpu.memory_space<vmem>>, vector<256x128xbf16>
    %cst_25 = arith.constant dense<0.000000e+00> : vector<2x128xf32>
    %57 = tpu.matmul %55, %56, %cst_25 {dimension_numbers = #tpu.dot_dimension_numbers<[1], [0], [0], [1], [0, 0, 1, 1], [], []>} : vector<2x256xbf16>, vector<256x128xbf16>, vector<2x128xf32> -> vector<2x128xf32>
    %cst_26 = arith.constant dense<0.000000e+00> : vector<128xf32>
    %58 = vector.multi_reduction <add>, %57, %cst_26 [0] : vector<2x128xf32> to vector<128xf32>
    %59 = vector.shape_cast %58 : vector<128xf32> to vector<1x128xf32>
    %cst_27 = arith.constant 2.000000e+00 : f32
    %60 = vector.broadcast %cst_27 : f32 to vector<1x128xf32>
    %61 = arith.divf %59, %60 : vector<1x128xf32>
    %62 = vector.broadcast %61 : vector<1x128xf32> to vector<2x128xf32>
    %63 = arith.subf %57, %62 : vector<2x128xf32>
    %64 = arith.mulf %63, %63 : vector<2x128xf32>
    %cst_28 = arith.constant dense<0.000000e+00> : vector<128xf32>
    %65 = vector.multi_reduction <add>, %64, %cst_28 [0] : vector<2x128xf32> to vector<128xf32>
    %66 = vector.shape_cast %65 : vector<128xf32> to vector<1x128xf32>
    %cst_29 = arith.constant 2.000000e+00 : f32
    %67 = vector.broadcast %cst_29 : f32 to vector<1x128xf32>
    %68 = arith.divf %66, %67 : vector<1x128xf32>
    %cst_30 = arith.constant 9.99999974E-6 : f32
    %69 = vector.broadcast %cst_30 : f32 to vector<1x128xf32>
    %70 = arith.addf %68, %69 : vector<1x128xf32>
    %71 = math.rsqrt %70 : vector<1x128xf32>
    %72 = vector.broadcast %71 : vector<1x128xf32> to vector<2x128xf32>
    %73 = arith.mulf %63, %72 : vector<2x128xf32>
    %74 = arith.truncf %73 : vector<2x128xf32> to vector<2x128xbf16>
    %c0_31 = arith.constant 0 : index
    %c0_32 = arith.constant 0 : index
    %75 = vector.load %arg5[%c0_31, %c0_32] : memref<128x256xbf16, #tpu.memory_space<vmem>>, vector<128x256xbf16>
    %cst_33 = arith.constant dense<0.000000e+00> : vector<2x256xf32>
    %76 = tpu.matmul %74, %75, %cst_33 {dimension_numbers = #tpu.dot_dimension_numbers<[1], [0], [0], [1], [0, 0, 1, 1], [], []>} : vector<2x128xbf16>, vector<128x256xbf16>, vector<2x256xf32> -> vector<2x256xf32>
    %c4 = arith.constant 4 : index
    %c0_34 = arith.constant 0 : index
    %77 = vector.load %arg7[%c4, %c0_34] : memref<7x256xf32, #tpu.memory_space<vmem>>, vector<1x256xf32>
    %c5 = arith.constant 5 : index
    %c0_35 = arith.constant 0 : index
    %78 = vector.load %arg7[%c5, %c0_35] : memref<7x256xf32, #tpu.memory_space<vmem>>, vector<1x256xf32>
    %cst_36 = arith.constant dense<0.000000e+00> : vector<256xf32>
    %79 = vector.multi_reduction <add>, %76, %cst_36 [0] : vector<2x256xf32> to vector<256xf32>
    %80 = vector.shape_cast %79 : vector<256xf32> to vector<1x256xf32>
    %cst_37 = arith.constant 2.000000e+00 : f32
    %81 = vector.broadcast %cst_37 : f32 to vector<1x256xf32>
    %82 = arith.divf %80, %81 : vector<1x256xf32>
    %83 = vector.broadcast %82 : vector<1x256xf32> to vector<2x256xf32>
    %84 = arith.subf %76, %83 : vector<2x256xf32>
    %85 = arith.mulf %84, %84 : vector<2x256xf32>
    %cst_38 = arith.constant dense<0.000000e+00> : vector<256xf32>
    %86 = vector.multi_reduction <add>, %85, %cst_38 [0] : vector<2x256xf32> to vector<256xf32>
    %87 = vector.shape_cast %86 : vector<256xf32> to vector<1x256xf32>
    %cst_39 = arith.constant 2.000000e+00 : f32
    %88 = vector.broadcast %cst_39 : f32 to vector<1x256xf32>
    %89 = arith.divf %87, %88 : vector<1x256xf32>
    %cst_40 = arith.constant 9.99999974E-6 : f32
    %90 = vector.broadcast %cst_40 : f32 to vector<1x256xf32>
    %91 = arith.addf %89, %90 : vector<1x256xf32>
    %92 = math.rsqrt %91 : vector<1x256xf32>
    %93 = vector.broadcast %92 : vector<1x256xf32> to vector<2x256xf32>
    %94 = arith.mulf %84, %93 : vector<2x256xf32>
    %95 = vector.broadcast %77 : vector<1x256xf32> to vector<2x256xf32>
    %96 = arith.mulf %94, %95 : vector<2x256xf32>
    %97 = vector.broadcast %78 : vector<1x256xf32> to vector<2x256xf32>
    %98 = arith.addf %96, %97 : vector<2x256xf32>
    %cst_41 = arith.constant 0.000000e+00 : f32
    %99 = vector.broadcast %cst_41 : f32 to vector<2x256xf32>
    %100 = arith.maximumf %98, %99 : vector<2x256xf32>
    %101 = arith.truncf %100 : vector<2x256xf32> to vector<2x256xbf16>
    %c0_42 = arith.constant 0 : index
    %c0_43 = arith.constant 0 : index
    %102 = vector.load %arg6[%c0_42, %c0_43] : memref<256x128xbf16, #tpu.memory_space<vmem>>, vector<256x128xbf16>
    %cst_44 = arith.constant dense<0.000000e+00> : vector<2x128xf32>
    %103 = tpu.matmul %101, %102, %cst_44 {dimension_numbers = #tpu.dot_dimension_numbers<[1], [0], [0], [1], [0, 0, 1, 1], [], []>} : vector<2x256xbf16>, vector<256x128xbf16>, vector<2x128xf32> -> vector<2x128xf32>
    %c6 = arith.constant 6 : index
    %c0_45 = arith.constant 0 : index
    %104 = vector.load %arg7[%c6, %c0_45] : memref<7x256xf32, #tpu.memory_space<vmem>>, vector<1x128xf32>
    %105 = vector.broadcast %104 : vector<1x128xf32> to vector<2x128xf32>
    %106 = arith.addf %103, %105 : vector<2x128xf32>
    %c0_46 = arith.constant 0 : index
    %c0_47 = arith.constant 0 : index
    %107 = vector.load %arg8[%c0_46, %c0_47] : memref<2x128xf32, #tpu.memory_space<vmem>>, vector<2x128xf32>
    tpu.vector_store %arg8[%c0_46, %c0_47], %106 {strides = array<i32>} : memref<2x128xf32, #tpu.memory_space<vmem>>, vector<2x128xf32>,
    return
  }
  func.func @transform_0(%arg0: i32) -> (i32, i32) {
    %c0_i32 = arith.constant 0 : i32
    %c0_i32_0 = arith.constant 0 : i32
    %c0_i32_1 = arith.constant 0 : i32
    return %c0_i32, %c0_i32_0 : i32, i32
  }
  func.func @transform_1(%arg0: i32) -> (i32, i32) {
    %c0_i32 = arith.constant 0 : i32
    %c0_i32_0 = arith.constant 0 : i32
    %c0_i32_1 = arith.constant 0 : i32
    return %c0_i32, %c0_i32_0 : i32, i32
  }
  func.func @transform_2(%arg0: i32) -> (i32, i32) {
    %c0_i32 = arith.constant 0 : i32
    %c0_i32_0 = arith.constant 0 : i32
    %c0_i32_1 = arith.constant 0 : i32
    return %c0_i32, %c0_i32_0 : i32, i32
  }
  func.func @transform_3(%arg0: i32) -> (i32, i32) {
    %c0_i32 = arith.constant 0 : i32
    %c0_i32_0 = arith.constant 0 : i32
    %c0_i32_1 = arith.constant 0 : i32
    return %c0_i32, %c0_i32_0 : i32, i32
  }
  func.func @transform_4(%arg0: i32) -> (i32, i32) {
    %c0_i32 = arith.constant 0 : i32
    %c0_i32_0 = arith.constant 0 : i32
    %c0_i32_1 = arith.constant 0 : i32
    return %c0_i32, %c0_i32_0 : i32, i32
  }
  func.func @transform_5(%arg0: i32) -> (i32, i32) {
    %c0_i32 = arith.constant 0 : i32
    %c0_i32_0 = arith.constant 0 : i32
    %c0_i32_1 = arith.constant 0 : i32
    return %c0_i32, %c0_i32_0 : i32, i32
  }
  func.func @transform_6(%arg0: i32) -> (i32, i32) {
    %c0_i32 = arith.constant 0 : i32
    %c0_i32_0 = arith.constant 0 : i32
    %c0_i32_1 = arith.constant 0 : i32
    return %c0_i32, %c0_i32_0 : i32, i32
  }
  func.func @transform_7(%arg0: i32) -> (i32, i32) {
    %c0_i32 = arith.constant 0 : i32
    %c0_i32_0 = arith.constant 0 : i32
    %c0_i32_1 = arith.constant 0 : i32
    return %c0_i32, %c0_i32_0 : i32, i32
  }
}

</mosaic_0001>

<llo_original>
// kernel: mocov3_forward.3
$region0: #{mocov3_forward.3}
  #allocation0 [shape = 'u32[]', space=smem, size = 0x4, offset = 0x4, fixed_abs, tag = 'smem constant byte address 0x4 - core index']
  #allocation1 [shape = 'u32[144,128]{1,0:T(1,128)}', space=vmem, size = 0x12000, scoped, tag = 'internal scratch']
  %s0 = inlined_call_operand.vmem [shape: f32[2,128], index: 0, kind: input, shape index: {}]
  %s1 = inlined_call_operand.vmem [shape: bf16[128,256], index: 1, kind: input, shape index: {}]
  %s2 = inlined_call_operand.vmem [shape: bf16[256,256], index: 2, kind: input, shape index: {}]
  %s3 = inlined_call_operand.vmem [shape: bf16[256,128], index: 3, kind: input, shape index: {}]
  %s4 = inlined_call_operand.vmem [shape: bf16[128,256], index: 4, kind: input, shape index: {}]
  %s5 = inlined_call_operand.vmem [shape: bf16[256,128], index: 5, kind: input, shape index: {}]
  %s6 = inlined_call_operand.vmem [shape: f32[7,256], index: 6, kind: input, shape index: {}]
  %s7 = inlined_call_operand.hbm [shape: f32[2,128], index: 7, kind: output, shape index: {}]
  %s8 = sld [smem:[#allocation0]]
  $region38: #{mocov3_forward.3} parent=0
    _
  %s10 = ssub.s32 1, %s8
  %s11 = scalar_select 0, %s10, %s8
  $region1: #{mocov3_forward.3} parent=0
    #allocation2 [shape = 'u8[1024]{0}', space=vmem, size = 0x400, scoped, tag = 'output window, operand 0, single buffered']
    #allocation3 [shape = 's32[1]{0}', space=sflag, size = 0x4, scoped, tag = 'scoped memory for mocov3_forward.3']
    %12 = vsyncpa [#allocation3], 0
    // Predicated region
    $region2: #{mocov3_forward.3} parent=1 // pred_check
      _
    $region3: #{mocov3_forward.3} parent=1 // pred_check_branch
      %14 = sbr.rel (0) target = $region5
    $region4: #{mocov3_forward.3} parent=1 // pred_region
      _
    $region5: #{mocov3_forward.3} parent=1 // pred_fallthru
      _
    // Predicated region
    $region6: #{mocov3_forward.3} parent=1 // pred_check
      _
    $region7: #{mocov3_forward.3} parent=1 // pred_check_branch
      %16 = sbr.rel (0) target = $region9
    $region8: #{mocov3_forward.3} parent=1 // pred_region
      _
    $region9: #{mocov3_forward.3} parent=1 // pred_fallthru
      _
    // Predicated region
    $region10: #{mocov3_forward.3} parent=1 // pred_check
      _
    $region11: #{mocov3_forward.3} parent=1 // pred_check_branch
      %18 = sbr.rel (0) target = $region13
    $region12: #{mocov3_forward.3} parent=1 // pred_region
      _
    $region13: #{mocov3_forward.3} parent=1 // pred_fallthru
      _
    // Predicated region
    $region14: #{mocov3_forward.3} parent=1 // pred_check
      _
    $region15: #{mocov3_forward.3} parent=1 // pred_check_branch
      %20 = sbr.rel (0) target = $region17
    $region16: #{mocov3_forward.3} parent=1 // pred_region
      _
    $region17: #{mocov3_forward.3} parent=1 // pred_fallthru
      _
    // Predicated region
    $region18: #{mocov3_forward.3} parent=1 // pred_check
      _
    $region19: #{mocov3_forward.3} parent=1 // pred_check_branch
      %22 = sbr.rel (0) target = $region21
    $region20: #{mocov3_forward.3} parent=1 // pred_region
      _
    $region21: #{mocov3_forward.3} parent=1 // pred_fallthru
      _
    // Predicated region
    $region22: #{mocov3_forward.3} parent=1 // pred_check
      _
    $region23: #{mocov3_forward.3} parent=1 // pred_check_branch
      %24 = sbr.rel (0) target = $region25
    $region24: #{mocov3_forward.3} parent=1 // pred_region
      _
    $region25: #{mocov3_forward.3} parent=1 // pred_fallthru
      _
    // Predicated region
    $region26: #{mocov3_forward.3} parent=1 // pred_check
      _
    $region27: #{mocov3_forward.3} parent=1 // pred_check_branch
      %26 = sbr.rel (0) target = $region29
    $region28: #{mocov3_forward.3} parent=1 // pred_region
      _
    $region29: #{mocov3_forward.3} parent=1 // pred_fallthru
      _
    %v28 = vld [vmem:[%s0] sm:$0x3]
    %v29 = vpack.c.bf16 %v28, %v28
    %v30 = vld [vmem:[%s1] sm:$0xff]
    %v31 = vld [vmem:[%s1 + $0x8] sm:$0xff]
    %v32 = vld [vmem:[%s1 + $0x10] sm:$0xff]
    %v33 = vld [vmem:[%s1 + $0x18] sm:$0xff]
    %v34 = vld [vmem:[%s1 + $0x20] sm:$0xff]
    %v35 = vld [vmem:[%s1 + $0x28] sm:$0xff]
    %v36 = vld [vmem:[%s1 + $0x30] sm:$0xff]
    %v37 = vld [vmem:[%s1 + $0x38] sm:$0xff]
    %v38 = vld [vmem:[%s1 + $0x40] sm:$0xff]
    %v39 = vld [vmem:[%s1 + $0x48] sm:$0xff]
    %v40 = vld [vmem:[%s1 + $0x50] sm:$0xff]
    %v41 = vld [vmem:[%s1 + $0x58] sm:$0xff]
    %v42 = vld [vmem:[%s1 + $0x60] sm:$0xff]
    %v43 = vld [vmem:[%s1 + $0x68] sm:$0xff]
    %v44 = vld [vmem:[%s1 + $0x70] sm:$0xff]
    %v45 = vld [vmem:[%s1 + $0x78] sm:$0xff]
    %v62 = vunpack.c.l.b16 %v30
    %v63 = vunpack.c.h.b16 %v30
    %v64 = vunpack.c.l.b16 %v31
    %v65 = vunpack.c.h.b16 %v31
    %v66 = vunpack.c.l.b16 %v32
    %v67 = vunpack.c.h.b16 %v32
    %v68 = vunpack.c.l.b16 %v33
    %v69 = vunpack.c.h.b16 %v33
    %v70 = vunpack.c.l.b16 %v34
    %v71 = vunpack.c.h.b16 %v34
    %v72 = vunpack.c.l.b16 %v35
    %v73 = vunpack.c.h.b16 %v35
    %v74 = vunpack.c.l.b16 %v36
    %v75 = vunpack.c.h.b16 %v36
    %v76 = vunpack.c.l.b16 %v37
    %v77 = vunpack.c.h.b16 %v37
    %v78 = vunpack.c.l.b16 %v38
    %v79 = vunpack.c.h.b16 %v38
    %v80 = vunpack.c.l.b16 %v39
    %v81 = vunpack.c.h.b16 %v39
    %v82 = vunpack.c.l.b16 %v40
    %v83 = vunpack.c.h.b16 %v40
    %v84 = vunpack.c.l.b16 %v41
    %v85 = vunpack.c.h.b16 %v41
    %v86 = vunpack.c.l.b16 %v42
    %v87 = vunpack.c.h.b16 %v42
    %v88 = vunpack.c.l.b16 %v43
    %v89 = vunpack.c.h.b16 %v43
    %v90 = vunpack.c.l.b16 %v44
    %v91 = vunpack.c.h.b16 %v44
    %v92 = vunpack.c.l.b16 %v45
    %v93 = vunpack.c.h.b16 %v45
    %v94 = vpack.c.b16 %v64, %v62
    %v95 = vpack.c.b16 %v65, %v63
    %v96 = vpack.c.b16 %v68, %v66
    %v97 = vpack.c.b16 %v69, %v67
    %v98 = vpack.c.b16 %v72, %v70
    %v99 = vpack.c.b16 %v73, %v71
    %v100 = vpack.c.b16 %v76, %v74
    %v101 = vpack.c.b16 %v77, %v75
    %v102 = vpack.c.b16 %v80, %v78
    %v103 = vpack.c.b16 %v81, %v79
    %v104 = vpack.c.b16 %v84, %v82
    %v105 = vpack.c.b16 %v85, %v83
    %v106 = vpack.c.b16 %v88, %v86
    %v107 = vpack.c.b16 %v89, %v87
    %v108 = vpack.c.b16 %v92, %v90
    %v109 = vpack.c.b16 %v93, %v91
    %126 = vmatprep.subr.bf16.mxu0 %v109
    %127 = vmatpush1.bf16.msra.mxu0 %v108
    %128 = vmatprep.subr.bf16.mxu0 %v107
    %129 = vmatpush1.bf16.msra.mxu0 %v106
    %130 = vmatprep.subr.bf16.mxu0 %v105
    %131 = vmatpush1.bf16.msra.mxu0 %v104
    %132 = vmatprep.subr.bf16.mxu0 %v103
    %133 = vmatpush1.bf16.msra.mxu0 %v102
    %134 = vmatprep.subr.bf16.mxu0 %v101
    %135 = vmatpush1.bf16.msra.mxu0 %v100
    %136 = vmatprep.subr.bf16.mxu0 %v99
    %137 = vmatpush1.bf16.msra.mxu0 %v98
    %138 = vmatprep.subr.bf16.mxu0 %v97
    %139 = vmatpush1.bf16.msra.mxu0 %v96
    %140 = vmatprep.subr.bf16.mxu0 %v95
    %141 = vmatpush1.bf16.msra.mxu0 %v94
    %142 = vmatprep.subr.bf16.mxu0 0
    %143 = vmatpush2.bf16.msra.mxu0 0
    %144 = vmatprep.subr.bf16.mxu0 0
    %145 = vmatpush2.bf16.msra.mxu0 0
    %146 = vmatprep.subr.bf16.mxu0 0
    %147 = vmatpush2.bf16.msra.mxu0 0
    %148 = vmatprep.subr.bf16.mxu0 0
    %149 = vmatpush2.bf16.msra.mxu0 0
    %150 = vmatprep.subr.bf16.mxu0 0
    %151 = vmatpush2.bf16.msra.mxu0 0
    %152 = vmatprep.subr.bf16.mxu0 0
    %153 = vmatpush2.bf16.msra.mxu0 0
    %154 = vmatprep.subr.bf16.mxu0 0
    %155 = vmatpush2.bf16.msra.mxu0 0
    %156 = vmatprep.subr.bf16.mxu0 0
    %157 = vmatpush2.bf16.msra.mxu0 0
    %158 = vmatprep.mubr.bf16.mxu0 0
    %159 = vmatmul.mubr.bf16.gmra.mxu0 %v29
    %v160 = vpop.f32.mrf.mxu0
    %v161 = vadd.f32 0.0, %v160
    %v162 = vpop.f32.mrf.mxu0
    %v163 = vadd.f32 0.0, %v162
    %v164 = vpop.f32.mrf.mxu0
    %v165 = vpop.f32.mrf.mxu0
    %166 = vdwg.mxu0
    %v167 = vld [vmem:[%s6] ss:$8 sm:$0x3]
    %s168 = scalar_lea.vmem %s6, 1
    %v169 = vld [vmem:[%s168] ss:$8 sm:$0x3]
    %vm170 = vcmask 1041408
    %v171 = vsel %vm170, %v161, 0.0
    %v172 = vrot.slane %v171, 4
    %v173 = vadd.f32 %v171, %v172
    %v174 = vrot.slane %v173, 2
    %v175 = vadd.f32 %v173, %v174
    %v176 = vrot.slane %v175, 1
    %v177 = vadd.f32 %v175, %v176
    %v178 = vsel %vm170, %v163, 0.0
    %v179 = vrot.slane %v178, 4
    %v180 = vadd.f32 %v178, %v179
    %v181 = vrot.slane %v180, 2
    %v182 = vadd.f32 %v180, %v181
    %v183 = vrot.slane %v182, 1
    %v184 = vadd.f32 %v182, %v183
    %v185 = vrcp.pop 2.0
    %v186 = vmul.f32 %v177, %v185
    %v187 = vmul.f32 %v184, %v185
    %v188 = vsub.f32 %v161, %v186
    %v189 = vsub.f32 %v163, %v187
    %v190 = vmul.f32 %v188, %v188
    %v191 = vmul.f32 %v189, %v189
    %v192 = vsel %vm170, %v190, 0.0
    %v193 = vrot.slane %v192, 4
    %v194 = vadd.f32 %v192, %v193
    %v195 = vrot.slane %v194, 2
    %v196 = vadd.f32 %v194, %v195
    %v197 = vrot.slane %v196, 1
    %v198 = vadd.f32 %v196, %v197
    %v199 = vsel %vm170, %v191, 0.0
    %v200 = vrot.slane %v199, 4
    %v201 = vadd.f32 %v199, %v200
    %v202 = vrot.slane %v201, 2
    %v203 = vadd.f32 %v201, %v202
    %v204 = vrot.slane %v203, 1
    %v205 = vadd.f32 %v203, %v204
    %v206 = vmul.f32 %v198, %v185
    %v207 = vmul.f32 %v205, %v185
    %v208 = vadd.f32 %v206, 1e-05
    %v209 = vadd.f32 %v207, 1e-05
    %v210 = vrsqrt.pop %v208
    %v211 = vrsqrt.pop %v209
    %v212 = vmul.f32 %v188, %v210
    %v213 = vmul.f32 %v189, %v211
    %v215 = vlaneseq
    %v216 = vshrl.u32 %v215, 7
    %v217 = vsub.s32 0, %v216
    %v218 = vrot.slane %v167, %v217
    %v219 = vlaneseq
    %v220 = vshrl.u32 %v219, 7
    %v221 = vsub.s32 1, %v220
    %v222 = vrot.slane %v167, %v221
    %v225 = vmul.f32 %v212, %v218
    %v226 = vmul.f32 %v213, %v222
    %v228 = vlaneseq
    %v229 = vshrl.u32 %v228, 7
    %v230 = vsub.s32 0, %v229
    %v231 = vrot.slane %v169, %v230
    %v232 = vlaneseq
    %v233 = vshrl.u32 %v232, 7
    %v234 = vsub.s32 1, %v233
    %v235 = vrot.slane %v169, %v234
    %v238 = vadd.f32 %v225, %v231
    %v239 = vadd.f32 %v226, %v235
    %v240 = vmax.f32 %v238, 0.0
    %v241 = vmax.f32 %v239, 0.0
    %v242 = vpack.c.bf16 %v240, %v240
    %v243 = vpack.c.bf16 %v241, %v241
    %v244 = vld [vmem:[%s2] sm:$0xff]
    %v245 = vld [vmem:[%s2 + $0x8] sm:$0xff]
    %v246 = vld [vmem:[%s2 + $0x10] sm:$0xff]
    %v247 = vld [vmem:[%s2 + $0x18] sm:$0xff]
    %v248 = vld [vmem:[%s2 + $0x20] sm:$0xff]
    %v249 = vld [vmem:[%s2 + $0x28] sm:$0xff]
    %v250 = vld [vmem:[%s2 + $0x30] sm:$0xff]
    %v251 = vld [vmem:[%s2 + $0x38] sm:$0xff]
    %v252 = vld [vmem:[%s2 + $0x40] sm:$0xff]
    %v253 = vld [vmem:[%s2 + $0x48] sm:$0xff]
    %v254 = vld [vmem:[%s2 + $0x50] sm:$0xff]
    %v255 = vld [vmem:[%s2 + $0x58] sm:$0xff]
    %v256 = vld [vmem:[%s2 + $0x60] sm:$0xff]
    %v257 = vld [vmem:[%s2 + $0x68] sm:$0xff]
    %v258 = vld [vmem:[%s2 + $0x70] sm:$0xff]
    %v259 = vld [vmem:[%s2 + $0x78] sm:$0xff]
    %v260 = vld [vmem:[%s2 + $0x80] sm:$0xff]
    %v261 = vld [vmem:[%s2 + $0x88] sm:$0xff]
    %v262 = vld [vmem:[%s2 + $0x90] sm:$0xff]
    %v263 = vld [vmem:[%s2 + $0x98] sm:$0xff]
    %v264 = vld [vmem:[%s2 + $0xa0] sm:$0xff]
    %v265 = vld [vmem:[%s2 + $0xa8] sm:$0xff]
    %v266 = vld [vmem:[%s2 + $0xb0] sm:$0xff]
    %v267 = vld [vmem:[%s2 + $0xb8] sm:$0xff]
    %v268 = vld [vmem:[%s2 + $0xc0] sm:$0xff]
    %v269 = vld [vmem:[%s2 + $0xc8] sm:$0xff]
    %v270 = vld [vmem:[%s2 + $0xd0] sm:$0xff]
    %v271 = vld [vmem:[%s2 + $0xd8] sm:$0xff]
    %v272 = vld [vmem:[%s2 + $0xe0] sm:$0xff]
    %v273 = vld [vmem:[%s2 + $0xe8] sm:$0xff]
    %v274 = vld [vmem:[%s2 + $0xf0] sm:$0xff]
    %v275 = vld [vmem:[%s2 + $0xf8] sm:$0xff]
    %v308 = vunpack.c.l.b16 %v244
    %v309 = vunpack.c.h.b16 %v244
    %v310 = vunpack.c.l.b16 %v245
    %v311 = vunpack.c.h.b16 %v245
    %v312 = vunpack.c.l.b16 %v246
    %v313 = vunpack.c.h.b16 %v246
    %v314 = vunpack.c.l.b16 %v247
    %v315 = vunpack.c.h.b16 %v247
    %v316 = vunpack.c.l.b16 %v248
    %v317 = vunpack.c.h.b16 %v248
    %v318 = vunpack.c.l.b16 %v249
    %v319 = vunpack.c.h.b16 %v249
    %v320 = vunpack.c.l.b16 %v250
    %v321 = vunpack.c.h.b16 %v250
    %v322 = vunpack.c.l.b16 %v251
    %v323 = vunpack.c.h.b16 %v251
    %v324 = vunpack.c.l.b16 %v252
    %v325 = vunpack.c.h.b16 %v252
    %v326 = vunpack.c.l.b16 %v253
    %v327 = vunpack.c.h.b16 %v253
    %v328 = vunpack.c.l.b16 %v254
    %v329 = vunpack.c.h.b16 %v254
    %v330 = vunpack.c.l.b16 %v255
    %v331 = vunpack.c.h.b16 %v255
    %v332 = vunpack.c.l.b16 %v256
    %v333 = vunpack.c.h.b16 %v256
    %v334 = vunpack.c.l.b16 %v257
    %v335 = vunpack.c.h.b16 %v257
    %v336 = vunpack.c.l.b16 %v258
    %v337 = vunpack.c.h.b16 %v258
    %v338 = vunpack.c.l.b16 %v259
    %v339 = vunpack.c.h.b16 %v259
    %v340 = vunpack.c.l.b16 %v260
    %v341 = vunpack.c.h.b16 %v260
    %v342 = vunpack.c.l.b16 %v261
    %v343 = vunpack.c.h.b16 %v261
    %v344 = vunpack.c.l.b16 %v262
    %v345 = vunpack.c.h.b16 %v262
    %v346 = vunpack.c.l.b16 %v263
    %v347 = vunpack.c.h.b16 %v263
    %v348 = vunpack.c.l.b16 %v264
    %v349 = vunpack.c.h.b16 %v264
    %v350 = vunpack.c.l.b16 %v265
    %v351 = vunpack.c.h.b16 %v265
    %v352 = vunpack.c.l.b16 %v266
    %v353 = vunpack.c.h.b16 %v266
    %v354 = vunpack.c.l.b16 %v267
    %v355 = vunpack.c.h.b16 %v267
    %v356 = vunpack.c.l.b16 %v268
    %v357 = vunpack.c.h.b16 %v268
    %v358 = vunpack.c.l.b16 %v269
    %v359 = vunpack.c.h.b16 %v269
    %v360 = vunpack.c.l.b16 %v270
    %v361 = vunpack.c.h.b16 %v270
    %v362 = vunpack.c.l.b16 %v271
    %v363 = vunpack.c.h.b16 %v271
    %v364 = vunpack.c.l.b16 %v272
    %v365 = vunpack.c.h.b16 %v272
    %v366 = vunpack.c.l.b16 %v273
    %v367 = vunpack.c.h.b16 %v273
    %v368 = vunpack.c.l.b16 %v274
    %v369 = vunpack.c.h.b16 %v274
    %v370 = vunpack.c.l.b16 %v275
    %v371 = vunpack.c.h.b16 %v275
    %v372 = vpack.c.b16 %v310, %v308
    %v373 = vpack.c.b16 %v311, %v309
    %v374 = vpack.c.b16 %v314, %v312
    %v375 = vpack.c.b16 %v315, %v313
    %v376 = vpack.c.b16 %v318, %v316
    %v377 = vpack.c.b16 %v319, %v317
    %v378 = vpack.c.b16 %v322, %v320
    %v379 = vpack.c.b16 %v323, %v321
    %v380 = vpack.c.b16 %v326, %v324
    %v381 = vpack.c.b16 %v327, %v325
    %v382 = vpack.c.b16 %v330, %v328
    %v383 = vpack.c.b16 %v331, %v329
    %v384 = vpack.c.b16 %v334, %v332
    %v385 = vpack.c.b16 %v335, %v333
    %v386 = vpack.c.b16 %v338, %v336
    %v387 = vpack.c.b16 %v339, %v337
    %v388 = vpack.c.b16 %v342, %v340
    %v389 = vpack.c.b16 %v343, %v341
    %v390 = vpack.c.b16 %v346, %v344
    %v391 = vpack.c.b16 %v347, %v345
    %v392 = vpack.c.b16 %v350, %v348
    %v393 = vpack.c.b16 %v351, %v349
    %v394 = vpack.c.b16 %v354, %v352
    %v395 = vpack.c.b16 %v355, %v353
    %v396 = vpack.c.b16 %v358, %v356
    %v397 = vpack.c.b16 %v359, %v357
    %v398 = vpack.c.b16 %v362, %v360
    %v399 = vpack.c.b16 %v363, %v361
    %v400 = vpack.c.b16 %v366, %v364
    %v401 = vpack.c.b16 %v367, %v365
    %v402 = vpack.c.b16 %v370, %v368
    %v403 = vpack.c.b16 %v371, %v369
    %436 = vmatprep.subr.bf16.mxu0 %v387
    %437 = vmatpush1.bf16.msra.mxu0 %v386
    %438 = vmatprep.subr.bf16.mxu0 %v385
    %439 = vmatpush1.bf16.msra.mxu0 %v384
    %440 = vmatprep.subr.bf16.mxu0 %v383
    %441 = vmatpush1.bf16.msra.mxu0 %v382
    %442 = vmatprep.subr.bf16.mxu0 %v381
    %443 = vmatpush1.bf16.msra.mxu0 %v380
    %444 = vmatprep.subr.bf16.mxu0 %v379
    %445 = vmatpush1.bf16.msra.mxu0 %v378
    %446 = vmatprep.subr.bf16.mxu0 %v377
    %447 = vmatpush1.bf16.msra.mxu0 %v376
    %448 = vmatprep.subr.bf16.mxu0 %v375
    %449 = vmatpush1.bf16.msra.mxu0 %v374
    %450 = vmatprep.subr.bf16.mxu0 %v373
    %451 = vmatpush1.bf16.msra.mxu0 %v372
    %452 = vmatprep.subr.bf16.mxu0 %v403
    %453 = vmatpush2.bf16.msra.mxu0 %v402
    %454 = vmatprep.subr.bf16.mxu0 %v401
    %455 = vmatpush2.bf16.msra.mxu0 %v400
    %456 = vmatprep.subr.bf16.mxu0 %v399
    %457 = vmatpush2.bf16.msra.mxu0 %v398
    %458 = vmatprep.subr.bf16.mxu0 %v397
    %459 = vmatpush2.bf16.msra.mxu0 %v396
    %460 = vmatprep.subr.bf16.mxu0 %v395
    %461 = vmatpush2.bf16.msra.mxu0 %v394
    %462 = vmatprep.subr.bf16.mxu0 %v393
    %463 = vmatpush2.bf16.msra.mxu0 %v392
    %464 = vmatprep.subr.bf16.mxu0 %v391
    %465 = vmatpush2.bf16.msra.mxu0 %v390
    %466 = vmatprep.subr.bf16.mxu0 %v389
    %467 = vmatpush2.bf16.msra.mxu0 %v388
    %468 = vmatprep.mubr.bf16.mxu0 %v243
    %469 = vmatmul.mubr.bf16.gmra.mxu0 %v242
    %v470 = vpop.f32.mrf.mxu0
    %v471 = vadd.f32 0.0, %v470
    %v472 = vpop.f32.mrf.mxu0
    %v473 = vadd.f32 0.0, %v472
    %v474 = vpop.f32.mrf.mxu0
    %v475 = vpop.f32.mrf.mxu0
    %476 = vdwg.mxu0
    %s477 = scalar_lea.vmem %s6, 2
    %v478 = vld [vmem:[%s477] ss:$8 sm:$0x3]
    %s479 = scalar_lea.vmem %s6, 3
    %v480 = vld [vmem:[%s479] ss:$8 sm:$0x3]
    %v481 = vsel %vm170, %v471, 0.0
    %v482 = vrot.slane %v481, 4
    %v483 = vadd.f32 %v481, %v482
    %v484 = vrot.slane %v483, 2
    %v485 = vadd.f32 %v483, %v484
    %v486 = vrot.slane %v485, 1
    %v487 = vadd.f32 %v485, %v486
    %v488 = vsel %vm170, %v473, 0.0
    %v489 = vrot.slane %v488, 4
    %v490 = vadd.f32 %v488, %v489
    %v491 = vrot.slane %v490, 2
    %v492 = vadd.f32 %v490, %v491
    %v493 = vrot.slane %v492, 1
    %v494 = vadd.f32 %v492, %v493
    %v495 = vmul.f32 %v487, %v185
    %v496 = vmul.f32 %v494, %v185
    %v497 = vsub.f32 %v471, %v495
    %v498 = vsub.f32 %v473, %v496
    %v499 = vmul.f32 %v497, %v497
    %v500 = vmul.f32 %v498, %v498
    %v501 = vsel %vm170, %v499, 0.0
    %v502 = vrot.slane %v501, 4
    %v503 = vadd.f32 %v501, %v502
    %v504 = vrot.slane %v503, 2
    %v505 = vadd.f32 %v503, %v504
    %v506 = vrot.slane %v505, 1
    %v507 = vadd.f32 %v505, %v506
    %v508 = vsel %vm170, %v500, 0.0
    %v509 = vrot.slane %v508, 4
    %v510 = vadd.f32 %v508, %v509
    %v511 = vrot.slane %v510, 2
    %v512 = vadd.f32 %v510, %v511
    %v513 = vrot.slane %v512, 1
    %v514 = vadd.f32 %v512, %v513
    %v515 = vmul.f32 %v507, %v185
    %v516 = vmul.f32 %v514, %v185
    %v517 = vadd.f32 %v515, 1e-05
    %v518 = vadd.f32 %v516, 1e-05
    %v519 = vrsqrt.pop %v517
    %v520 = vrsqrt.pop %v518
    %v521 = vmul.f32 %v497, %v519
    %v522 = vmul.f32 %v498, %v520
    %v524 = vlaneseq
    %v525 = vshrl.u32 %v524, 7
    %v526 = vsub.s32 0, %v525
    %v527 = vrot.slane %v478, %v526
    %v528 = vlaneseq
    %v529 = vshrl.u32 %v528, 7
    %v530 = vsub.s32 1, %v529
    %v531 = vrot.slane %v478, %v530
    %v534 = vmul.f32 %v521, %v527
    %v535 = vmul.f32 %v522, %v531
    %v537 = vlaneseq
    %v538 = vshrl.u32 %v537, 7
    %v539 = vsub.s32 0, %v538
    %v540 = vrot.slane %v480, %v539
    %v541 = vlaneseq
    %v542 = vshrl.u32 %v541, 7
    %v543 = vsub.s32 1, %v542
    %v544 = vrot.slane %v480, %v543
    %v547 = vadd.f32 %v534, %v540
    %v548 = vadd.f32 %v535, %v544
    %v549 = vmax.f32 %v547, 0.0
    %v550 = vmax.f32 %v548, 0.0
    %v551 = vpack.c.bf16 %v549, %v549
    %v552 = vpack.c.bf16 %v550, %v550
    %v553 = vld [vmem:[%s3] sm:$0xf]
    %v554 = vld [vmem:[%s3 + $0x4] sm:$0xf]
    %v555 = vld [vmem:[%s3 + $0x8] sm:$0xf]
    %v556 = vld [vmem:[%s3 + $0xc] sm:$0xf]
    %v557 = vld [vmem:[%s3 + $0x10] sm:$0xf]
    %v558 = vld [vmem:[%s3 + $0x14] sm:$0xf]
    %v559 = vld [vmem:[%s3 + $0x18] sm:$0xf]
    %v560 = vld [vmem:[%s3 + $0x1c] sm:$0xf]
    %v561 = vld [vmem:[%s3 + $0x20] sm:$0xf]
    %v562 = vld [vmem:[%s3 + $0x24] sm:$0xf]
    %v563 = vld [vmem:[%s3 + $0x28] sm:$0xf]
    %v564 = vld [vmem:[%s3 + $0x2c] sm:$0xf]
    %v565 = vld [vmem:[%s3 + $0x30] sm:$0xf]
    %v566 = vld [vmem:[%s3 + $0x34] sm:$0xf]
    %v567 = vld [vmem:[%s3 + $0x38] sm:$0xf]
    %v568 = vld [vmem:[%s3 + $0x3c] sm:$0xf]
    %v569 = vld [vmem:[%s3 + $0x40] sm:$0xf]
    %v570 = vld [vmem:[%s3 + $0x44] sm:$0xf]
    %v571 = vld [vmem:[%s3 + $0x48] sm:$0xf]
    %v572 = vld [vmem:[%s3 + $0x4c] sm:$0xf]
    %v573 = vld [vmem:[%s3 + $0x50] sm:$0xf]
    %v574 = vld [vmem:[%s3 + $0x54] sm:$0xf]
    %v575 = vld [vmem:[%s3 + $0x58] sm:$0xf]
    %v576 = vld [vmem:[%s3 + $0x5c] sm:$0xf]
    %v577 = vld [vmem:[%s3 + $0x60] sm:$0xf]
    %v578 = vld [vmem:[%s3 + $0x64] sm:$0xf]
    %v579 = vld [vmem:[%s3 + $0x68] sm:$0xf]
    %v580 = vld [vmem:[%s3 + $0x6c] sm:$0xf]
    %v581 = vld [vmem:[%s3 + $0x70] sm:$0xf]
    %v582 = vld [vmem:[%s3 + $0x74] sm:$0xf]
    %v583 = vld [vmem:[%s3 + $0x78] sm:$0xf]
    %v584 = vld [vmem:[%s3 + $0x7c] sm:$0xf]
    %v617 = vunpack.c.l.b16 %v553
    %v618 = vunpack.c.l.b16 %v554
    %v619 = vunpack.c.l.b16 %v555
    %v620 = vunpack.c.l.b16 %v556
    %v621 = vunpack.c.l.b16 %v557
    %v622 = vunpack.c.l.b16 %v558
    %v623 = vunpack.c.l.b16 %v559
    %v624 = vunpack.c.l.b16 %v560
    %v625 = vunpack.c.l.b16 %v561
    %v626 = vunpack.c.l.b16 %v562
    %v627 = vunpack.c.l.b16 %v563
    %v628 = vunpack.c.l.b16 %v564
    %v629 = vunpack.c.l.b16 %v565
    %v630 = vunpack.c.l.b16 %v566
    %v631 = vunpack.c.l.b16 %v567
    %v632 = vunpack.c.l.b16 %v568
    %v633 = vunpack.c.l.b16 %v569
    %v634 = vunpack.c.l.b16 %v570
    %v635 = vunpack.c.l.b16 %v571
    %v636 = vunpack.c.l.b16 %v572
    %v637 = vunpack.c.l.b16 %v573
    %v638 = vunpack.c.l.b16 %v574
    %v639 = vunpack.c.l.b16 %v575
    %v640 = vunpack.c.l.b16 %v576
    %v641 = vunpack.c.l.b16 %v577
    %v642 = vunpack.c.l.b16 %v578
    %v643 = vunpack.c.l.b16 %v579
    %v644 = vunpack.c.l.b16 %v580
    %v645 = vunpack.c.l.b16 %v581
    %v646 = vunpack.c.l.b16 %v582
    %v647 = vunpack.c.l.b16 %v583
    %v648 = vunpack.c.l.b16 %v584
    %v649 = vpack.c.b16 %v618, %v617
    %v650 = vpack.c.b16 %v620, %v619
    %v651 = vpack.c.b16 %v622, %v621
    %v652 = vpack.c.b16 %v624, %v623
    %v653 = vpack.c.b16 %v626, %v625
    %v654 = vpack.c.b16 %v628, %v627
    %v655 = vpack.c.b16 %v630, %v629
    %v656 = vpack.c.b16 %v632, %v631
    %v657 = vpack.c.b16 %v634, %v633
    %v658 = vpack.c.b16 %v636, %v635
    %v659 = vpack.c.b16 %v638, %v637
    %v660 = vpack.c.b16 %v640, %v639
    %v661 = vpack.c.b16 %v642, %v641
    %v662 = vpack.c.b16 %v644, %v643
    %v663 = vpack.c.b16 %v646, %v645
    %v664 = vpack.c.b16 %v648, %v647
    %681 = vmatprep.subr.bf16.mxu0 0
    %682 = vmatpush1.bf16.msra.mxu0 %v656
    %683 = vmatprep.subr.bf16.mxu0 0
    %684 = vmatpush1.bf16.msra.mxu0 %v655
    %685 = vmatprep.subr.bf16.mxu0 0
    %686 = vmatpush1.bf16.msra.mxu0 %v654
    %687 = vmatprep.subr.bf16.mxu0 0
    %688 = vmatpush1.bf16.msra.mxu0 %v653
    %689 = vmatprep.subr.bf16.mxu0 0
    %690 = vmatpush1.bf16.msra.mxu0 %v652
    %691 = vmatprep.subr.bf16.mxu0 0
    %692 = vmatpush1.bf16.msra.mxu0 %v651
    %693 = vmatprep.subr.bf16.mxu0 0
    %694 = vmatpush1.bf16.msra.mxu0 %v650
    %695 = vmatprep.subr.bf16.mxu0 0
    %696 = vmatpush1.bf16.msra.mxu0 %v649
    %697 = vmatprep.subr.bf16.mxu0 0
    %698 = vmatpush2.bf16.msra.mxu0 %v664
    %699 = vmatprep.subr.bf16.mxu0 0
    %700 = vmatpush2.bf16.msra.mxu0 %v663
    %701 = vmatprep.subr.bf16.mxu0 0
    %702 = vmatpush2.bf16.msra.mxu0 %v662
    %703 = vmatprep.subr.bf16.mxu0 0
    %704 = vmatpush2.bf16.msra.mxu0 %v661
    %705 = vmatprep.subr.bf16.mxu0 0
    %706 = vmatpush2.bf16.msra.mxu0 %v660
    %707 = vmatprep.subr.bf16.mxu0 0
    %708 = vmatpush2.bf16.msra.mxu0 %v659
    %709 = vmatprep.subr.bf16.mxu0 0
    %710 = vmatpush2.bf16.msra.mxu0 %v658
    %711 = vmatprep.subr.bf16.mxu0 0
    %712 = vmatpush2.bf16.msra.mxu0 %v657
    %713 = vmatprep.mubr.bf16.mxu0 %v552
    %714 = vmatmul.mubr.bf16.gmra.mxu0 %v551
    %v715 = vpop.f32.mrf.mxu0
    %v716 = vadd.f32 0.0, %v715
    %v717 = vpop.f32.mrf.mxu0
    %v718 = vpop.f32.mrf.mxu0
    %v719 = vpop.f32.mrf.mxu0
    %720 = vdwg.mxu0
    %v721 = vsel %vm170, %v716, 0.0
    %v722 = vrot.slane %v721, 4
    %v723 = vadd.f32 %v721, %v722
    %v724 = vrot.slane %v723, 2
    %v725 = vadd.f32 %v723, %v724
    %v726 = vrot.slane %v725, 1
    %v727 = vadd.f32 %v725, %v726
    %v728 = vmul.f32 %v727, %v185
    %v729 = vsub.f32 %v716, %v728
    %v730 = vmul.f32 %v729, %v729
    %v731 = vsel %vm170, %v730, 0.0
    %v732 = vrot.slane %v731, 4
    %v733 = vadd.f32 %v731, %v732
    %v734 = vrot.slane %v733, 2
    %v735 = vadd.f32 %v733, %v734
    %v736 = vrot.slane %v735, 1
    %v737 = vadd.f32 %v735, %v736
    %v738 = vmul.f32 %v737, %v185
    %v739 = vadd.f32 %v738, 1e-05
    %v740 = vrsqrt.pop %v739
    %v741 = vmul.f32 %v729, %v740
    %v742 = vpack.c.bf16 %v741, %v741
    %v743 = vld [vmem:[%s4] sm:$0xff]
    %v744 = vld [vmem:[%s4 + $0x8] sm:$0xff]
    %v745 = vld [vmem:[%s4 + $0x10] sm:$0xff]
    %v746 = vld [vmem:[%s4 + $0x18] sm:$0xff]
    %v747 = vld [vmem:[%s4 + $0x20] sm:$0xff]
    %v748 = vld [vmem:[%s4 + $0x28] sm:$0xff]
    %v749 = vld [vmem:[%s4 + $0x30] sm:$0xff]
    %v750 = vld [vmem:[%s4 + $0x38] sm:$0xff]
    %v751 = vld [vmem:[%s4 + $0x40] sm:$0xff]
    %v752 = vld [vmem:[%s4 + $0x48] sm:$0xff]
    %v753 = vld [vmem:[%s4 + $0x50] sm:$0xff]
    %v754 = vld [vmem:[%s4 + $0x58] sm:$0xff]
    %v755 = vld [vmem:[%s4 + $0x60] sm:$0xff]
    %v756 = vld [vmem:[%s4 + $0x68] sm:$0xff]
    %v757 = vld [vmem:[%s4 + $0x70] sm:$0xff]
    %v758 = vld [vmem:[%s4 + $0x78] sm:$0xff]
    %v775 = vunpack.c.l.b16 %v743
    %v776 = vunpack.c.h.b16 %v743
    %v777 = vunpack.c.l.b16 %v744
    %v778 = vunpack.c.h.b16 %v744
    %v779 = vunpack.c.l.b16 %v745
    %v780 = vunpack.c.h.b16 %v745
    %v781 = vunpack.c.l.b16 %v746
    %v782 = vunpack.c.h.b16 %v746
    %v783 = vunpack.c.l.b16 %v747
    %v784 = vunpack.c.h.b16 %v747
    %v785 = vunpack.c.l.b16 %v748
    %v786 = vunpack.c.h.b16 %v748
    %v787 = vunpack.c.l.b16 %v749
    %v788 = vunpack.c.h.b16 %v749
    %v789 = vunpack.c.l.b16 %v750
    %v790 = vunpack.c.h.b16 %v750
    %v791 = vunpack.c.l.b16 %v751
    %v792 = vunpack.c.h.b16 %v751
    %v793 = vunpack.c.l.b16 %v752
    %v794 = vunpack.c.h.b16 %v752
    %v795 = vunpack.c.l.b16 %v753
    %v796 = vunpack.c.h.b16 %v753
    %v797 = vunpack.c.l.b16 %v754
    %v798 = vunpack.c.h.b16 %v754
    %v799 = vunpack.c.l.b16 %v755
    %v800 = vunpack.c.h.b16 %v755
    %v801 = vunpack.c.l.b16 %v756
    %v802 = vunpack.c.h.b16 %v756
    %v803 = vunpack.c.l.b16 %v757
    %v804 = vunpack.c.h.b16 %v757
    %v805 = vunpack.c.l.b16 %v758
    %v806 = vunpack.c.h.b16 %v758
    %v807 = vpack.c.b16 %v777, %v775
    %v808 = vpack.c.b16 %v778, %v776
    %v809 = vpack.c.b16 %v781, %v779
    %v810 = vpack.c.b16 %v782, %v780
    %v811 = vpack.c.b16 %v785, %v783
    %v812 = vpack.c.b16 %v786, %v784
    %v813 = vpack.c.b16 %v789, %v787
    %v814 = vpack.c.b16 %v790, %v788
    %v815 = vpack.c.b16 %v793, %v791
    %v816 = vpack.c.b16 %v794, %v792
    %v817 = vpack.c.b16 %v797, %v795
    %v818 = vpack.c.b16 %v798, %v796
    %v819 = vpack.c.b16 %v801, %v799
    %v820 = vpack.c.b16 %v802, %v800
    %v821 = vpack.c.b16 %v805, %v803
    %v822 = vpack.c.b16 %v806, %v804
    %839 = vmatprep.subr.bf16.mxu0 %v822
    %840 = vmatpush1.bf16.msra.mxu0 %v821
    %841 = vmatprep.subr.bf16.mxu0 %v820
    %842 = vmatpush1.bf16.msra.mxu0 %v819
    %843 = vmatprep.subr.bf16.mxu0 %v818
    %844 = vmatpush1.bf16.msra.mxu0 %v817
    %845 = vmatprep.subr.bf16.mxu0 %v816
    %846 = vmatpush1.bf16.msra.mxu0 %v815
    %847 = vmatprep.subr.bf16.mxu0 %v814
    %848 = vmatpush1.bf16.msra.mxu0 %v813
    %849 = vmatprep.subr.bf16.mxu0 %v812
    %850 = vmatpush1.bf16.msra.mxu0 %v811
    %851 = vmatprep.subr.bf16.mxu0 %v810
    %852 = vmatpush1.bf16.msra.mxu0 %v809
    %853 = vmatprep.subr.bf16.mxu0 %v808
    %854 = vmatpush1.bf16.msra.mxu0 %v807
    %855 = vmatprep.subr.bf16.mxu0 0
    %856 = vmatpush2.bf16.msra.mxu0 0
    %857 = vmatprep.subr.bf16.mxu0 0
    %858 = vmatpush2.bf16.msra.mxu0 0
    %859 = vmatprep.subr.bf16.mxu0 0
    %860 = vmatpush2.bf16.msra.mxu0 0
    %861 = vmatprep.subr.bf16.mxu0 0
    %862 = vmatpush2.bf16.msra.mxu0 0
    %863 = vmatprep.subr.bf16.mxu0 0
    %864 = vmatpush2.bf16.msra.mxu0 0
    %865 = vmatprep.subr.bf16.mxu0 0
    %866 = vmatpush2.bf16.msra.mxu0 0
    %867 = vmatprep.subr.bf16.mxu0 0
    %868 = vmatpush2.bf16.msra.mxu0 0
    %869 = vmatprep.subr.bf16.mxu0 0
    %870 = vmatpush2.bf16.msra.mxu0 0
    %871 = vmatprep.mubr.bf16.mxu0 0
    %872 = vmatmul.mubr.bf16.gmra.mxu0 %v742
    %v873 = vpop.f32.mrf.mxu0
    %v874 = vadd.f32 0.0, %v873
    %v875 = vpop.f32.mrf.mxu0
    %v876 = vadd.f32 0.0, %v875
    %v877 = vpop.f32.mrf.mxu0
    %v878 = vpop.f32.mrf.mxu0
    %879 = vdwg.mxu0
    %s880 = scalar_lea.vmem %s6, 4
    %v881 = vld [vmem:[%s880] ss:$8 sm:$0x3]
    %s882 = scalar_lea.vmem %s6, 5
    %v883 = vld [vmem:[%s882] ss:$8 sm:$0x3]
    %v884 = vsel %vm170, %v874, 0.0
    %v885 = vrot.slane %v884, 4
    %v886 = vadd.f32 %v884, %v885
    %v887 = vrot.slane %v886, 2
    %v888 = vadd.f32 %v886, %v887
    %v889 = vrot.slane %v888, 1
    %v890 = vadd.f32 %v888, %v889
    %v891 = vsel %vm170, %v876, 0.0
    %v892 = vrot.slane %v891, 4
    %v893 = vadd.f32 %v891, %v892
    %v894 = vrot.slane %v893, 2
    %v895 = vadd.f32 %v893, %v894
    %v896 = vrot.slane %v895, 1
    %v897 = vadd.f32 %v895, %v896
    %v898 = vmul.f32 %v890, %v185
    %v899 = vmul.f32 %v897, %v185
    %v900 = vsub.f32 %v874, %v898
    %v901 = vsub.f32 %v876, %v899
    %v902 = vmul.f32 %v900, %v900
    %v903 = vmul.f32 %v901, %v901
    %v904 = vsel %vm170, %v902, 0.0
    %v905 = vrot.slane %v904, 4
    %v906 = vadd.f32 %v904, %v905
    %v907 = vrot.slane %v906, 2
    %v908 = vadd.f32 %v906, %v907
    %v909 = vrot.slane %v908, 1
    %v910 = vadd.f32 %v908, %v909
    %v911 = vsel %vm170, %v903, 0.0
    %v912 = vrot.slane %v911, 4
    %v913 = vadd.f32 %v911, %v912
    %v914 = vrot.slane %v913, 2
    %v915 = vadd.f32 %v913, %v914
    %v916 = vrot.slane %v915, 1
    %v917 = vadd.f32 %v915, %v916
    %v918 = vmul.f32 %v910, %v185
    %v919 = vmul.f32 %v917, %v185
    %v920 = vadd.f32 %v918, 1e-05
    %v921 = vadd.f32 %v919, 1e-05
    %v922 = vrsqrt.pop %v920
    %v923 = vrsqrt.pop %v921
    %v924 = vmul.f32 %v900, %v922
    %v925 = vmul.f32 %v901, %v923
    %v927 = vlaneseq
    %v928 = vshrl.u32 %v927, 7
    %v929 = vsub.s32 0, %v928
    %v930 = vrot.slane %v881, %v929
    %v931 = vlaneseq
    %v932 = vshrl.u32 %v931, 7
    %v933 = vsub.s32 1, %v932
    %v934 = vrot.slane %v881, %v933
    %v937 = vmul.f32 %v924, %v930
    %v938 = vmul.f32 %v925, %v934
    %v940 = vlaneseq
    %v941 = vshrl.u32 %v940, 7
    %v942 = vsub.s32 0, %v941
    %v943 = vrot.slane %v883, %v942
    %v944 = vlaneseq
    %v945 = vshrl.u32 %v944, 7
    %v946 = vsub.s32 1, %v945
    %v947 = vrot.slane %v883, %v946
    %v950 = vadd.f32 %v937, %v943
    %v951 = vadd.f32 %v938, %v947
    %v952 = vmax.f32 %v950, 0.0
    %v953 = vmax.f32 %v951, 0.0
    %v954 = vpack.c.bf16 %v952, %v952
    %v955 = vpack.c.bf16 %v953, %v953
    %v956 = vld [vmem:[%s5] sm:$0xf]
    %v957 = vld [vmem:[%s5 + $0x4] sm:$0xf]
    %v958 = vld [vmem:[%s5 + $0x8] sm:$0xf]
    %v959 = vld [vmem:[%s5 + $0xc] sm:$0xf]
    %v960 = vld [vmem:[%s5 + $0x10] sm:$0xf]
    %v961 = vld [vmem:[%s5 + $0x14] sm:$0xf]
    %v962 = vld [vmem:[%s5 + $0x18] sm:$0xf]
    %v963 = vld [vmem:[%s5 + $0x1c] sm:$0xf]
    %v964 = vld [vmem:[%s5 + $0x20] sm:$0xf]
    %v965 = vld [vmem:[%s5 + $0x24] sm:$0xf]
    %v966 = vld [vmem:[%s5 + $0x28] sm:$0xf]
    %v967 = vld [vmem:[%s5 + $0x2c] sm:$0xf]
    %v968 = vld [vmem:[%s5 + $0x30] sm:$0xf]
    %v969 = vld [vmem:[%s5 + $0x34] sm:$0xf]
    %v970 = vld [vmem:[%s5 + $0x38] sm:$0xf]
    %v971 = vld [vmem:[%s5 + $0x3c] sm:$0xf]
    %v972 = vld [vmem:[%s5 + $0x40] sm:$0xf]
    %v973 = vld [vmem:[%s5 + $0x44] sm:$0xf]
    %v974 = vld [vmem:[%s5 + $0x48] sm:$0xf]
    %v975 = vld [vmem:[%s5 + $0x4c] sm:$0xf]
    %v976 = vld [vmem:[%s5 + $0x50] sm:$0xf]
    %v977 = vld [vmem:[%s5 + $0x54] sm:$0xf]
    %v978 = vld [vmem:[%s5 + $0x58] sm:$0xf]
    %v979 = vld [vmem:[%s5 + $0x5c] sm:$0xf]
    %v980 = vld [vmem:[%s5 + $0x60] sm:$0xf]
    %v981 = vld [vmem:[%s5 + $0x64] sm:$0xf]
    %v982 = vld [vmem:[%s5 + $0x68] sm:$0xf]
    %v983 = vld [vmem:[%s5 + $0x6c] sm:$0xf]
    %v984 = vld [vmem:[%s5 + $0x70] sm:$0xf]
    %v985 = vld [vmem:[%s5 + $0x74] sm:$0xf]
    %v986 = vld [vmem:[%s5 + $0x78] sm:$0xf]
    %v987 = vld [vmem:[%s5 + $0x7c] sm:$0xf]
    %v988 = vld [vmem:[%s6 + $0x6] ss:$0 sm:$0xff]
    %v1021 = vunpack.c.l.b16 %v956
    %v1022 = vunpack.c.l.b16 %v957
    %v1023 = vunpack.c.l.b16 %v958
    %v1024 = vunpack.c.l.b16 %v959
    %v1025 = vunpack.c.l.b16 %v960
    %v1026 = vunpack.c.l.b16 %v961
    %v1027 = vunpack.c.l.b16 %v962
    %v1028 = vunpack.c.l.b16 %v963
    %v1029 = vunpack.c.l.b16 %v964
    %v1030 = vunpack.c.l.b16 %v965
    %v1031 = vunpack.c.l.b16 %v966
    %v1032 = vunpack.c.l.b16 %v967
    %v1033 = vunpack.c.l.b16 %v968
    %v1034 = vunpack.c.l.b16 %v969
    %v1035 = vunpack.c.l.b16 %v970
    %v1036 = vunpack.c.l.b16 %v971
    %v1037 = vunpack.c.l.b16 %v972
    %v1038 = vunpack.c.l.b16 %v973
    %v1039 = vunpack.c.l.b16 %v974
    %v1040 = vunpack.c.l.b16 %v975
    %v1041 = vunpack.c.l.b16 %v976
    %v1042 = vunpack.c.l.b16 %v977
    %v1043 = vunpack.c.l.b16 %v978
    %v1044 = vunpack.c.l.b16 %v979
    %v1045 = vunpack.c.l.b16 %v980
    %v1046 = vunpack.c.l.b16 %v981
    %v1047 = vunpack.c.l.b16 %v982
    %v1048 = vunpack.c.l.b16 %v983
    %v1049 = vunpack.c.l.b16 %v984
    %v1050 = vunpack.c.l.b16 %v985
    %v1051 = vunpack.c.l.b16 %v986
    %v1052 = vunpack.c.l.b16 %v987
    %v1053 = vpack.c.b16 %v1022, %v1021
    %v1054 = vpack.c.b16 %v1024, %v1023
    %v1055 = vpack.c.b16 %v1026, %v1025
    %v1056 = vpack.c.b16 %v1028, %v1027
    %v1057 = vpack.c.b16 %v1030, %v1029
    %v1058 = vpack.c.b16 %v1032, %v1031
    %v1059 = vpack.c.b16 %v1034, %v1033
    %v1060 = vpack.c.b16 %v1036, %v1035
    %v1061 = vpack.c.b16 %v1038, %v1037
    %v1062 = vpack.c.b16 %v1040, %v1039
    %v1063 = vpack.c.b16 %v1042, %v1041
    %v1064 = vpack.c.b16 %v1044, %v1043
    %v1065 = vpack.c.b16 %v1046, %v1045
    %v1066 = vpack.c.b16 %v1048, %v1047
    %v1067 = vpack.c.b16 %v1050, %v1049
    %v1068 = vpack.c.b16 %v1052, %v1051
    %1085 = vmatprep.subr.bf16.mxu0 0
    %1086 = vmatpush1.bf16.msra.mxu0 %v1060
    %1087 = vmatprep.subr.bf16.mxu0 0
    %1088 = vmatpush1.bf16.msra.mxu0 %v1059
    %1089 = vmatprep.subr.bf16.mxu0 0
    %1090 = vmatpush1.bf16.msra.mxu0 %v1058
    %1091 = vmatprep.subr.bf16.mxu0 0
    %1092 = vmatpush1.bf16.msra.mxu0 %v1057
    %1093 = vmatprep.subr.bf16.mxu0 0
    %1094 = vmatpush1.bf16.msra.mxu0 %v1056
    %1095 = vmatprep.subr.bf16.mxu0 0
    %1096 = vmatpush1.bf16.msra.mxu0 %v1055
    %1097 = vmatprep.subr.bf16.mxu0 0
    %1098 = vmatpush1.bf16.msra.mxu0 %v1054
    %1099 = vmatprep.subr.bf16.mxu0 0
    %1100 = vmatpush1.bf16.msra.mxu0 %v1053
    %1101 = vmatprep.subr.bf16.mxu0 0
    %1102 = vmatpush2.bf16.msra.mxu0 %v1068
    %1103 = vmatprep.subr.bf16.mxu0 0
    %1104 = vmatpush2.bf16.msra.mxu0 %v1067
    %1105 = vmatprep.subr.bf16.mxu0 0
    %1106 = vmatpush2.bf16.msra.mxu0 %v1066
    %1107 = vmatprep.subr.bf16.mxu0 0
    %1108 = vmatpush2.bf16.msra.mxu0 %v1065
    %1109 = vmatprep.subr.bf16.mxu0 0
    %1110 = vmatpush2.bf16.msra.mxu0 %v1064
    %1111 = vmatprep.subr.bf16.mxu0 0
    %1112 = vmatpush2.bf16.msra.mxu0 %v1063
    %1113 = vmatprep.subr.bf16.mxu0 0
    %1114 = vmatpush2.bf16.msra.mxu0 %v1062
    %1115 = vmatprep.subr.bf16.mxu0 0
    %1116 = vmatpush2.bf16.msra.mxu0 %v1061
    %1117 = vmatprep.mubr.bf16.mxu0 %v955
    %1118 = vmatmul.mubr.bf16.gmra.mxu0 %v954
    %v1119 = vpop.f32.mrf.mxu0
    %v1120 = vadd.f32 %v988, %v1119
    %v1121 = vpop.f32.mrf.mxu0
    %v1122 = vpop.f32.mrf.mxu0
    %v1123 = vpop.f32.mrf.mxu0
    %1124 = vdwg.mxu0
    %1125 = vst [vmem:[#allocation2] sm:$0x3] %v1120
    // Predicated region
    $region30: #{mocov3_forward.3} parent=1 // pred_check
      _
    $region31: #{mocov3_forward.3} parent=1 // pred_check_branch
      %1127 = sbr.rel (0) target = $region33
    $region32: #{mocov3_forward.3} parent=1 // pred_region
      %s1129 = ssub.s32 32, 32
      %1130 = vsyncadd [#allocation3], %s1129
      %s1132 = sshll.u32 [#allocation2], 4
      %s1133 = int_to_ptr.vmem [resolvable:$true] %s1132
      %1135 = dma.vmem_to_hbm [thread:$0]  %s1133, 32, %s7, [#allocation3]
    $region33: #{mocov3_forward.3} parent=1 // pred_fallthru
      _
    // Predicated region
    $region34: #{mocov3_forward.3} parent=1 // pred_check
      _
    $region35: #{mocov3_forward.3} parent=1 // pred_check_branch
      %1137 = sbr.rel (0) target = $region37
    $region36: #{mocov3_forward.3} parent=1 // pred_region
      %1138 = dma.done [#allocation3], 32
    $region37: #{mocov3_forward.3} parent=1 // pred_fallthru
      _
    %1139 = vsyncpa [#allocation3], 1

// kernel: mocov3_forward.2
$region0: #{mocov3_forward.2}
  #allocation0 [shape = 'u32[]', space=smem, size = 0x4, offset = 0x4, fixed_abs, tag = 'smem constant byte address 0x4 - core index']
  #allocation1 [shape = 'u32[144,128]{1,0:T(1,128)}', space=vmem, size = 0x12000, scoped, tag = 'internal scratch']
  %s0 = inlined_call_operand.vmem [shape: bf16[2,18,18,4], index: 0, kind: input, shape index: {}]
  %s1 = inlined_call_operand.vmem [shape: bf16[36,128], index: 1, kind: input, shape index: {}]
  %s2 = inlined_call_operand.vmem [shape: f32[1,128], index: 2, kind: input, shape index: {}]
  %s3 = inlined_call_operand.vmem [shape: f32[2,128], index: 3, kind: output, shape index: {}]
  %s4 = sld [smem:[#allocation0]]
  $region22: #{mocov3_forward.2} parent=0
    _
  %s6 = ssub.s32 1, %s4
  %s7 = scalar_select 0, %s6, %s4
  // Predicated region
  $region2: #{mocov3_forward.2} parent=0 // pred_check
    _
  $region3: #{mocov3_forward.2} parent=0 // pred_check_branch
    %9 = sbr.rel (0) target = $region5
  $region4: #{mocov3_forward.2} parent=0 // pred_region
    _
  $region5: #{mocov3_forward.2} parent=0 // pred_fallthru
    _
  // Predicated region
  $region6: #{mocov3_forward.2} parent=0 // pred_check
    _
  $region7: #{mocov3_forward.2} parent=0 // pred_check_branch
    %11 = sbr.rel (0) target = $region9
  $region8: #{mocov3_forward.2} parent=0 // pred_region
    _
  $region9: #{mocov3_forward.2} parent=0 // pred_fallthru
    _
  // Predicated region
  $region10: #{mocov3_forward.2} parent=0 // pred_check
    _
  $region11: #{mocov3_forward.2} parent=0 // pred_check_branch
    %13 = sbr.rel (0) target = $region13
  $region12: #{mocov3_forward.2} parent=0 // pred_region
    _
  $region13: #{mocov3_forward.2} parent=0 // pred_fallthru
    _
  %v15 = vld [vmem:[%s2] sm:$0x1]
  %v16 = vld [vmem:[%s1] sm:$0x3]
  %v17 = vld [vmem:[%s1] sm:$0xc]
  %v18 = vld [vmem:[%s1 + $0x4] sm:$0x3]
  %v19 = vld [vmem:[%s1 + $0x4] sm:$0xc]
  %v20 = vld [vmem:[%s1 + $0x8] sm:$0x3]
  %v21 = vld [vmem:[%s1 + $0x8] sm:$0xc]
  %v22 = vld [vmem:[%s1 + $0xc] sm:$0x3]
  %v23 = vld [vmem:[%s1 + $0xc] sm:$0xc]
  %v24 = vld [vmem:[%s1 + $0x10] sm:$0x3]
  %v25 = vld [vmem:[%s0] sm:$0xf]
  %v26 = vld [vmem:[%s0 + $0x4] sm:$0xf]
  %v27 = vld [vmem:[%s0 + $0x8] sm:$0x1]
  %v28 = vld [vmem:[%s0 + $0xc] sm:$0xf]
  %v29 = vld [vmem:[%s0 + $0x10] sm:$0xf]
  %v30 = vld [vmem:[%s0 + $0x14] sm:$0x1]
  %v31 = vld [vmem:[%s0 + $0x18] sm:$0xf]
  %v32 = vld [vmem:[%s0 + $0x1c] sm:$0xf]
  %v33 = vld [vmem:[%s0 + $0x20] sm:$0x1]
  %v34 = vld [vmem:[%s0 + $0x24] sm:$0xf]
  %v35 = vld [vmem:[%s0 + $0x28] sm:$0xf]
  %v36 = vld [vmem:[%s0 + $0x2c] sm:$0x1]
  %v37 = vld [vmem:[%s0 + $0x30] sm:$0xf]
  %v38 = vld [vmem:[%s0 + $0x34] sm:$0xf]
  %v39 = vld [vmem:[%s0 + $0x38] sm:$0x1]
  %v40 = vld [vmem:[%s0 + $0x3c] sm:$0xf]
  %v41 = vld [vmem:[%s0 + $0x40] sm:$0xf]
  %v42 = vld [vmem:[%s0 + $0x44] sm:$0x1]
  %v43 = vld [vmem:[%s0 + $0x48] sm:$0xf]
  %v44 = vld [vmem:[%s0 + $0x4c] sm:$0xf]
  %v45 = vld [vmem:[%s0 + $0x50] sm:$0x1]
  %v46 = vld [vmem:[%s0 + $0x54] sm:$0xf]
  %v47 = vld [vmem:[%s0 + $0x58] sm:$0xf]
  %v48 = vld [vmem:[%s0 + $0x5c] sm:$0x1]
  %v49 = vld [vmem:[%s0 + $0x60] sm:$0xf]
  %v50 = vld [vmem:[%s0 + $0x64] sm:$0xf]
  %v51 = vld [vmem:[%s0 + $0x68] sm:$0x1]
  %v52 = vld [vmem:[%s0 + $0x6c] sm:$0xf]
  %v53 = vld [vmem:[%s0 + $0x70] sm:$0xf]
  %v54 = vld [vmem:[%s0 + $0x74] sm:$0x1]
  %v55 = vld [vmem:[%s0 + $0x78] sm:$0xf]
  %v56 = vld [vmem:[%s0 + $0x7c] sm:$0xf]
  %v57 = vld [vmem:[%s0 + $0x80] sm:$0x1]
  %v58 = vld [vmem:[%s0 + $0x84] sm:$0xf]
  %v59 = vld [vmem:[%s0 + $0x88] sm:$0xf]
  %v60 = vld [vmem:[%s0 + $0x8c] sm:$0x1]
  %v61 = vld [vmem:[%s0 + $0x90] sm:$0xf]
  %v62 = vld [vmem:[%s0 + $0x94] sm:$0xf]
  %v63 = vld [vmem:[%s0 + $0x98] sm:$0x1]
  %v64 = vld [vmem:[%s0 + $0x9c] sm:$0xf]
  %v65 = vld [vmem:[%s0 + $0xa0] sm:$0xf]
  %v66 = vld [vmem:[%s0 + $0xa4] sm:$0x1]
  %v67 = vld [vmem:[%s0 + $0xa8] sm:$0xf]
  %v68 = vld [vmem:[%s0 + $0xac] sm:$0xf]
  %v69 = vld [vmem:[%s0 + $0xb0] sm:$0x1]
  %v70 = vld [vmem:[%s0 + $0xb4] sm:$0xf]
  %v71 = vld [vmem:[%s0 + $0xb8] sm:$0xf]
  %v72 = vld [vmem:[%s0 + $0xbc] sm:$0x1]
  %v73 = vld [vmem:[%s0 + $0xc0] sm:$0xf]
  %v74 = vld [vmem:[%s0 + $0xc4] sm:$0xf]
  %v75 = vld [vmem:[%s0 + $0xc8] sm:$0x1]
  %v76 = vld [vmem:[%s0 + $0xcc] sm:$0xf]
  %v77 = vld [vmem:[%s0 + $0xd0] sm:$0xf]
  %v78 = vld [vmem:[%s0 + $0xd4] sm:$0x1]
  %v79 = vld [vmem:[%s0 + $0xd8] sm:$0xf]
  %v80 = vld [vmem:[%s0 + $0xdc] sm:$0xf]
  %v81 = vld [vmem:[%s0 + $0xe0] sm:$0x1]
  %v82 = vld [vmem:[%s0 + $0xe4] sm:$0xf]
  %v83 = vld [vmem:[%s0 + $0xe8] sm:$0xf]
  %v84 = vld [vmem:[%s0 + $0xec] sm:$0x1]
  %v85 = vld [vmem:[%s0 + $0xf0] sm:$0xf]
  %v86 = vld [vmem:[%s0 + $0xf4] sm:$0xf]
  %v87 = vld [vmem:[%s0 + $0xf8] sm:$0x1]
  %v88 = vld [vmem:[%s0 + $0xfc] sm:$0xf]
  %v89 = vld [vmem:[%s0 + $0x100] sm:$0xf]
  %v90 = vld [vmem:[%s0 + $0x104] sm:$0x1]
  %v91 = vld [vmem:[%s0 + $0x108] sm:$0xf]
  %v92 = vld [vmem:[%s0 + $0x10c] sm:$0xf]
  %v93 = vld [vmem:[%s0 + $0x110] sm:$0x1]
  %v94 = vld [vmem:[%s0 + $0x114] sm:$0xf]
  %v95 = vld [vmem:[%s0 + $0x118] sm:$0xf]
  %v96 = vld [vmem:[%s0 + $0x11c] sm:$0x1]
  %v97 = vld [vmem:[%s0 + $0x120] sm:$0xf]
  %v98 = vld [vmem:[%s0 + $0x124] sm:$0xf]
  %v99 = vld [vmem:[%s0 + $0x128] sm:$0x1]
  %v100 = vld [vmem:[%s0 + $0x12c] sm:$0xf]
  %v101 = vld [vmem:[%s0 + $0x130] sm:$0xf]
  %v102 = vld [vmem:[%s0 + $0x134] sm:$0x1]
  %v103 = vld [vmem:[%s0 + $0x138] sm:$0xf]
  %v104 = vld [vmem:[%s0 + $0x13c] sm:$0xf]
  %v105 = vld [vmem:[%s0 + $0x140] sm:$0x1]
  %v106 = vld [vmem:[%s0 + $0x144] sm:$0xf]
  %v107 = vld [vmem:[%s0 + $0x148] sm:$0xf]
  %v108 = vld [vmem:[%s0 + $0x14c] sm:$0x1]
  %v109 = vld [vmem:[%s0 + $0x150] sm:$0xf]
  %v110 = vld [vmem:[%s0 + $0x154] sm:$0xf]
  %v111 = vld [vmem:[%s0 + $0x158] sm:$0x1]
  %v112 = vld [vmem:[%s0 + $0x15c] sm:$0xf]
  %v113 = vld [vmem:[%s0 + $0x160] sm:$0xf]
  %v114 = vld [vmem:[%s0 + $0x164] sm:$0x1]
  %v115 = vld [vmem:[%s0 + $0x168] sm:$0xf]
  %v116 = vld [vmem:[%s0 + $0x16c] sm:$0xf]
  %v117 = vld [vmem:[%s0 + $0x170] sm:$0x1]
  %v118 = vld [vmem:[%s0 + $0x174] sm:$0xf]
  %v119 = vld [vmem:[%s0 + $0x178] sm:$0xf]
  %v120 = vld [vmem:[%s0 + $0x17c] sm:$0x1]
  %v121 = vld [vmem:[%s0 + $0x180] sm:$0xf]
  %v122 = vld [vmem:[%s0 + $0x184] sm:$0xf]
  %v123 = vld [vmem:[%s0 + $0x188] sm:$0x1]
  %v124 = vld [vmem:[%s0 + $0x18c] sm:$0xf]
  %v125 = vld [vmem:[%s0 + $0x190] sm:$0xf]
  %v126 = vld [vmem:[%s0 + $0x194] sm:$0x1]
  %v127 = vld [vmem:[%s0 + $0x198] sm:$0xf]
  %v128 = vld [vmem:[%s0 + $0x19c] sm:$0xf]
  %v129 = vld [vmem:[%s0 + $0x1a0] sm:$0x1]
  %v130 = vld [vmem:[%s0 + $0x1a4] sm:$0xf]
  %v131 = vld [vmem:[%s0 + $0x1a8] sm:$0xf]
  %v132 = vld [vmem:[%s0 + $0x1ac] sm:$0x1]
  %vm133 = vsmask.f32 3328
  %vm134 = vsmask.f32 7440
  %vm135 = vmor %vm133, %vm134
  %v137 = vshrl.u32 %v25, 16
  %v139 = vrot.slane %v137, 4
  %v140 = vshll.u32 %v25, 16
  %v142 = vrot.slane %v140, 5
  %v143 = vor.u32 %v139, %v142
  %v144 = vrot.slane %v143, 4
  %v146 = vshll.u32 %v26, 16
  %v148 = vrot.slane %v146, 5
  %v149 = vsel %vm135, %v144, %v148
  %v150 = vshrl.u32 %v26, 16
  %v152 = vrot.slane %v150, 4
  %v153 = vor.u32 %v152, %v148
  %v154 = vrot.slane %v153, 4
  %v156 = vshll.u32 %v27, 16
  %v158 = vrot.slane %v156, 5
  %v159 = vsel %vm135, %v154, %v158
  %v161 = vshrl.u32 %v28, 16
  %v163 = vrot.slane %v161, 4
  %v164 = vshll.u32 %v28, 16
  %v166 = vrot.slane %v164, 5
  %v167 = vor.u32 %v163, %v166
  %v168 = vrot.slane %v167, 4
  %v170 = vshll.u32 %v29, 16
  %v172 = vrot.slane %v170, 5
  %v173 = vsel %vm135, %v168, %v172
  %v174 = vshrl.u32 %v29, 16
  %v176 = vrot.slane %v174, 4
  %v177 = vor.u32 %v176, %v172
  %v178 = vrot.slane %v177, 4
  %v180 = vshll.u32 %v30, 16
  %v182 = vrot.slane %v180, 5
  %v183 = vsel %vm135, %v178, %v182
  %v185 = vshrl.u32 %v31, 16
  %v187 = vrot.slane %v185, 4
  %v188 = vshll.u32 %v31, 16
  %v190 = vrot.slane %v188, 5
  %v191 = vor.u32 %v187, %v190
  %v192 = vrot.slane %v191, 4
  %v194 = vshll.u32 %v32, 16
  %v196 = vrot.slane %v194, 5
  %v197 = vsel %vm135, %v192, %v196
  %v198 = vshrl.u32 %v32, 16
  %v200 = vrot.slane %v198, 4
  %v201 = vor.u32 %v200, %v196
  %v202 = vrot.slane %v201, 4
  %v204 = vshll.u32 %v33, 16
  %v206 = vrot.slane %v204, 5
  %v207 = vsel %vm135, %v202, %v206
  %v209 = vshrl.u32 %v34, 16
  %v211 = vrot.slane %v209, 4
  %v212 = vshll.u32 %v34, 16
  %v214 = vrot.slane %v212, 5
  %v215 = vor.u32 %v211, %v214
  %v216 = vrot.slane %v215, 4
  %v218 = vshll.u32 %v35, 16
  %v220 = vrot.slane %v218, 5
  %v221 = vsel %vm135, %v216, %v220
  %v222 = vshrl.u32 %v35, 16
  %v224 = vrot.slane %v222, 4
  %v225 = vor.u32 %v224, %v220
  %v226 = vrot.slane %v225, 4
  %v228 = vshll.u32 %v36, 16
  %v230 = vrot.slane %v228, 5
  %v231 = vsel %vm135, %v226, %v230
  %v233 = vshrl.u32 %v37, 16
  %v235 = vrot.slane %v233, 4
  %v236 = vshll.u32 %v37, 16
  %v238 = vrot.slane %v236, 5
  %v239 = vor.u32 %v235, %v238
  %v240 = vrot.slane %v239, 4
  %v242 = vshll.u32 %v38, 16
  %v244 = vrot.slane %v242, 5
  %v245 = vsel %vm135, %v240, %v244
  %v246 = vshrl.u32 %v38, 16
  %v248 = vrot.slane %v246, 4
  %v249 = vor.u32 %v248, %v244
  %v250 = vrot.slane %v249, 4
  %v252 = vshll.u32 %v39, 16
  %v254 = vrot.slane %v252, 5
  %v255 = vsel %vm135, %v250, %v254
  %v257 = vshrl.u32 %v40, 16
  %v259 = vrot.slane %v257, 4
  %v260 = vshll.u32 %v40, 16
  %v262 = vrot.slane %v260, 5
  %v263 = vor.u32 %v259, %v262
  %v264 = vrot.slane %v263, 4
  %v266 = vshll.u32 %v41, 16
  %v268 = vrot.slane %v266, 5
  %v269 = vsel %vm135, %v264, %v268
  %v270 = vshrl.u32 %v41, 16
  %v272 = vrot.slane %v270, 4
  %v273 = vor.u32 %v272, %v268
  %v274 = vrot.slane %v273, 4
  %v276 = vshll.u32 %v42, 16
  %v278 = vrot.slane %v276, 5
  %v279 = vsel %vm135, %v274, %v278
  %v281 = vshrl.u32 %v43, 16
  %v283 = vrot.slane %v281, 4
  %v284 = vshll.u32 %v43, 16
  %v286 = vrot.slane %v284, 5
  %v287 = vor.u32 %v283, %v286
  %v288 = vrot.slane %v287, 4
  %v290 = vshll.u32 %v44, 16
  %v292 = vrot.slane %v290, 5
  %v293 = vsel %vm135, %v288, %v292
  %v294 = vshrl.u32 %v44, 16
  %v296 = vrot.slane %v294, 4
  %v297 = vor.u32 %v296, %v292
  %v298 = vrot.slane %v297, 4
  %v300 = vshll.u32 %v45, 16
  %v302 = vrot.slane %v300, 5
  %v303 = vsel %vm135, %v298, %v302
  %v305 = vshrl.u32 %v46, 16
  %v307 = vrot.slane %v305, 4
  %v308 = vshll.u32 %v46, 16
  %v310 = vrot.slane %v308, 5
  %v311 = vor.u32 %v307, %v310
  %v312 = vrot.slane %v311, 4
  %v314 = vshll.u32 %v47, 16
  %v316 = vrot.slane %v314, 5
  %v317 = vsel %vm135, %v312, %v316
  %v318 = vshrl.u32 %v47, 16
  %v320 = vrot.slane %v318, 4
  %v321 = vor.u32 %v320, %v316
  %v322 = vrot.slane %v321, 4
  %v324 = vshll.u32 %v48, 16
  %v326 = vrot.slane %v324, 5
  %v327 = vsel %vm135, %v322, %v326
  %v329 = vshrl.u32 %v49, 16
  %v331 = vrot.slane %v329, 4
  %v332 = vshll.u32 %v49, 16
  %v334 = vrot.slane %v332, 5
  %v335 = vor.u32 %v331, %v334
  %v336 = vrot.slane %v335, 4
  %v338 = vshll.u32 %v50, 16
  %v340 = vrot.slane %v338, 5
  %v341 = vsel %vm135, %v336, %v340
  %v342 = vshrl.u32 %v50, 16
  %v344 = vrot.slane %v342, 4
  %v345 = vor.u32 %v344, %v340
  %v346 = vrot.slane %v345, 4
  %v348 = vshll.u32 %v51, 16
  %v350 = vrot.slane %v348, 5
  %v351 = vsel %vm135, %v346, %v350
  %v353 = vshrl.u32 %v52, 16
  %v355 = vrot.slane %v353, 4
  %v356 = vshll.u32 %v52, 16
  %v358 = vrot.slane %v356, 5
  %v359 = vor.u32 %v355, %v358
  %v360 = vrot.slane %v359, 4
  %v362 = vshll.u32 %v53, 16
  %v364 = vrot.slane %v362, 5
  %v365 = vsel %vm135, %v360, %v364
  %v366 = vshrl.u32 %v53, 16
  %v368 = vrot.slane %v366, 4
  %v369 = vor.u32 %v368, %v364
  %v370 = vrot.slane %v369, 4
  %v372 = vshll.u32 %v54, 16
  %v374 = vrot.slane %v372, 5
  %v375 = vsel %vm135, %v370, %v374
  %v377 = vshrl.u32 %v55, 16
  %v379 = vrot.slane %v377, 4
  %v380 = vshll.u32 %v55, 16
  %v382 = vrot.slane %v380, 5
  %v383 = vor.u32 %v379, %v382
  %v384 = vrot.slane %v383, 4
  %v386 = vshll.u32 %v56, 16
  %v388 = vrot.slane %v386, 5
  %v389 = vsel %vm135, %v384, %v388
  %v390 = vshrl.u32 %v56, 16
  %v392 = vrot.slane %v390, 4
  %v393 = vor.u32 %v392, %v388
  %v394 = vrot.slane %v393, 4
  %v396 = vshll.u32 %v57, 16
  %v398 = vrot.slane %v396, 5
  %v399 = vsel %vm135, %v394, %v398
  %v401 = vshrl.u32 %v58, 16
  %v403 = vrot.slane %v401, 4
  %v404 = vshll.u32 %v58, 16
  %v406 = vrot.slane %v404, 5
  %v407 = vor.u32 %v403, %v406
  %v408 = vrot.slane %v407, 4
  %v410 = vshll.u32 %v59, 16
  %v412 = vrot.slane %v410, 5
  %v413 = vsel %vm135, %v408, %v412
  %v414 = vshrl.u32 %v59, 16
  %v416 = vrot.slane %v414, 4
  %v417 = vor.u32 %v416, %v412
  %v418 = vrot.slane %v417, 4
  %v420 = vshll.u32 %v60, 16
  %v422 = vrot.slane %v420, 5
  %v423 = vsel %vm135, %v418, %v422
  %v425 = vshrl.u32 %v61, 16
  %v427 = vrot.slane %v425, 4
  %v428 = vshll.u32 %v61, 16
  %v430 = vrot.slane %v428, 5
  %v431 = vor.u32 %v427, %v430
  %v432 = vrot.slane %v431, 4
  %v434 = vshll.u32 %v62, 16
  %v436 = vrot.slane %v434, 5
  %v437 = vsel %vm135, %v432, %v436
  %v438 = vshrl.u32 %v62, 16
  %v440 = vrot.slane %v438, 4
  %v441 = vor.u32 %v440, %v436
  %v442 = vrot.slane %v441, 4
  %v444 = vshll.u32 %v63, 16
  %v446 = vrot.slane %v444, 5
  %v447 = vsel %vm135, %v442, %v446
  %v449 = vshrl.u32 %v64, 16
  %v451 = vrot.slane %v449, 4
  %v452 = vshll.u32 %v64, 16
  %v454 = vrot.slane %v452, 5
  %v455 = vor.u32 %v451, %v454
  %v456 = vrot.slane %v455, 4
  %v458 = vshll.u32 %v65, 16
  %v460 = vrot.slane %v458, 5
  %v461 = vsel %vm135, %v456, %v460
  %v462 = vshrl.u32 %v65, 16
  %v464 = vrot.slane %v462, 4
  %v465 = vor.u32 %v464, %v460
  %v466 = vrot.slane %v465, 4
  %v468 = vshll.u32 %v66, 16
  %v470 = vrot.slane %v468, 5
  %v471 = vsel %vm135, %v466, %v470
  %v473 = vshrl.u32 %v67, 16
  %v475 = vrot.slane %v473, 4
  %v476 = vshll.u32 %v67, 16
  %v478 = vrot.slane %v476, 5
  %v479 = vor.u32 %v475, %v478
  %v480 = vrot.slane %v479, 4
  %v482 = vshll.u32 %v68, 16
  %v484 = vrot.slane %v482, 5
  %v485 = vsel %vm135, %v480, %v484
  %v486 = vshrl.u32 %v68, 16
  %v488 = vrot.slane %v486, 4
  %v489 = vor.u32 %v488, %v484
  %v490 = vrot.slane %v489, 4
  %v492 = vshll.u32 %v69, 16
  %v494 = vrot.slane %v492, 5
  %v495 = vsel %vm135, %v490, %v494
  %v497 = vshrl.u32 %v70, 16
  %v499 = vrot.slane %v497, 4
  %v500 = vshll.u32 %v70, 16
  %v502 = vrot.slane %v500, 5
  %v503 = vor.u32 %v499, %v502
  %v504 = vrot.slane %v503, 4
  %v506 = vshll.u32 %v71, 16
  %v508 = vrot.slane %v506, 5
  %v509 = vsel %vm135, %v504, %v508
  %v510 = vshrl.u32 %v71, 16
  %v512 = vrot.slane %v510, 4
  %v513 = vor.u32 %v512, %v508
  %v514 = vrot.slane %v513, 4
  %v516 = vshll.u32 %v72, 16
  %v518 = vrot.slane %v516, 5
  %v519 = vsel %vm135, %v514, %v518
  %v521 = vshrl.u32 %v79, 16
  %v523 = vrot.slane %v521, 4
  %v524 = vshll.u32 %v79, 16
  %v526 = vrot.slane %v524, 5
  %v527 = vor.u32 %v523, %v526
  %v528 = vrot.slane %v527, 4
  %v530 = vshll.u32 %v80, 16
  %v532 = vrot.slane %v530, 5
  %v533 = vsel %vm135, %v528, %v532
  %v534 = vshrl.u32 %v80, 16
  %v536 = vrot.slane %v534, 4
  %v537 = vor.u32 %v536, %v532
  %v538 = vrot.slane %v537, 4
  %v540 = vshll.u32 %v81, 16
  %v542 = vrot.slane %v540, 5
  %v543 = vsel %vm135, %v538, %v542
  %v545 = vshrl.u32 %v82, 16
  %v547 = vrot.slane %v545, 4
  %v548 = vshll.u32 %v82, 16
  %v550 = vrot.slane %v548, 5
  %v551 = vor.u32 %v547, %v550
  %v552 = vrot.slane %v551, 4
  %v554 = vshll.u32 %v83, 16
  %v556 = vrot.slane %v554, 5
  %v557 = vsel %vm135, %v552, %v556
  %v558 = vshrl.u32 %v83, 16
  %v560 = vrot.slane %v558, 4
  %v561 = vor.u32 %v560, %v556
  %v562 = vrot.slane %v561, 4
  %v564 = vshll.u32 %v84, 16
  %v566 = vrot.slane %v564, 5
  %v567 = vsel %vm135, %v562, %v566
  %v569 = vshrl.u32 %v85, 16
  %v571 = vrot.slane %v569, 4
  %v572 = vshll.u32 %v85, 16
  %v574 = vrot.slane %v572, 5
  %v575 = vor.u32 %v571, %v574
  %v576 = vrot.slane %v575, 4
  %v578 = vshll.u32 %v86, 16
  %v580 = vrot.slane %v578, 5
  %v581 = vsel %vm135, %v576, %v580
  %v582 = vshrl.u32 %v86, 16
  %v584 = vrot.slane %v582, 4
  %v585 = vor.u32 %v584, %v580
  %v586 = vrot.slane %v585, 4
  %v588 = vshll.u32 %v87, 16
  %v590 = vrot.slane %v588, 5
  %v591 = vsel %vm135, %v586, %v590
  %v593 = vshrl.u32 %v88, 16
  %v595 = vrot.slane %v593, 4
  %v596 = vshll.u32 %v88, 16
  %v598 = vrot.slane %v596, 5
  %v599 = vor.u32 %v595, %v598
  %v600 = vrot.slane %v599, 4
  %v602 = vshll.u32 %v89, 16
  %v604 = vrot.slane %v602, 5
  %v605 = vsel %vm135, %v600, %v604
  %v606 = vshrl.u32 %v89, 16
  %v608 = vrot.slane %v606, 4
  %v609 = vor.u32 %v608, %v604
  %v610 = vrot.slane %v609, 4
  %v612 = vshll.u32 %v90, 16
  %v614 = vrot.slane %v612, 5
  %v615 = vsel %vm135, %v610, %v614
  %v617 = vshrl.u32 %v91, 16
  %v619 = vrot.slane %v617, 4
  %v620 = vshll.u32 %v91, 16
  %v622 = vrot.slane %v620, 5
  %v623 = vor.u32 %v619, %v622
  %v624 = vrot.slane %v623, 4
  %v626 = vshll.u32 %v92, 16
  %v628 = vrot.slane %v626, 5
  %v629 = vsel %vm135, %v624, %v628
  %v630 = vshrl.u32 %v92, 16
  %v632 = vrot.slane %v630, 4
  %v633 = vor.u32 %v632, %v628
  %v634 = vrot.slane %v633, 4
  %v636 = vshll.u32 %v93, 16
  %v638 = vrot.slane %v636, 5
  %v639 = vsel %vm135, %v634, %v638
  %v641 = vshrl.u32 %v94, 16
  %v643 = vrot.slane %v641, 4
  %v644 = vshll.u32 %v94, 16
  %v646 = vrot.slane %v644, 5
  %v647 = vor.u32 %v643, %v646
  %v648 = vrot.slane %v647, 4
  %v650 = vshll.u32 %v95, 16
  %v652 = vrot.slane %v650, 5
  %v653 = vsel %vm135, %v648, %v652
  %v654 = vshrl.u32 %v95, 16
  %v656 = vrot.slane %v654, 4
  %v657 = vor.u32 %v656, %v652
  %v658 = vrot.slane %v657, 4
  %v660 = vshll.u32 %v96, 16
  %v662 = vrot.slane %v660, 5
  %v663 = vsel %vm135, %v658, %v662
  %v665 = vshrl.u32 %v97, 16
  %v667 = vrot.slane %v665, 4
  %v668 = vshll.u32 %v97, 16
  %v670 = vrot.slane %v668, 5
  %v671 = vor.u32 %v667, %v670
  %v672 = vrot.slane %v671, 4
  %v674 = vshll.u32 %v98, 16
  %v676 = vrot.slane %v674, 5
  %v677 = vsel %vm135, %v672, %v676
  %v678 = vshrl.u32 %v98, 16
  %v680 = vrot.slane %v678, 4
  %v681 = vor.u32 %v680, %v676
  %v682 = vrot.slane %v681, 4
  %v684 = vshll.u32 %v99, 16
  %v686 = vrot.slane %v684, 5
  %v687 = vsel %vm135, %v682, %v686
  %v689 = vshrl.u32 %v100, 16
  %v691 = vrot.slane %v689, 4
  %v692 = vshll.u32 %v100, 16
  %v694 = vrot.slane %v692, 5
  %v695 = vor.u32 %v691, %v694
  %v696 = vrot.slane %v695, 4
  %v698 = vshll.u32 %v101, 16
  %v700 = vrot.slane %v698, 5
  %v701 = vsel %vm135, %v696, %v700
  %v702 = vshrl.u32 %v101, 16
  %v704 = vrot.slane %v702, 4
  %v705 = vor.u32 %v704, %v700
  %v706 = vrot.slane %v705, 4
  %v708 = vshll.u32 %v102, 16
  %v710 = vrot.slane %v708, 5
  %v711 = vsel %vm135, %v706, %v710
  %v713 = vshrl.u32 %v103, 16
  %v715 = vrot.slane %v713, 4
  %v716 = vshll.u32 %v103, 16
  %v718 = vrot.slane %v716, 5
  %v719 = vor.u32 %v715, %v718
  %v720 = vrot.slane %v719, 4
  %v722 = vshll.u32 %v104, 16
  %v724 = vrot.slane %v722, 5
  %v725 = vsel %vm135, %v720, %v724
  %v726 = vshrl.u32 %v104, 16
  %v728 = vrot.slane %v726, 4
  %v729 = vor.u32 %v728, %v724
  %v730 = vrot.slane %v729, 4
  %v732 = vshll.u32 %v105, 16
  %v734 = vrot.slane %v732, 5
  %v735 = vsel %vm135, %v730, %v734
  %v737 = vshrl.u32 %v106, 16
  %v739 = vrot.slane %v737, 4
  %v740 = vshll.u32 %v106, 16
  %v742 = vrot.slane %v740, 5
  %v743 = vor.u32 %v739, %v742
  %v744 = vrot.slane %v743, 4
  %v746 = vshll.u32 %v107, 16
  %v748 = vrot.slane %v746, 5
  %v749 = vsel %vm135, %v744, %v748
  %v750 = vshrl.u32 %v107, 16
  %v752 = vrot.slane %v750, 4
  %v753 = vor.u32 %v752, %v748
  %v754 = vrot.slane %v753, 4
  %v756 = vshll.u32 %v108, 16
  %v758 = vrot.slane %v756, 5
  %v759 = vsel %vm135, %v754, %v758
  %v761 = vshrl.u32 %v109, 16
  %v763 = vrot.slane %v761, 4
  %v764 = vshll.u32 %v109, 16
  %v766 = vrot.slane %v764, 5
  %v767 = vor.u32 %v763, %v766
  %v768 = vrot.slane %v767, 4
  %v770 = vshll.u32 %v110, 16
  %v772 = vrot.slane %v770, 5
  %v773 = vsel %vm135, %v768, %v772
  %v774 = vshrl.u32 %v110, 16
  %v776 = vrot.slane %v774, 4
  %v777 = vor.u32 %v776, %v772
  %v778 = vrot.slane %v777, 4
  %v780 = vshll.u32 %v111, 16
  %v782 = vrot.slane %v780, 5
  %v783 = vsel %vm135, %v778, %v782
  %v785 = vshrl.u32 %v112, 16
  %v787 = vrot.slane %v785, 4
  %v788 = vshll.u32 %v112, 16
  %v790 = vrot.slane %v788, 5
  %v791 = vor.u32 %v787, %v790
  %v792 = vrot.slane %v791, 4
  %v794 = vshll.u32 %v113, 16
  %v796 = vrot.slane %v794, 5
  %v797 = vsel %vm135, %v792, %v796
  %v798 = vshrl.u32 %v113, 16
  %v800 = vrot.slane %v798, 4
  %v801 = vor.u32 %v800, %v796
  %v802 = vrot.slane %v801, 4
  %v804 = vshll.u32 %v114, 16
  %v806 = vrot.slane %v804, 5
  %v807 = vsel %vm135, %v802, %v806
  %v809 = vshrl.u32 %v115, 16
  %v811 = vrot.slane %v809, 4
  %v812 = vshll.u32 %v115, 16
  %v814 = vrot.slane %v812, 5
  %v815 = vor.u32 %v811, %v814
  %v816 = vrot.slane %v815, 4
  %v818 = vshll.u32 %v116, 16
  %v820 = vrot.slane %v818, 5
  %v821 = vsel %vm135, %v816, %v820
  %v822 = vshrl.u32 %v116, 16
  %v824 = vrot.slane %v822, 4
  %v825 = vor.u32 %v824, %v820
  %v826 = vrot.slane %v825, 4
  %v828 = vshll.u32 %v117, 16
  %v830 = vrot.slane %v828, 5
  %v831 = vsel %vm135, %v826, %v830
  %v833 = vshrl.u32 %v118, 16
  %v835 = vrot.slane %v833, 4
  %v836 = vshll.u32 %v118, 16
  %v838 = vrot.slane %v836, 5
  %v839 = vor.u32 %v835, %v838
  %v840 = vrot.slane %v839, 4
  %v842 = vshll.u32 %v119, 16
  %v844 = vrot.slane %v842, 5
  %v845 = vsel %vm135, %v840, %v844
  %v846 = vshrl.u32 %v119, 16
  %v848 = vrot.slane %v846, 4
  %v849 = vor.u32 %v848, %v844
  %v850 = vrot.slane %v849, 4
  %v852 = vshll.u32 %v120, 16
  %v854 = vrot.slane %v852, 5
  %v855 = vsel %vm135, %v850, %v854
  %v857 = vshrl.u32 %v121, 16
  %v859 = vrot.slane %v857, 4
  %v860 = vshll.u32 %v121, 16
  %v862 = vrot.slane %v860, 5
  %v863 = vor.u32 %v859, %v862
  %v864 = vrot.slane %v863, 4
  %v866 = vshll.u32 %v122, 16
  %v868 = vrot.slane %v866, 5
  %v869 = vsel %vm135, %v864, %v868
  %v870 = vshrl.u32 %v122, 16
  %v872 = vrot.slane %v870, 4
  %v873 = vor.u32 %v872, %v868
  %v874 = vrot.slane %v873, 4
  %v876 = vshll.u32 %v123, 16
  %v878 = vrot.slane %v876, 5
  %v879 = vsel %vm135, %v874, %v878
  %v881 = vshrl.u32 %v124, 16
  %v883 = vrot.slane %v881, 4
  %v884 = vshll.u32 %v124, 16
  %v886 = vrot.slane %v884, 5
  %v887 = vor.u32 %v883, %v886
  %v888 = vrot.slane %v887, 4
  %v890 = vshll.u32 %v125, 16
  %v892 = vrot.slane %v890, 5
  %v893 = vsel %vm135, %v888, %v892
  %v894 = vshrl.u32 %v125, 16
  %v896 = vrot.slane %v894, 4
  %v897 = vor.u32 %v896, %v892
  %v898 = vrot.slane %v897, 4
  %v900 = vshll.u32 %v126, 16
  %v902 = vrot.slane %v900, 5
  %v903 = vsel %vm135, %v898, %v902
  %v904 = vunpack.c.l.b16 %v149
  %v905 = vunpack.c.l.b16 %v159
  %v906 = vunpack.c.l.b16 %v173
  %v907 = vunpack.c.l.b16 %v183
  %v908 = vunpack.c.l.b16 %v197
  %v909 = vunpack.c.l.b16 %v207
  %v910 = vunpack.c.l.b16 %v221
  %v911 = vunpack.c.l.b16 %v231
  %v912 = vunpack.c.l.b16 %v245
  %v913 = vunpack.c.l.b16 %v255
  %v914 = vunpack.c.l.b16 %v269
  %v915 = vunpack.c.l.b16 %v279
  %v916 = vunpack.c.l.b16 %v293
  %v917 = vunpack.c.l.b16 %v303
  %v918 = vunpack.c.l.b16 %v317
  %v919 = vunpack.c.l.b16 %v327
  %v920 = vunpack.c.l.b16 %v341
  %v921 = vunpack.c.l.b16 %v351
  %v922 = vunpack.c.l.b16 %v365
  %v923 = vunpack.c.l.b16 %v375
  %v924 = vunpack.c.l.b16 %v389
  %v925 = vunpack.c.l.b16 %v399
  %v926 = vunpack.c.l.b16 %v413
  %v927 = vunpack.c.l.b16 %v423
  %v928 = vunpack.c.l.b16 %v437
  %v929 = vunpack.c.l.b16 %v447
  %v930 = vunpack.c.l.b16 %v461
  %v931 = vunpack.c.l.b16 %v471
  %v932 = vunpack.c.l.b16 %v485
  %v933 = vunpack.c.l.b16 %v495
  %v934 = vunpack.c.l.b16 %v509
  %v935 = vunpack.c.l.b16 %v519
  %v936 = vunpack.c.l.b16 %v533
  %v937 = vunpack.c.l.b16 %v543
  %v938 = vunpack.c.l.b16 %v557
  %v939 = vunpack.c.l.b16 %v567
  %v940 = vunpack.c.l.b16 %v581
  %v941 = vunpack.c.l.b16 %v591
  %v942 = vunpack.c.l.b16 %v605
  %v943 = vunpack.c.l.b16 %v615
  %v944 = vunpack.c.l.b16 %v629
  %v945 = vunpack.c.l.b16 %v639
  %v946 = vunpack.c.l.b16 %v653
  %v947 = vunpack.c.l.b16 %v663
  %v948 = vunpack.c.l.b16 %v677
  %v949 = vunpack.c.l.b16 %v687
  %v950 = vunpack.c.l.b16 %v701
  %v951 = vunpack.c.l.b16 %v711
  %v952 = vunpack.c.l.b16 %v725
  %v953 = vunpack.c.l.b16 %v735
  %v954 = vunpack.c.l.b16 %v749
  %v955 = vunpack.c.l.b16 %v759
  %v956 = vunpack.c.l.b16 %v773
  %v957 = vunpack.c.l.b16 %v783
  %v958 = vunpack.c.l.b16 %v797
  %v959 = vunpack.c.l.b16 %v807
  %v960 = vunpack.c.l.b16 %v821
  %v961 = vunpack.c.l.b16 %v831
  %v962 = vunpack.c.l.b16 %v845
  %v963 = vunpack.c.l.b16 %v855
  %v964 = vunpack.c.l.b16 %v869
  %v965 = vunpack.c.l.b16 %v879
  %v966 = vunpack.c.l.b16 %v893
  %v967 = vunpack.c.l.b16 %v903
  %v968 = vpack.c.b16 %v905, %v904
  %v969 = vpack.c.b16 %v907, %v906
  %v970 = vpack.c.b16 %v909, %v908
  %v971 = vpack.c.b16 %v911, %v910
  %v972 = vpack.c.b16 %v913, %v912
  %v973 = vpack.c.b16 %v915, %v914
  %v974 = vpack.c.b16 %v917, %v916
  %v975 = vpack.c.b16 %v919, %v918
  %v976 = vpack.c.b16 %v921, %v920
  %v977 = vpack.c.b16 %v923, %v922
  %v978 = vpack.c.b16 %v925, %v924
  %v979 = vpack.c.b16 %v927, %v926
  %v980 = vpack.c.b16 %v929, %v928
  %v981 = vpack.c.b16 %v931, %v930
  %v982 = vpack.c.b16 %v933, %v932
  %v983 = vpack.c.b16 %v935, %v934
  %v984 = vpack.c.b16 %v937, %v936
  %v985 = vpack.c.b16 %v939, %v938
  %v986 = vpack.c.b16 %v941, %v940
  %v987 = vpack.c.b16 %v943, %v942
  %v988 = vpack.c.b16 %v945, %v944
  %v989 = vpack.c.b16 %v947, %v946
  %v990 = vpack.c.b16 %v949, %v948
  %v991 = vpack.c.b16 %v951, %v950
  %v992 = vpack.c.b16 %v953, %v952
  %v993 = vpack.c.b16 %v955, %v954
  %v994 = vpack.c.b16 %v957, %v956
  %v995 = vpack.c.b16 %v959, %v958
  %v996 = vpack.c.b16 %v961, %v960
  %v997 = vpack.c.b16 %v963, %v962
  %v998 = vpack.c.b16 %v965, %v964
  %v999 = vpack.c.b16 %v967, %v966
  %v1001 = vunpack.c.l.b16 %v17
  %v1002 = vpack.c.b16 %v1001, %v1001
  %v1003 = vrot.slane %v1002, 2
  %vm1004 = vcmask 31744
  %v1006 = vsel %vm1004, %v968, 0
  %v1009 = vsel %vm1004, %v969, 0
  %v1012 = vsel %vm1004, %v970, 0
  %v1015 = vsel %vm1004, %v971, 0
  %v1018 = vsel %vm1004, %v972, 0
  %v1021 = vsel %vm1004, %v973, 0
  %v1024 = vsel %vm1004, %v974, 0
  %v1027 = vsel %vm1004, %v975, 0
  %v1030 = vsel %vm1004, %v976, 0
  %v1033 = vsel %vm1004, %v977, 0
  %v1036 = vsel %vm1004, %v978, 0
  %v1039 = vsel %vm1004, %v979, 0
  %v1042 = vsel %vm1004, %v980, 0
  %v1045 = vsel %vm1004, %v981, 0
  %v1048 = vsel %vm1004, %v982, 0
  %v1051 = vsel %vm1004, %v983, 0
  %v1054 = vsel %vm1004, %v984, 0
  %v1057 = vsel %vm1004, %v985, 0
  %v1060 = vsel %vm1004, %v986, 0
  %v1063 = vsel %vm1004, %v987, 0
  %v1066 = vsel %vm1004, %v988, 0
  %v1069 = vsel %vm1004, %v989, 0
  %v1072 = vsel %vm1004, %v990, 0
  %v1075 = vsel %vm1004, %v991, 0
  %v1078 = vsel %vm1004, %v992, 0
  %v1081 = vsel %vm1004, %v993, 0
  %v1084 = vsel %vm1004, %v994, 0
  %v1087 = vsel %vm1004, %v995, 0
  %v1090 = vsel %vm1004, %v996, 0
  %v1093 = vsel %vm1004, %v997, 0
  %v1096 = vsel %vm1004, %v998, 0
  %v1099 = vsel %vm1004, %v999, 0
  %vm1101 = vcmask 1041408
  %v1103 = vsel %vm1101, %v1003, 0
  %1105 = vmatprep.subr.bf16.mxu0 0
  %1106 = vmatpush1.bf16.msra.mxu0 0
  %1107 = vmatprep.subr.bf16.mxu0 0
  %1108 = vmatpush1.bf16.msra.mxu0 0
  %1109 = vmatprep.subr.bf16.mxu0 0
  %1110 = vmatpush1.bf16.msra.mxu0 0
  %1111 = vmatprep.subr.bf16.mxu0 0
  %1112 = vmatpush1.bf16.msra.mxu0 0
  %1113 = vmatprep.subr.bf16.mxu0 0
  %1114 = vmatpush1.bf16.msra.mxu0 0
  %1115 = vmatprep.subr.bf16.mxu0 0
  %1116 = vmatpush1.bf16.msra.mxu0 0
  %1117 = vmatprep.subr.bf16.mxu0 0
  %1118 = vmatpush1.bf16.msra.mxu0 0
  %1119 = vmatprep.subr.bf16.mxu0 0
  %1120 = vmatpush1.bf16.msra.mxu0 %v1103
  %1121 = vmatprep.subr.bf16.mxu0 0
  %1122 = vmatpush2.bf16.msra.mxu0 0
  %1123 = vmatprep.subr.bf16.mxu0 0
  %1124 = vmatpush2.bf16.msra.mxu0 0
  %1125 = vmatprep.subr.bf16.mxu0 0
  %1126 = vmatpush2.bf16.msra.mxu0 0
  %1127 = vmatprep.subr.bf16.mxu0 0
  %1128 = vmatpush2.bf16.msra.mxu0 0
  %1129 = vmatprep.subr.bf16.mxu0 0
  %1130 = vmatpush2.bf16.msra.mxu0 0
  %1131 = vmatprep.subr.bf16.mxu0 0
  %1132 = vmatpush2.bf16.msra.mxu0 0
  %1133 = vmatprep.subr.bf16.mxu0 0
  %1134 = vmatpush2.bf16.msra.mxu0 0
  %1135 = vmatprep.subr.bf16.mxu0 0
  %1136 = vmatpush2.bf16.msra.mxu0 0
  %1137 = vmatprep.mubr.bf16.mxu0 0
  %1138 = vmatmul.mubr.bf16.gmra.mxu0 %v1006
  %v1139 = vpop.f32.mrf.mxu0
  %v1140 = vadd.f32 0.0, %v1139
  %v1141 = vpop.f32.mrf.mxu0
  %v1142 = vpop.f32.mrf.mxu0
  %v1143 = vadd.f32 0.0, %v1142
  %v1144 = vpop.f32.mrf.mxu0
  %1145 = vmatprep.mubr.bf16.mxu0 0
  %1146 = vmatmul.mubr.bf16.gmra.mxu0 %v1009
  %v1147 = vpop.f32.mrf.mxu0
  %v1148 = vadd.f32 0.0, %v1147
  %v1149 = vpop.f32.mrf.mxu0
  %v1150 = vpop.f32.mrf.mxu0
  %v1151 = vadd.f32 0.0, %v1150
  %v1152 = vpop.f32.mrf.mxu0
  %1153 = vmatprep.mubr.bf16.mxu0 0
  %1154 = vmatmul.mubr.bf16.gmra.mxu0 %v1012
  %v1155 = vpop.f32.mrf.mxu0
  %v1156 = vadd.f32 0.0, %v1155
  %v1157 = vpop.f32.mrf.mxu0
  %v1158 = vpop.f32.mrf.mxu0
  %v1159 = vadd.f32 0.0, %v1158
  %v1160 = vpop.f32.mrf.mxu0
  %1161 = vmatprep.mubr.bf16.mxu0 0
  %1162 = vmatmul.mubr.bf16.gmra.mxu0 %v1015
  %v1163 = vpop.f32.mrf.mxu0
  %v1164 = vadd.f32 0.0, %v1163
  %v1165 = vpop.f32.mrf.mxu0
  %v1166 = vpop.f32.mrf.mxu0
  %v1167 = vadd.f32 0.0, %v1166
  %v1168 = vpop.f32.mrf.mxu0
  %1169 = vmatprep.mubr.bf16.mxu0 0
  %1170 = vmatmul.mubr.bf16.gmra.mxu0 %v1018
  %v1171 = vpop.f32.mrf.mxu0
  %v1172 = vadd.f32 0.0, %v1171
  %v1173 = vpop.f32.mrf.mxu0
  %v1174 = vpop.f32.mrf.mxu0
  %v1175 = vadd.f32 0.0, %v1174
  %v1176 = vpop.f32.mrf.mxu0
  %1177 = vmatprep.mubr.bf16.mxu0 0
  %1178 = vmatmul.mubr.bf16.gmra.mxu0 %v1021
  %v1179 = vpop.f32.mrf.mxu0
  %v1180 = vadd.f32 0.0, %v1179
  %v1181 = vpop.f32.mrf.mxu0
  %v1182 = vpop.f32.mrf.mxu0
  %v1183 = vadd.f32 0.0, %v1182
  %v1184 = vpop.f32.mrf.mxu0
  %1185 = vmatprep.mubr.bf16.mxu0 0
  %1186 = vmatmul.mubr.bf16.gmra.mxu0 %v1024
  %v1187 = vpop.f32.mrf.mxu0
  %v1188 = vadd.f32 0.0, %v1187
  %v1189 = vpop.f32.mrf.mxu0
  %v1190 = vpop.f32.mrf.mxu0
  %v1191 = vadd.f32 0.0, %v1190
  %v1192 = vpop.f32.mrf.mxu0
  %1193 = vmatprep.mubr.bf16.mxu0 0
  %1194 = vmatmul.mubr.bf16.gmra.mxu0 %v1027
  %v1195 = vpop.f32.mrf.mxu0
  %v1196 = vadd.f32 0.0, %v1195
  %v1197 = vpop.f32.mrf.mxu0
  %v1198 = vpop.f32.mrf.mxu0
  %v1199 = vadd.f32 0.0, %v1198
  %v1200 = vpop.f32.mrf.mxu0
  %1201 = vmatprep.mubr.bf16.mxu0 0
  %1202 = vmatmul.mubr.bf16.gmra.mxu0 %v1030
  %v1203 = vpop.f32.mrf.mxu0
  %v1204 = vadd.f32 0.0, %v1203
  %v1205 = vpop.f32.mrf.mxu0
  %v1206 = vpop.f32.mrf.mxu0
  %v1207 = vadd.f32 0.0, %v1206
  %v1208 = vpop.f32.mrf.mxu0
  %1209 = vmatprep.mubr.bf16.mxu0 0
  %1210 = vmatmul.mubr.bf16.gmra.mxu0 %v1033
  %v1211 = vpop.f32.mrf.mxu0
  %v1212 = vadd.f32 0.0, %v1211
  %v1213 = vpop.f32.mrf.mxu0
  %v1214 = vpop.f32.mrf.mxu0
  %v1215 = vadd.f32 0.0, %v1214
  %v1216 = vpop.f32.mrf.mxu0
  %1217 = vmatprep.mubr.bf16.mxu0 0
  %1218 = vmatmul.mubr.bf16.gmra.mxu0 %v1036
  %v1219 = vpop.f32.mrf.mxu0
  %v1220 = vadd.f32 0.0, %v1219
  %v1221 = vpop.f32.mrf.mxu0
  %v1222 = vpop.f32.mrf.mxu0
  %v1223 = vadd.f32 0.0, %v1222
  %v1224 = vpop.f32.mrf.mxu0
  %1225 = vmatprep.mubr.bf16.mxu0 0
  %1226 = vmatmul.mubr.bf16.gmra.mxu0 %v1039
  %v1227 = vpop.f32.mrf.mxu0
  %v1228 = vadd.f32 0.0, %v1227
  %v1229 = vpop.f32.mrf.mxu0
  %v1230 = vpop.f32.mrf.mxu0
  %v1231 = vadd.f32 0.0, %v1230
  %v1232 = vpop.f32.mrf.mxu0
  %1233 = vmatprep.mubr.bf16.mxu0 0
  %1234 = vmatmul.mubr.bf16.gmra.mxu0 %v1042
  %v1235 = vpop.f32.mrf.mxu0
  %v1236 = vadd.f32 0.0, %v1235
  %v1237 = vpop.f32.mrf.mxu0
  %v1238 = vpop.f32.mrf.mxu0
  %v1239 = vadd.f32 0.0, %v1238
  %v1240 = vpop.f32.mrf.mxu0
  %1241 = vmatprep.mubr.bf16.mxu0 0
  %1242 = vmatmul.mubr.bf16.gmra.mxu0 %v1045
  %v1243 = vpop.f32.mrf.mxu0
  %v1244 = vadd.f32 0.0, %v1243
  %v1245 = vpop.f32.mrf.mxu0
  %v1246 = vpop.f32.mrf.mxu0
  %v1247 = vadd.f32 0.0, %v1246
  %v1248 = vpop.f32.mrf.mxu0
  %1249 = vmatprep.mubr.bf16.mxu0 0
  %1250 = vmatmul.mubr.bf16.gmra.mxu0 %v1048
  %v1251 = vpop.f32.mrf.mxu0
  %v1252 = vadd.f32 0.0, %v1251
  %v1253 = vpop.f32.mrf.mxu0
  %v1254 = vpop.f32.mrf.mxu0
  %v1255 = vadd.f32 0.0, %v1254
  %v1256 = vpop.f32.mrf.mxu0
  %1257 = vmatprep.mubr.bf16.mxu0 0
  %1258 = vmatmul.mubr.bf16.gmra.mxu0 %v1051
  %v1259 = vpop.f32.mrf.mxu0
  %v1260 = vadd.f32 0.0, %v1259
  %v1261 = vpop.f32.mrf.mxu0
  %v1262 = vpop.f32.mrf.mxu0
  %v1263 = vadd.f32 0.0, %v1262
  %v1264 = vpop.f32.mrf.mxu0
  %1265 = vmatprep.mubr.bf16.mxu0 0
  %1266 = vmatmul.mubr.bf16.gmra.mxu0 %v1054
  %v1267 = vpop.f32.mrf.mxu0
  %v1268 = vadd.f32 0.0, %v1267
  %v1269 = vpop.f32.mrf.mxu0
  %v1270 = vpop.f32.mrf.mxu0
  %v1271 = vadd.f32 0.0, %v1270
  %v1272 = vpop.f32.mrf.mxu0
  %1273 = vmatprep.mubr.bf16.mxu0 0
  %1274 = vmatmul.mubr.bf16.gmra.mxu0 %v1057
  %v1275 = vpop.f32.mrf.mxu0
  %v1276 = vadd.f32 0.0, %v1275
  %v1277 = vpop.f32.mrf.mxu0
  %v1278 = vpop.f32.mrf.mxu0
  %v1279 = vadd.f32 0.0, %v1278
  %v1280 = vpop.f32.mrf.mxu0
  %1281 = vmatprep.mubr.bf16.mxu0 0
  %1282 = vmatmul.mubr.bf16.gmra.mxu0 %v1060
  %v1283 = vpop.f32.mrf.mxu0
  %v1284 = vadd.f32 0.0, %v1283
  %v1285 = vpop.f32.mrf.mxu0
  %v1286 = vpop.f32.mrf.mxu0
  %v1287 = vadd.f32 0.0, %v1286
  %v1288 = vpop.f32.mrf.mxu0
  %1289 = vmatprep.mubr.bf16.mxu0 0
  %1290 = vmatmul.mubr.bf16.gmra.mxu0 %v1063
  %v1291 = vpop.f32.mrf.mxu0
  %v1292 = vadd.f32 0.0, %v1291
  %v1293 = vpop.f32.mrf.mxu0
  %v1294 = vpop.f32.mrf.mxu0
  %v1295 = vadd.f32 0.0, %v1294
  %v1296 = vpop.f32.mrf.mxu0
  %1297 = vmatprep.mubr.bf16.mxu0 0
  %1298 = vmatmul.mubr.bf16.gmra.mxu0 %v1066
  %v1299 = vpop.f32.mrf.mxu0
  %v1300 = vadd.f32 0.0, %v1299
  %v1301 = vpop.f32.mrf.mxu0
  %v1302 = vpop.f32.mrf.mxu0
  %v1303 = vadd.f32 0.0, %v1302
  %v1304 = vpop.f32.mrf.mxu0
  %1305 = vmatprep.mubr.bf16.mxu0 0
  %1306 = vmatmul.mubr.bf16.gmra.mxu0 %v1069
  %v1307 = vpop.f32.mrf.mxu0
  %v1308 = vadd.f32 0.0, %v1307
  %v1309 = vpop.f32.mrf.mxu0
  %v1310 = vpop.f32.mrf.mxu0
  %v1311 = vadd.f32 0.0, %v1310
  %v1312 = vpop.f32.mrf.mxu0
  %1313 = vmatprep.mubr.bf16.mxu0 0
  %1314 = vmatmul.mubr.bf16.gmra.mxu0 %v1072
  %v1315 = vpop.f32.mrf.mxu0
  %v1316 = vadd.f32 0.0, %v1315
  %v1317 = vpop.f32.mrf.mxu0
  %v1318 = vpop.f32.mrf.mxu0
  %v1319 = vadd.f32 0.0, %v1318
  %v1320 = vpop.f32.mrf.mxu0
  %1321 = vmatprep.mubr.bf16.mxu0 0
  %1322 = vmatmul.mubr.bf16.gmra.mxu0 %v1075
  %v1323 = vpop.f32.mrf.mxu0
  %v1324 = vadd.f32 0.0, %v1323
  %v1325 = vpop.f32.mrf.mxu0
  %v1326 = vpop.f32.mrf.mxu0
  %v1327 = vadd.f32 0.0, %v1326
  %v1328 = vpop.f32.mrf.mxu0
  %1329 = vmatprep.mubr.bf16.mxu0 0
  %1330 = vmatmul.mubr.bf16.gmra.mxu0 %v1078
  %v1331 = vpop.f32.mrf.mxu0
  %v1332 = vadd.f32 0.0, %v1331
  %v1333 = vpop.f32.mrf.mxu0
  %v1334 = vpop.f32.mrf.mxu0
  %v1335 = vadd.f32 0.0, %v1334
  %v1336 = vpop.f32.mrf.mxu0
  %1337 = vmatprep.mubr.bf16.mxu0 0
  %1338 = vmatmul.mubr.bf16.gmra.mxu0 %v1081
  %v1339 = vpop.f32.mrf.mxu0
  %v1340 = vadd.f32 0.0, %v1339
  %v1341 = vpop.f32.mrf.mxu0
  %v1342 = vpop.f32.mrf.mxu0
  %v1343 = vadd.f32 0.0, %v1342
  %v1344 = vpop.f32.mrf.mxu0
  %1345 = vmatprep.mubr.bf16.mxu0 0
  %1346 = vmatmul.mubr.bf16.gmra.mxu0 %v1084
  %v1347 = vpop.f32.mrf.mxu0
  %v1348 = vadd.f32 0.0, %v1347
  %v1349 = vpop.f32.mrf.mxu0
  %v1350 = vpop.f32.mrf.mxu0
  %v1351 = vadd.f32 0.0, %v1350
  %v1352 = vpop.f32.mrf.mxu0
  %1353 = vmatprep.mubr.bf16.mxu0 0
  %1354 = vmatmul.mubr.bf16.gmra.mxu0 %v1087
  %v1355 = vpop.f32.mrf.mxu0
  %v1356 = vadd.f32 0.0, %v1355
  %v1357 = vpop.f32.mrf.mxu0
  %v1358 = vpop.f32.mrf.mxu0
  %v1359 = vadd.f32 0.0, %v1358
  %v1360 = vpop.f32.mrf.mxu0
  %1361 = vmatprep.mubr.bf16.mxu0 0
  %1362 = vmatmul.mubr.bf16.gmra.mxu0 %v1090
  %v1363 = vpop.f32.mrf.mxu0
  %v1364 = vadd.f32 0.0, %v1363
  %v1365 = vpop.f32.mrf.mxu0
  %v1366 = vpop.f32.mrf.mxu0
  %v1367 = vadd.f32 0.0, %v1366
  %v1368 = vpop.f32.mrf.mxu0
  %1369 = vmatprep.mubr.bf16.mxu0 0
  %1370 = vmatmul.mubr.bf16.gmra.mxu0 %v1093
  %v1371 = vpop.f32.mrf.mxu0
  %v1372 = vadd.f32 0.0, %v1371
  %v1373 = vpop.f32.mrf.mxu0
  %v1374 = vpop.f32.mrf.mxu0
  %v1375 = vadd.f32 0.0, %v1374
  %v1376 = vpop.f32.mrf.mxu0
  %1377 = vmatprep.mubr.bf16.mxu0 0
  %1378 = vmatmul.mubr.bf16.gmra.mxu0 %v1096
  %v1379 = vpop.f32.mrf.mxu0
  %v1380 = vadd.f32 0.0, %v1379
  %v1381 = vpop.f32.mrf.mxu0
  %v1382 = vpop.f32.mrf.mxu0
  %v1383 = vadd.f32 0.0, %v1382
  %v1384 = vpop.f32.mrf.mxu0
  %1385 = vmatprep.mubr.bf16.mxu0 0
  %1386 = vmatmul.mubr.bf16.gmra.mxu0 %v1099
  %v1387 = vpop.f32.mrf.mxu0
  %v1388 = vadd.f32 0.0, %v1387
  %v1389 = vpop.f32.mrf.mxu0
  %v1390 = vpop.f32.mrf.mxu0
  %v1391 = vadd.f32 0.0, %v1390
  %v1392 = vpop.f32.mrf.mxu0
  %1393 = vdwg.mxu0
  %v1458 = vunpack.c.l.b16 %v25
  %v1459 = vunpack.c.l.b16 %v26
  %v1460 = vunpack.c.l.b16 %v28
  %v1461 = vunpack.c.l.b16 %v29
  %v1462 = vunpack.c.l.b16 %v31
  %v1463 = vunpack.c.l.b16 %v32
  %v1464 = vunpack.c.l.b16 %v34
  %v1465 = vunpack.c.l.b16 %v35
  %v1466 = vunpack.c.l.b16 %v37
  %v1467 = vunpack.c.l.b16 %v38
  %v1468 = vunpack.c.l.b16 %v40
  %v1469 = vunpack.c.l.b16 %v41
  %v1470 = vunpack.c.l.b16 %v43
  %v1471 = vunpack.c.l.b16 %v44
  %v1472 = vunpack.c.l.b16 %v46
  %v1473 = vunpack.c.l.b16 %v47
  %v1474 = vunpack.c.l.b16 %v49
  %v1475 = vunpack.c.l.b16 %v50
  %v1476 = vunpack.c.l.b16 %v52
  %v1477 = vunpack.c.l.b16 %v53
  %v1478 = vunpack.c.l.b16 %v55
  %v1479 = vunpack.c.l.b16 %v56
  %v1480 = vunpack.c.l.b16 %v58
  %v1481 = vunpack.c.l.b16 %v59
  %v1482 = vunpack.c.l.b16 %v61
  %v1483 = vunpack.c.l.b16 %v62
  %v1484 = vunpack.c.l.b16 %v64
  %v1485 = vunpack.c.l.b16 %v65
  %v1486 = vunpack.c.l.b16 %v67
  %v1487 = vunpack.c.l.b16 %v68
  %v1488 = vunpack.c.l.b16 %v70
  %v1489 = vunpack.c.l.b16 %v71
  %v1490 = vunpack.c.l.b16 %v79
  %v1491 = vunpack.c.l.b16 %v80
  %v1492 = vunpack.c.l.b16 %v82
  %v1493 = vunpack.c.l.b16 %v83
  %v1494 = vunpack.c.l.b16 %v85
  %v1495 = vunpack.c.l.b16 %v86
  %v1496 = vunpack.c.l.b16 %v88
  %v1497 = vunpack.c.l.b16 %v89
  %v1498 = vunpack.c.l.b16 %v91
  %v1499 = vunpack.c.l.b16 %v92
  %v1500 = vunpack.c.l.b16 %v94
  %v1501 = vunpack.c.l.b16 %v95
  %v1502 = vunpack.c.l.b16 %v97
  %v1503 = vunpack.c.l.b16 %v98
  %v1504 = vunpack.c.l.b16 %v100
  %v1505 = vunpack.c.l.b16 %v101
  %v1506 = vunpack.c.l.b16 %v103
  %v1507 = vunpack.c.l.b16 %v104
  %v1508 = vunpack.c.l.b16 %v106
  %v1509 = vunpack.c.l.b16 %v107
  %v1510 = vunpack.c.l.b16 %v109
  %v1511 = vunpack.c.l.b16 %v110
  %v1512 = vunpack.c.l.b16 %v112
  %v1513 = vunpack.c.l.b16 %v113
  %v1514 = vunpack.c.l.b16 %v115
  %v1515 = vunpack.c.l.b16 %v116
  %v1516 = vunpack.c.l.b16 %v118
  %v1517 = vunpack.c.l.b16 %v119
  %v1518 = vunpack.c.l.b16 %v121
  %v1519 = vunpack.c.l.b16 %v122
  %v1520 = vunpack.c.l.b16 %v124
  %v1521 = vunpack.c.l.b16 %v125
  %v1522 = vpack.c.b16 %v1459, %v1458
  %v1523 = vpack.c.b16 %v1461, %v1460
  %v1524 = vpack.c.b16 %v1463, %v1462
  %v1525 = vpack.c.b16 %v1465, %v1464
  %v1526 = vpack.c.b16 %v1467, %v1466
  %v1527 = vpack.c.b16 %v1469, %v1468
  %v1528 = vpack.c.b16 %v1471, %v1470
  %v1529 = vpack.c.b16 %v1473, %v1472
  %v1530 = vpack.c.b16 %v1475, %v1474
  %v1531 = vpack.c.b16 %v1477, %v1476
  %v1532 = vpack.c.b16 %v1479, %v1478
  %v1533 = vpack.c.b16 %v1481, %v1480
  %v1534 = vpack.c.b16 %v1483, %v1482
  %v1535 = vpack.c.b16 %v1485, %v1484
  %v1536 = vpack.c.b16 %v1487, %v1486
  %v1537 = vpack.c.b16 %v1489, %v1488
  %v1538 = vpack.c.b16 %v1491, %v1490
  %v1539 = vpack.c.b16 %v1493, %v1492
  %v1540 = vpack.c.b16 %v1495, %v1494
  %v1541 = vpack.c.b16 %v1497, %v1496
  %v1542 = vpack.c.b16 %v1499, %v1498
  %v1543 = vpack.c.b16 %v1501, %v1500
  %v1544 = vpack.c.b16 %v1503, %v1502
  %v1545 = vpack.c.b16 %v1505, %v1504
  %v1546 = vpack.c.b16 %v1507, %v1506
  %v1547 = vpack.c.b16 %v1509, %v1508
  %v1548 = vpack.c.b16 %v1511, %v1510
  %v1549 = vpack.c.b16 %v1513, %v1512
  %v1550 = vpack.c.b16 %v1515, %v1514
  %v1551 = vpack.c.b16 %v1517, %v1516
  %v1552 = vpack.c.b16 %v1519, %v1518
  %v1553 = vpack.c.b16 %v1521, %v1520
  %v1555 = vsel %vm1004, %v1522, 0
  %v1558 = vsel %vm1004, %v1523, 0
  %v1561 = vsel %vm1004, %v1524, 0
  %v1564 = vsel %vm1004, %v1525, 0
  %v1567 = vsel %vm1004, %v1526, 0
  %v1570 = vsel %vm1004, %v1527, 0
  %v1573 = vsel %vm1004, %v1528, 0
  %v1576 = vsel %vm1004, %v1529, 0
  %v1579 = vsel %vm1004, %v1530, 0
  %v1582 = vsel %vm1004, %v1531, 0
  %v1585 = vsel %vm1004, %v1532, 0
  %v1588 = vsel %vm1004, %v1533, 0
  %v1591 = vsel %vm1004, %v1534, 0
  %v1594 = vsel %vm1004, %v1535, 0
  %v1597 = vsel %vm1004, %v1536, 0
  %v1600 = vsel %vm1004, %v1537, 0
  %v1603 = vsel %vm1004, %v1538, 0
  %v1606 = vsel %vm1004, %v1539, 0
  %v1609 = vsel %vm1004, %v1540, 0
  %v1612 = vsel %vm1004, %v1541, 0
  %v1615 = vsel %vm1004, %v1542, 0
  %v1618 = vsel %vm1004, %v1543, 0
  %v1621 = vsel %vm1004, %v1544, 0
  %v1624 = vsel %vm1004, %v1545, 0
  %v1627 = vsel %vm1004, %v1546, 0
  %v1630 = vsel %vm1004, %v1547, 0
  %v1633 = vsel %vm1004, %v1548, 0
  %v1636 = vsel %vm1004, %v1549, 0
  %v1639 = vsel %vm1004, %v1550, 0
  %v1642 = vsel %vm1004, %v1551, 0
  %v1645 = vsel %vm1004, %v1552, 0
  %v1648 = vsel %vm1004, %v1553, 0
  %v1651 = vsel %vm1101, %v16, 0
  %1653 = vmatprep.subr.bf16.mxu0 0
  %1654 = vmatpush1.bf16.msra.mxu0 0
  %1655 = vmatprep.subr.bf16.mxu0 0
  %1656 = vmatpush1.bf16.msra.mxu0 0
  %1657 = vmatprep.subr.bf16.mxu0 0
  %1658 = vmatpush1.bf16.msra.mxu0 0
  %1659 = vmatprep.subr.bf16.mxu0 0
  %1660 = vmatpush1.bf16.msra.mxu0 0
  %1661 = vmatprep.subr.bf16.mxu0 0
  %1662 = vmatpush1.bf16.msra.mxu0 0
  %1663 = vmatprep.subr.bf16.mxu0 0
  %1664 = vmatpush1.bf16.msra.mxu0 0
  %1665 = vmatprep.subr.bf16.mxu0 0
  %1666 = vmatpush1.bf16.msra.mxu0 0
  %1667 = vmatprep.subr.bf16.mxu0 0
  %1668 = vmatpush1.bf16.msra.mxu0 %v1651
  %1669 = vmatprep.subr.bf16.mxu0 0
  %1670 = vmatpush2.bf16.msra.mxu0 0
  %1671 = vmatprep.subr.bf16.mxu0 0
  %1672 = vmatpush2.bf16.msra.mxu0 0
  %1673 = vmatprep.subr.bf16.mxu0 0
  %1674 = vmatpush2.bf16.msra.mxu0 0
  %1675 = vmatprep.subr.bf16.mxu0 0
  %1676 = vmatpush2.bf16.msra.mxu0 0
  %1677 = vmatprep.subr.bf16.mxu0 0
  %1678 = vmatpush2.bf16.msra.mxu0 0
  %1679 = vmatprep.subr.bf16.mxu0 0
  %1680 = vmatpush2.bf16.msra.mxu0 0
  %1681 = vmatprep.subr.bf16.mxu0 0
  %1682 = vmatpush2.bf16.msra.mxu0 0
  %1683 = vmatprep.subr.bf16.mxu0 0
  %1684 = vmatpush2.bf16.msra.mxu0 0
  %1685 = vmatprep.mubr.bf16.mxu0 0
  %1686 = vmatmul.mubr.bf16.gmra.mxu0 %v1555
  %v1687 = vpop.f32.mrf.mxu0
  %v1688 = vadd.f32 %v1140, %v1687
  %v1689 = vpop.f32.mrf.mxu0
  %v1690 = vpop.f32.mrf.mxu0
  %v1691 = vadd.f32 %v1143, %v1690
  %v1692 = vpop.f32.mrf.mxu0
  %1693 = vmatprep.mubr.bf16.mxu0 0
  %1694 = vmatmul.mubr.bf16.gmra.mxu0 %v1558
  %v1695 = vpop.f32.mrf.mxu0
  %v1696 = vadd.f32 %v1148, %v1695
  %v1697 = vpop.f32.mrf.mxu0
  %v1698 = vpop.f32.mrf.mxu0
  %v1699 = vadd.f32 %v1151, %v1698
  %v1700 = vpop.f32.mrf.mxu0
  %1701 = vmatprep.mubr.bf16.mxu0 0
  %1702 = vmatmul.mubr.bf16.gmra.mxu0 %v1561
  %v1703 = vpop.f32.mrf.mxu0
  %v1704 = vadd.f32 %v1156, %v1703
  %v1705 = vpop.f32.mrf.mxu0
  %v1706 = vpop.f32.mrf.mxu0
  %v1707 = vadd.f32 %v1159, %v1706
  %v1708 = vpop.f32.mrf.mxu0
  %1709 = vmatprep.mubr.bf16.mxu0 0
  %1710 = vmatmul.mubr.bf16.gmra.mxu0 %v1564
  %v1711 = vpop.f32.mrf.mxu0
  %v1712 = vadd.f32 %v1164, %v1711
  %v1713 = vpop.f32.mrf.mxu0
  %v1714 = vpop.f32.mrf.mxu0
  %v1715 = vadd.f32 %v1167, %v1714
  %v1716 = vpop.f32.mrf.mxu0
  %1717 = vmatprep.mubr.bf16.mxu0 0
  %1718 = vmatmul.mubr.bf16.gmra.mxu0 %v1567
  %v1719 = vpop.f32.mrf.mxu0
  %v1720 = vadd.f32 %v1172, %v1719
  %v1721 = vpop.f32.mrf.mxu0
  %v1722 = vpop.f32.mrf.mxu0
  %v1723 = vadd.f32 %v1175, %v1722
  %v1724 = vpop.f32.mrf.mxu0
  %1725 = vmatprep.mubr.bf16.mxu0 0
  %1726 = vmatmul.mubr.bf16.gmra.mxu0 %v1570
  %v1727 = vpop.f32.mrf.mxu0
  %v1728 = vadd.f32 %v1180, %v1727
  %v1729 = vpop.f32.mrf.mxu0
  %v1730 = vpop.f32.mrf.mxu0
  %v1731 = vadd.f32 %v1183, %v1730
  %v1732 = vpop.f32.mrf.mxu0
  %1733 = vmatprep.mubr.bf16.mxu0 0
  %1734 = vmatmul.mubr.bf16.gmra.mxu0 %v1573
  %v1735 = vpop.f32.mrf.mxu0
  %v1736 = vadd.f32 %v1188, %v1735
  %v1737 = vpop.f32.mrf.mxu0
  %v1738 = vpop.f32.mrf.mxu0
  %v1739 = vadd.f32 %v1191, %v1738
  %v1740 = vpop.f32.mrf.mxu0
  %1741 = vmatprep.mubr.bf16.mxu0 0
  %1742 = vmatmul.mubr.bf16.gmra.mxu0 %v1576
  %v1743 = vpop.f32.mrf.mxu0
  %v1744 = vadd.f32 %v1196, %v1743
  %v1745 = vpop.f32.mrf.mxu0
  %v1746 = vpop.f32.mrf.mxu0
  %v1747 = vadd.f32 %v1199, %v1746
  %v1748 = vpop.f32.mrf.mxu0
  %1749 = vmatprep.mubr.bf16.mxu0 0
  %1750 = vmatmul.mubr.bf16.gmra.mxu0 %v1579
  %v1751 = vpop.f32.mrf.mxu0
  %v1752 = vadd.f32 %v1204, %v1751
  %v1753 = vpop.f32.mrf.mxu0
  %v1754 = vpop.f32.mrf.mxu0
  %v1755 = vadd.f32 %v1207, %v1754
  %v1756 = vpop.f32.mrf.mxu0
  %1757 = vmatprep.mubr.bf16.mxu0 0
  %1758 = vmatmul.mubr.bf16.gmra.mxu0 %v1582
  %v1759 = vpop.f32.mrf.mxu0
  %v1760 = vadd.f32 %v1212, %v1759
  %v1761 = vpop.f32.mrf.mxu0
  %v1762 = vpop.f32.mrf.mxu0
  %v1763 = vadd.f32 %v1215, %v1762
  %v1764 = vpop.f32.mrf.mxu0
  %1765 = vmatprep.mubr.bf16.mxu0 0
  %1766 = vmatmul.mubr.bf16.gmra.mxu0 %v1585
  %v1767 = vpop.f32.mrf.mxu0
  %v1768 = vadd.f32 %v1220, %v1767
  %v1769 = vpop.f32.mrf.mxu0
  %v1770 = vpop.f32.mrf.mxu0
  %v1771 = vadd.f32 %v1223, %v1770
  %v1772 = vpop.f32.mrf.mxu0
  %1773 = vmatprep.mubr.bf16.mxu0 0
  %1774 = vmatmul.mubr.bf16.gmra.mxu0 %v1588
  %v1775 = vpop.f32.mrf.mxu0
  %v1776 = vadd.f32 %v1228, %v1775
  %v1777 = vpop.f32.mrf.mxu0
  %v1778 = vpop.f32.mrf.mxu0
  %v1779 = vadd.f32 %v1231, %v1778
  %v1780 = vpop.f32.mrf.mxu0
  %1781 = vmatprep.mubr.bf16.mxu0 0
  %1782 = vmatmul.mubr.bf16.gmra.mxu0 %v1591
  %v1783 = vpop.f32.mrf.mxu0
  %v1784 = vadd.f32 %v1236, %v1783
  %v1785 = vpop.f32.mrf.mxu0
  %v1786 = vpop.f32.mrf.mxu0
  %v1787 = vadd.f32 %v1239, %v1786
  %v1788 = vpop.f32.mrf.mxu0
  %1789 = vmatprep.mubr.bf16.mxu0 0
  %1790 = vmatmul.mubr.bf16.gmra.mxu0 %v1594
  %v1791 = vpop.f32.mrf.mxu0
  %v1792 = vadd.f32 %v1244, %v1791
  %v1793 = vpop.f32.mrf.mxu0
  %v1794 = vpop.f32.mrf.mxu0
  %v1795 = vadd.f32 %v1247, %v1794
  %v1796 = vpop.f32.mrf.mxu0
  %1797 = vmatprep.mubr.bf16.mxu0 0
  %1798 = vmatmul.mubr.bf16.gmra.mxu0 %v1597
  %v1799 = vpop.f32.mrf.mxu0
  %v1800 = vadd.f32 %v1252, %v1799
  %v1801 = vpop.f32.mrf.mxu0
  %v1802 = vpop.f32.mrf.mxu0
  %v1803 = vadd.f32 %v1255, %v1802
  %v1804 = vpop.f32.mrf.mxu0
  %1805 = vmatprep.mubr.bf16.mxu0 0
  %1806 = vmatmul.mubr.bf16.gmra.mxu0 %v1600
  %v1807 = vpop.f32.mrf.mxu0
  %v1808 = vadd.f32 %v1260, %v1807
  %v1809 = vpop.f32.mrf.mxu0
  %v1810 = vpop.f32.mrf.mxu0
  %v1811 = vadd.f32 %v1263, %v1810
  %v1812 = vpop.f32.mrf.mxu0
  %1813 = vmatprep.mubr.bf16.mxu0 0
  %1814 = vmatmul.mubr.bf16.gmra.mxu0 %v1603
  %v1815 = vpop.f32.mrf.mxu0
  %v1816 = vadd.f32 %v1268, %v1815
  %v1817 = vpop.f32.mrf.mxu0
  %v1818 = vpop.f32.mrf.mxu0
  %v1819 = vadd.f32 %v1271, %v1818
  %v1820 = vpop.f32.mrf.mxu0
  %1821 = vmatprep.mubr.bf16.mxu0 0
  %1822 = vmatmul.mubr.bf16.gmra.mxu0 %v1606
  %v1823 = vpop.f32.mrf.mxu0
  %v1824 = vadd.f32 %v1276, %v1823
  %v1825 = vpop.f32.mrf.mxu0
  %v1826 = vpop.f32.mrf.mxu0
  %v1827 = vadd.f32 %v1279, %v1826
  %v1828 = vpop.f32.mrf.mxu0
  %1829 = vmatprep.mubr.bf16.mxu0 0
  %1830 = vmatmul.mubr.bf16.gmra.mxu0 %v1609
  %v1831 = vpop.f32.mrf.mxu0
  %v1832 = vadd.f32 %v1284, %v1831
  %v1833 = vpop.f32.mrf.mxu0
  %v1834 = vpop.f32.mrf.mxu0
  %v1835 = vadd.f32 %v1287, %v1834
  %v1836 = vpop.f32.mrf.mxu0
  %1837 = vmatprep.mubr.bf16.mxu0 0
  %1838 = vmatmul.mubr.bf16.gmra.mxu0 %v1612
  %v1839 = vpop.f32.mrf.mxu0
  %v1840 = vadd.f32 %v1292, %v1839
  %v1841 = vpop.f32.mrf.mxu0
  %v1842 = vpop.f32.mrf.mxu0
  %v1843 = vadd.f32 %v1295, %v1842
  %v1844 = vpop.f32.mrf.mxu0
  %1845 = vmatprep.mubr.bf16.mxu0 0
  %1846 = vmatmul.mubr.bf16.gmra.mxu0 %v1615
  %v1847 = vpop.f32.mrf.mxu0
  %v1848 = vadd.f32 %v1300, %v1847
  %v1849 = vpop.f32.mrf.mxu0
  %v1850 = vpop.f32.mrf.mxu0
  %v1851 = vadd.f32 %v1303, %v1850
  %v1852 = vpop.f32.mrf.mxu0
  %1853 = vmatprep.mubr.bf16.mxu0 0
  %1854 = vmatmul.mubr.bf16.gmra.mxu0 %v1618
  %v1855 = vpop.f32.mrf.mxu0
  %v1856 = vadd.f32 %v1308, %v1855
  %v1857 = vpop.f32.mrf.mxu0
  %v1858 = vpop.f32.mrf.mxu0
  %v1859 = vadd.f32 %v1311, %v1858
  %v1860 = vpop.f32.mrf.mxu0
  %1861 = vmatprep.mubr.bf16.mxu0 0
  %1862 = vmatmul.mubr.bf16.gmra.mxu0 %v1621
  %v1863 = vpop.f32.mrf.mxu0
  %v1864 = vadd.f32 %v1316, %v1863
  %v1865 = vpop.f32.mrf.mxu0
  %v1866 = vpop.f32.mrf.mxu0
  %v1867 = vadd.f32 %v1319, %v1866
  %v1868 = vpop.f32.mrf.mxu0
  %1869 = vmatprep.mubr.bf16.mxu0 0
  %1870 = vmatmul.mubr.bf16.gmra.mxu0 %v1624
  %v1871 = vpop.f32.mrf.mxu0
  %v1872 = vadd.f32 %v1324, %v1871
  %v1873 = vpop.f32.mrf.mxu0
  %v1874 = vpop.f32.mrf.mxu0
  %v1875 = vadd.f32 %v1327, %v1874
  %v1876 = vpop.f32.mrf.mxu0
  %1877 = vmatprep.mubr.bf16.mxu0 0
  %1878 = vmatmul.mubr.bf16.gmra.mxu0 %v1627
  %v1879 = vpop.f32.mrf.mxu0
  %v1880 = vadd.f32 %v1332, %v1879
  %v1881 = vpop.f32.mrf.mxu0
  %v1882 = vpop.f32.mrf.mxu0
  %v1883 = vadd.f32 %v1335, %v1882
  %v1884 = vpop.f32.mrf.mxu0
  %1885 = vmatprep.mubr.bf16.mxu0 0
  %1886 = vmatmul.mubr.bf16.gmra.mxu0 %v1630
  %v1887 = vpop.f32.mrf.mxu0
  %v1888 = vadd.f32 %v1340, %v1887
  %v1889 = vpop.f32.mrf.mxu0
  %v1890 = vpop.f32.mrf.mxu0
  %v1891 = vadd.f32 %v1343, %v1890
  %v1892 = vpop.f32.mrf.mxu0
  %1893 = vmatprep.mubr.bf16.mxu0 0
  %1894 = vmatmul.mubr.bf16.gmra.mxu0 %v1633
  %v1895 = vpop.f32.mrf.mxu0
  %v1896 = vadd.f32 %v1348, %v1895
  %v1897 = vpop.f32.mrf.mxu0
  %v1898 = vpop.f32.mrf.mxu0
  %v1899 = vadd.f32 %v1351, %v1898
  %v1900 = vpop.f32.mrf.mxu0
  %1901 = vmatprep.mubr.bf16.mxu0 0
  %1902 = vmatmul.mubr.bf16.gmra.mxu0 %v1636
  %v1903 = vpop.f32.mrf.mxu0
  %v1904 = vadd.f32 %v1356, %v1903
  %v1905 = vpop.f32.mrf.mxu0
  %v1906 = vpop.f32.mrf.mxu0
  %v1907 = vadd.f32 %v1359, %v1906
  %v1908 = vpop.f32.mrf.mxu0
  %1909 = vmatprep.mubr.bf16.mxu0 0
  %1910 = vmatmul.mubr.bf16.gmra.mxu0 %v1639
  %v1911 = vpop.f32.mrf.mxu0
  %v1912 = vadd.f32 %v1364, %v1911
  %v1913 = vpop.f32.mrf.mxu0
  %v1914 = vpop.f32.mrf.mxu0
  %v1915 = vadd.f32 %v1367, %v1914
  %v1916 = vpop.f32.mrf.mxu0
  %1917 = vmatprep.mubr.bf16.mxu0 0
  %1918 = vmatmul.mubr.bf16.gmra.mxu0 %v1642
  %v1919 = vpop.f32.mrf.mxu0
  %v1920 = vadd.f32 %v1372, %v1919
  %v1921 = vpop.f32.mrf.mxu0
  %v1922 = vpop.f32.mrf.mxu0
  %v1923 = vadd.f32 %v1375, %v1922
  %v1924 = vpop.f32.mrf.mxu0
  %1925 = vmatprep.mubr.bf16.mxu0 0
  %1926 = vmatmul.mubr.bf16.gmra.mxu0 %v1645
  %v1927 = vpop.f32.mrf.mxu0
  %v1928 = vadd.f32 %v1380, %v1927
  %v1929 = vpop.f32.mrf.mxu0
  %v1930 = vpop.f32.mrf.mxu0
  %v1931 = vadd.f32 %v1383, %v1930
  %v1932 = vpop.f32.mrf.mxu0
  %1933 = vmatprep.mubr.bf16.mxu0 0
  %1934 = vmatmul.mubr.bf16.gmra.mxu0 %v1648
  %v1935 = vpop.f32.mrf.mxu0
  %v1936 = vadd.f32 %v1388, %v1935
  %v1937 = vpop.f32.mrf.mxu0
  %v1938 = vpop.f32.mrf.mxu0
  %v1939 = vadd.f32 %v1391, %v1938
  %v1940 = vpop.f32.mrf.mxu0
  %1941 = vdwg.mxu0
  %vm1974 = vcmask 1042432
  %vm1975 = vcmask 1046532
  %vm1976 = vmor %vm1974, %vm1975
  %v1977 = vrot.slane %v25, 5
  %v1978 = vrot.slane %v1977, 4
  %v1979 = vrot.slane %v26, 5
  %v1980 = vsel %vm1976, %v1978, %v1979
  %v1981 = vrot.slane %v1979, 4
  %v1982 = vrot.slane %v27, 5
  %v1983 = vsel %vm1976, %v1981, %v1982
  %v1984 = vrot.slane %v28, 5
  %v1985 = vrot.slane %v1984, 4
  %v1986 = vrot.slane %v29, 5
  %v1987 = vsel %vm1976, %v1985, %v1986
  %v1988 = vrot.slane %v1986, 4
  %v1989 = vrot.slane %v30, 5
  %v1990 = vsel %vm1976, %v1988, %v1989
  %v1991 = vrot.slane %v31, 5
  %v1992 = vrot.slane %v1991, 4
  %v1993 = vrot.slane %v32, 5
  %v1994 = vsel %vm1976, %v1992, %v1993
  %v1995 = vrot.slane %v1993, 4
  %v1996 = vrot.slane %v33, 5
  %v1997 = vsel %vm1976, %v1995, %v1996
  %v1998 = vrot.slane %v34, 5
  %v1999 = vrot.slane %v1998, 4
  %v2000 = vrot.slane %v35, 5
  %v2001 = vsel %vm1976, %v1999, %v2000
  %v2002 = vrot.slane %v2000, 4
  %v2003 = vrot.slane %v36, 5
  %v2004 = vsel %vm1976, %v2002, %v2003
  %v2005 = vrot.slane %v37, 5
  %v2006 = vrot.slane %v2005, 4
  %v2007 = vrot.slane %v38, 5
  %v2008 = vsel %vm1976, %v2006, %v2007
  %v2009 = vrot.slane %v2007, 4
  %v2010 = vrot.slane %v39, 5
  %v2011 = vsel %vm1976, %v2009, %v2010
  %v2012 = vrot.slane %v40, 5
  %v2013 = vrot.slane %v2012, 4
  %v2014 = vrot.slane %v41, 5
  %v2015 = vsel %vm1976, %v2013, %v2014
  %v2016 = vrot.slane %v2014, 4
  %v2017 = vrot.slane %v42, 5
  %v2018 = vsel %vm1976, %v2016, %v2017
  %v2019 = vrot.slane %v43, 5
  %v2020 = vrot.slane %v2019, 4
  %v2021 = vrot.slane %v44, 5
  %v2022 = vsel %vm1976, %v2020, %v2021
  %v2023 = vrot.slane %v2021, 4
  %v2024 = vrot.slane %v45, 5
  %v2025 = vsel %vm1976, %v2023, %v2024
  %v2026 = vrot.slane %v46, 5
  %v2027 = vrot.slane %v2026, 4
  %v2028 = vrot.slane %v47, 5
  %v2029 = vsel %vm1976, %v2027, %v2028
  %v2030 = vrot.slane %v2028, 4
  %v2031 = vrot.slane %v48, 5
  %v2032 = vsel %vm1976, %v2030, %v2031
  %v2033 = vrot.slane %v49, 5
  %v2034 = vrot.slane %v2033, 4
  %v2035 = vrot.slane %v50, 5
  %v2036 = vsel %vm1976, %v2034, %v2035
  %v2037 = vrot.slane %v2035, 4
  %v2038 = vrot.slane %v51, 5
  %v2039 = vsel %vm1976, %v2037, %v2038
  %v2040 = vrot.slane %v52, 5
  %v2041 = vrot.slane %v2040, 4
  %v2042 = vrot.slane %v53, 5
  %v2043 = vsel %vm1976, %v2041, %v2042
  %v2044 = vrot.slane %v2042, 4
  %v2045 = vrot.slane %v54, 5
  %v2046 = vsel %vm1976, %v2044, %v2045
  %v2047 = vrot.slane %v55, 5
  %v2048 = vrot.slane %v2047, 4
  %v2049 = vrot.slane %v56, 5
  %v2050 = vsel %vm1976, %v2048, %v2049
  %v2051 = vrot.slane %v2049, 4
  %v2052 = vrot.slane %v57, 5
  %v2053 = vsel %vm1976, %v2051, %v2052
  %v2054 = vrot.slane %v58, 5
  %v2055 = vrot.slane %v2054, 4
  %v2056 = vrot.slane %v59, 5
  %v2057 = vsel %vm1976, %v2055, %v2056
  %v2058 = vrot.slane %v2056, 4
  %v2059 = vrot.slane %v60, 5
  %v2060 = vsel %vm1976, %v2058, %v2059
  %v2061 = vrot.slane %v61, 5
  %v2062 = vrot.slane %v2061, 4
  %v2063 = vrot.slane %v62, 5
  %v2064 = vsel %vm1976, %v2062, %v2063
  %v2065 = vrot.slane %v2063, 4
  %v2066 = vrot.slane %v63, 5
  %v2067 = vsel %vm1976, %v2065, %v2066
  %v2068 = vrot.slane %v64, 5
  %v2069 = vrot.slane %v2068, 4
  %v2070 = vrot.slane %v65, 5
  %v2071 = vsel %vm1976, %v2069, %v2070
  %v2072 = vrot.slane %v2070, 4
  %v2073 = vrot.slane %v66, 5
  %v2074 = vsel %vm1976, %v2072, %v2073
  %v2075 = vrot.slane %v67, 5
  %v2076 = vrot.slane %v2075, 4
  %v2077 = vrot.slane %v68, 5
  %v2078 = vsel %vm1976, %v2076, %v2077
  %v2079 = vrot.slane %v2077, 4
  %v2080 = vrot.slane %v69, 5
  %v2081 = vsel %vm1976, %v2079, %v2080
  %v2082 = vrot.slane %v70, 5
  %v2083 = vrot.slane %v2082, 4
  %v2084 = vrot.slane %v71, 5
  %v2085 = vsel %vm1976, %v2083, %v2084
  %v2086 = vrot.slane %v2084, 4
  %v2087 = vrot.slane %v72, 5
  %v2088 = vsel %vm1976, %v2086, %v2087
  %v2089 = vrot.slane %v79, 5
  %v2090 = vrot.slane %v2089, 4
  %v2091 = vrot.slane %v80, 5
  %v2092 = vsel %vm1976, %v2090, %v2091
  %v2093 = vrot.slane %v2091, 4
  %v2094 = vrot.slane %v81, 5
  %v2095 = vsel %vm1976, %v2093, %v2094
  %v2096 = vrot.slane %v82, 5
  %v2097 = vrot.slane %v2096, 4
  %v2098 = vrot.slane %v83, 5
  %v2099 = vsel %vm1976, %v2097, %v2098
  %v2100 = vrot.slane %v2098, 4
  %v2101 = vrot.slane %v84, 5
  %v2102 = vsel %vm1976, %v2100, %v2101
  %v2103 = vrot.slane %v85, 5
  %v2104 = vrot.slane %v2103, 4
  %v2105 = vrot.slane %v86, 5
  %v2106 = vsel %vm1976, %v2104, %v2105
  %v2107 = vrot.slane %v2105, 4
  %v2108 = vrot.slane %v87, 5
  %v2109 = vsel %vm1976, %v2107, %v2108
  %v2110 = vrot.slane %v88, 5
  %v2111 = vrot.slane %v2110, 4
  %v2112 = vrot.slane %v89, 5
  %v2113 = vsel %vm1976, %v2111, %v2112
  %v2114 = vrot.slane %v2112, 4
  %v2115 = vrot.slane %v90, 5
  %v2116 = vsel %vm1976, %v2114, %v2115
  %v2117 = vrot.slane %v91, 5
  %v2118 = vrot.slane %v2117, 4
  %v2119 = vrot.slane %v92, 5
  %v2120 = vsel %vm1976, %v2118, %v2119
  %v2121 = vrot.slane %v2119, 4
  %v2122 = vrot.slane %v93, 5
  %v2123 = vsel %vm1976, %v2121, %v2122
  %v2124 = vrot.slane %v94, 5
  %v2125 = vrot.slane %v2124, 4
  %v2126 = vrot.slane %v95, 5
  %v2127 = vsel %vm1976, %v2125, %v2126
  %v2128 = vrot.slane %v2126, 4
  %v2129 = vrot.slane %v96, 5
  %v2130 = vsel %vm1976, %v2128, %v2129
  %v2131 = vrot.slane %v97, 5
  %v2132 = vrot.slane %v2131, 4
  %v2133 = vrot.slane %v98, 5
  %v2134 = vsel %vm1976, %v2132, %v2133
  %v2135 = vrot.slane %v2133, 4
  %v2136 = vrot.slane %v99, 5
  %v2137 = vsel %vm1976, %v2135, %v2136
  %v2138 = vrot.slane %v100, 5
  %v2139 = vrot.slane %v2138, 4
  %v2140 = vrot.slane %v101, 5
  %v2141 = vsel %vm1976, %v2139, %v2140
  %v2142 = vrot.slane %v2140, 4
  %v2143 = vrot.slane %v102, 5
  %v2144 = vsel %vm1976, %v2142, %v2143
  %v2145 = vrot.slane %v103, 5
  %v2146 = vrot.slane %v2145, 4
  %v2147 = vrot.slane %v104, 5
  %v2148 = vsel %vm1976, %v2146, %v2147
  %v2149 = vrot.slane %v2147, 4
  %v2150 = vrot.slane %v105, 5
  %v2151 = vsel %vm1976, %v2149, %v2150
  %v2152 = vrot.slane %v106, 5
  %v2153 = vrot.slane %v2152, 4
  %v2154 = vrot.slane %v107, 5
  %v2155 = vsel %vm1976, %v2153, %v2154
  %v2156 = vrot.slane %v2154, 4
  %v2157 = vrot.slane %v108, 5
  %v2158 = vsel %vm1976, %v2156, %v2157
  %v2159 = vrot.slane %v109, 5
  %v2160 = vrot.slane %v2159, 4
  %v2161 = vrot.slane %v110, 5
  %v2162 = vsel %vm1976, %v2160, %v2161
  %v2163 = vrot.slane %v2161, 4
  %v2164 = vrot.slane %v111, 5
  %v2165 = vsel %vm1976, %v2163, %v2164
  %v2166 = vrot.slane %v112, 5
  %v2167 = vrot.slane %v2166, 4
  %v2168 = vrot.slane %v113, 5
  %v2169 = vsel %vm1976, %v2167, %v2168
  %v2170 = vrot.slane %v2168, 4
  %v2171 = vrot.slane %v114, 5
  %v2172 = vsel %vm1976, %v2170, %v2171
  %v2173 = vrot.slane %v115, 5
  %v2174 = vrot.slane %v2173, 4
  %v2175 = vrot.slane %v116, 5
  %v2176 = vsel %vm1976, %v2174, %v2175
  %v2177 = vrot.slane %v2175, 4
  %v2178 = vrot.slane %v117, 5
  %v2179 = vsel %vm1976, %v2177, %v2178
  %v2180 = vrot.slane %v118, 5
  %v2181 = vrot.slane %v2180, 4
  %v2182 = vrot.slane %v119, 5
  %v2183 = vsel %vm1976, %v2181, %v2182
  %v2184 = vrot.slane %v2182, 4
  %v2185 = vrot.slane %v120, 5
  %v2186 = vsel %vm1976, %v2184, %v2185
  %v2187 = vrot.slane %v121, 5
  %v2188 = vrot.slane %v2187, 4
  %v2189 = vrot.slane %v122, 5
  %v2190 = vsel %vm1976, %v2188, %v2189
  %v2191 = vrot.slane %v2189, 4
  %v2192 = vrot.slane %v123, 5
  %v2193 = vsel %vm1976, %v2191, %v2192
  %v2194 = vrot.slane %v124, 5
  %v2195 = vrot.slane %v2194, 4
  %v2196 = vrot.slane %v125, 5
  %v2197 = vsel %vm1976, %v2195, %v2196
  %v2198 = vrot.slane %v2196, 4
  %v2199 = vrot.slane %v126, 5
  %v2200 = vsel %vm1976, %v2198, %v2199
  %v2201 = vunpack.c.l.b16 %v1980
  %v2202 = vunpack.c.l.b16 %v1983
  %v2203 = vunpack.c.l.b16 %v1987
  %v2204 = vunpack.c.l.b16 %v1990
  %v2205 = vunpack.c.l.b16 %v1994
  %v2206 = vunpack.c.l.b16 %v1997
  %v2207 = vunpack.c.l.b16 %v2001
  %v2208 = vunpack.c.l.b16 %v2004
  %v2209 = vunpack.c.l.b16 %v2008
  %v2210 = vunpack.c.l.b16 %v2011
  %v2211 = vunpack.c.l.b16 %v2015
  %v2212 = vunpack.c.l.b16 %v2018
  %v2213 = vunpack.c.l.b16 %v2022
  %v2214 = vunpack.c.l.b16 %v2025
  %v2215 = vunpack.c.l.b16 %v2029
  %v2216 = vunpack.c.l.b16 %v2032
  %v2217 = vunpack.c.l.b16 %v2036
  %v2218 = vunpack.c.l.b16 %v2039
  %v2219 = vunpack.c.l.b16 %v2043
  %v2220 = vunpack.c.l.b16 %v2046
  %v2221 = vunpack.c.l.b16 %v2050
  %v2222 = vunpack.c.l.b16 %v2053
  %v2223 = vunpack.c.l.b16 %v2057
  %v2224 = vunpack.c.l.b16 %v2060
  %v2225 = vunpack.c.l.b16 %v2064
  %v2226 = vunpack.c.l.b16 %v2067
  %v2227 = vunpack.c.l.b16 %v2071
  %v2228 = vunpack.c.l.b16 %v2074
  %v2229 = vunpack.c.l.b16 %v2078
  %v2230 = vunpack.c.l.b16 %v2081
  %v2231 = vunpack.c.l.b16 %v2085
  %v2232 = vunpack.c.l.b16 %v2088
  %v2233 = vunpack.c.l.b16 %v2092
  %v2234 = vunpack.c.l.b16 %v2095
  %v2235 = vunpack.c.l.b16 %v2099
  %v2236 = vunpack.c.l.b16 %v2102
  %v2237 = vunpack.c.l.b16 %v2106
  %v2238 = vunpack.c.l.b16 %v2109
  %v2239 = vunpack.c.l.b16 %v2113
  %v2240 = vunpack.c.l.b16 %v2116
  %v2241 = vunpack.c.l.b16 %v2120
  %v2242 = vunpack.c.l.b16 %v2123
  %v2243 = vunpack.c.l.b16 %v2127
  %v2244 = vunpack.c.l.b16 %v2130
  %v2245 = vunpack.c.l.b16 %v2134
  %v2246 = vunpack.c.l.b16 %v2137
  %v2247 = vunpack.c.l.b16 %v2141
  %v2248 = vunpack.c.l.b16 %v2144
  %v2249 = vunpack.c.l.b16 %v2148
  %v2250 = vunpack.c.l.b16 %v2151
  %v2251 = vunpack.c.l.b16 %v2155
  %v2252 = vunpack.c.l.b16 %v2158
  %v2253 = vunpack.c.l.b16 %v2162
  %v2254 = vunpack.c.l.b16 %v2165
  %v2255 = vunpack.c.l.b16 %v2169
  %v2256 = vunpack.c.l.b16 %v2172
  %v2257 = vunpack.c.l.b16 %v2176
  %v2258 = vunpack.c.l.b16 %v2179
  %v2259 = vunpack.c.l.b16 %v2183
  %v2260 = vunpack.c.l.b16 %v2186
  %v2261 = vunpack.c.l.b16 %v2190
  %v2262 = vunpack.c.l.b16 %v2193
  %v2263 = vunpack.c.l.b16 %v2197
  %v2264 = vunpack.c.l.b16 %v2200
  %v2265 = vpack.c.b16 %v2202, %v2201
  %v2266 = vpack.c.b16 %v2204, %v2203
  %v2267 = vpack.c.b16 %v2206, %v2205
  %v2268 = vpack.c.b16 %v2208, %v2207
  %v2269 = vpack.c.b16 %v2210, %v2209
  %v2270 = vpack.c.b16 %v2212, %v2211
  %v2271 = vpack.c.b16 %v2214, %v2213
  %v2272 = vpack.c.b16 %v2216, %v2215
  %v2273 = vpack.c.b16 %v2218, %v2217
  %v2274 = vpack.c.b16 %v2220, %v2219
  %v2275 = vpack.c.b16 %v2222, %v2221
  %v2276 = vpack.c.b16 %v2224, %v2223
  %v2277 = vpack.c.b16 %v2226, %v2225
  %v2278 = vpack.c.b16 %v2228, %v2227
  %v2279 = vpack.c.b16 %v2230, %v2229
  %v2280 = vpack.c.b16 %v2232, %v2231
  %v2281 = vpack.c.b16 %v2234, %v2233
  %v2282 = vpack.c.b16 %v2236, %v2235
  %v2283 = vpack.c.b16 %v2238, %v2237
  %v2284 = vpack.c.b16 %v2240, %v2239
  %v2285 = vpack.c.b16 %v2242, %v2241
  %v2286 = vpack.c.b16 %v2244, %v2243
  %v2287 = vpack.c.b16 %v2246, %v2245
  %v2288 = vpack.c.b16 %v2248, %v2247
  %v2289 = vpack.c.b16 %v2250, %v2249
  %v2290 = vpack.c.b16 %v2252, %v2251
  %v2291 = vpack.c.b16 %v2254, %v2253
  %v2292 = vpack.c.b16 %v2256, %v2255
  %v2293 = vpack.c.b16 %v2258, %v2257
  %v2294 = vpack.c.b16 %v2260, %v2259
  %v2295 = vpack.c.b16 %v2262, %v2261
  %v2296 = vpack.c.b16 %v2264, %v2263
  %v2298 = vsel %vm1004, %v2265, 0
  %v2301 = vsel %vm1004, %v2266, 0
  %v2304 = vsel %vm1004, %v2267, 0
  %v2307 = vsel %vm1004, %v2268, 0
  %v2310 = vsel %vm1004, %v2269, 0
  %v2313 = vsel %vm1004, %v2270, 0
  %v2316 = vsel %vm1004, %v2271, 0
  %v2319 = vsel %vm1004, %v2272, 0
  %v2322 = vsel %vm1004, %v2273, 0
  %v2325 = vsel %vm1004, %v2274, 0
  %v2328 = vsel %vm1004, %v2275, 0
  %v2331 = vsel %vm1004, %v2276, 0
  %v2334 = vsel %vm1004, %v2277, 0
  %v2337 = vsel %vm1004, %v2278, 0
  %v2340 = vsel %vm1004, %v2279, 0
  %v2343 = vsel %vm1004, %v2280, 0
  %v2346 = vsel %vm1004, %v2281, 0
  %v2349 = vsel %vm1004, %v2282, 0
  %v2352 = vsel %vm1004, %v2283, 0
  %v2355 = vsel %vm1004, %v2284, 0
  %v2358 = vsel %vm1004, %v2285, 0
  %v2361 = vsel %vm1004, %v2286, 0
  %v2364 = vsel %vm1004, %v2287, 0
  %v2367 = vsel %vm1004, %v2288, 0
  %v2370 = vsel %vm1004, %v2289, 0
  %v2373 = vsel %vm1004, %v2290, 0
  %v2376 = vsel %vm1004, %v2291, 0
  %v2379 = vsel %vm1004, %v2292, 0
  %v2382 = vsel %vm1004, %v2293, 0
  %v2385 = vsel %vm1004, %v2294, 0
  %v2388 = vsel %vm1004, %v2295, 0
  %v2391 = vsel %vm1004, %v2296, 0
  %v2394 = vsel %vm1101, %v18, 0
  %2396 = vmatprep.subr.bf16.mxu0 0
  %2397 = vmatpush1.bf16.msra.mxu0 0
  %2398 = vmatprep.subr.bf16.mxu0 0
  %2399 = vmatpush1.bf16.msra.mxu0 0
  %2400 = vmatprep.subr.bf16.mxu0 0
  %2401 = vmatpush1.bf16.msra.mxu0 0
  %2402 = vmatprep.subr.bf16.mxu0 0
  %2403 = vmatpush1.bf16.msra.mxu0 0
  %2404 = vmatprep.subr.bf16.mxu0 0
  %2405 = vmatpush1.bf16.msra.mxu0 0
  %2406 = vmatprep.subr.bf16.mxu0 0
  %2407 = vmatpush1.bf16.msra.mxu0 0
  %2408 = vmatprep.subr.bf16.mxu0 0
  %2409 = vmatpush1.bf16.msra.mxu0 0
  %2410 = vmatprep.subr.bf16.mxu0 0
  %2411 = vmatpush1.bf16.msra.mxu0 %v2394
  %2412 = vmatprep.subr.bf16.mxu0 0
  %2413 = vmatpush2.bf16.msra.mxu0 0
  %2414 = vmatprep.subr.bf16.mxu0 0
  %2415 = vmatpush2.bf16.msra.mxu0 0
  %2416 = vmatprep.subr.bf16.mxu0 0
  %2417 = vmatpush2.bf16.msra.mxu0 0
  %2418 = vmatprep.subr.bf16.mxu0 0
  %2419 = vmatpush2.bf16.msra.mxu0 0
  %2420 = vmatprep.subr.bf16.mxu0 0
  %2421 = vmatpush2.bf16.msra.mxu0 0
  %2422 = vmatprep.subr.bf16.mxu0 0
  %2423 = vmatpush2.bf16.msra.mxu0 0
  %2424 = vmatprep.subr.bf16.mxu0 0
  %2425 = vmatpush2.bf16.msra.mxu0 0
  %2426 = vmatprep.subr.bf16.mxu0 0
  %2427 = vmatpush2.bf16.msra.mxu0 0
  %2428 = vmatprep.mubr.bf16.mxu0 0
  %2429 = vmatmul.mubr.bf16.gmra.mxu0 %v2298
  %v2430 = vpop.f32.mrf.mxu0
  %v2431 = vadd.f32 0.0, %v2430
  %v2432 = vpop.f32.mrf.mxu0
  %v2433 = vpop.f32.mrf.mxu0
  %v2434 = vadd.f32 0.0, %v2433
  %v2435 = vpop.f32.mrf.mxu0
  %2436 = vmatprep.mubr.bf16.mxu0 0
  %2437 = vmatmul.mubr.bf16.gmra.mxu0 %v2301
  %v2438 = vpop.f32.mrf.mxu0
  %v2439 = vadd.f32 0.0, %v2438
  %v2440 = vpop.f32.mrf.mxu0
  %v2441 = vpop.f32.mrf.mxu0
  %v2442 = vadd.f32 0.0, %v2441
  %v2443 = vpop.f32.mrf.mxu0
  %2444 = vmatprep.mubr.bf16.mxu0 0
  %2445 = vmatmul.mubr.bf16.gmra.mxu0 %v2304
  %v2446 = vpop.f32.mrf.mxu0
  %v2447 = vadd.f32 0.0, %v2446
  %v2448 = vpop.f32.mrf.mxu0
  %v2449 = vpop.f32.mrf.mxu0
  %v2450 = vadd.f32 0.0, %v2449
  %v2451 = vpop.f32.mrf.mxu0
  %2452 = vmatprep.mubr.bf16.mxu0 0
  %2453 = vmatmul.mubr.bf16.gmra.mxu0 %v2307
  %v2454 = vpop.f32.mrf.mxu0
  %v2455 = vadd.f32 0.0, %v2454
  %v2456 = vpop.f32.mrf.mxu0
  %v2457 = vpop.f32.mrf.mxu0
  %v2458 = vadd.f32 0.0, %v2457
  %v2459 = vpop.f32.mrf.mxu0
  %2460 = vmatprep.mubr.bf16.mxu0 0
  %2461 = vmatmul.mubr.bf16.gmra.mxu0 %v2310
  %v2462 = vpop.f32.mrf.mxu0
  %v2463 = vadd.f32 0.0, %v2462
  %v2464 = vpop.f32.mrf.mxu0
  %v2465 = vpop.f32.mrf.mxu0
  %v2466 = vadd.f32 0.0, %v2465
  %v2467 = vpop.f32.mrf.mxu0
  %2468 = vmatprep.mubr.bf16.mxu0 0
  %2469 = vmatmul.mubr.bf16.gmra.mxu0 %v2313
  %v2470 = vpop.f32.mrf.mxu0
  %v2471 = vadd.f32 0.0, %v2470
  %v2472 = vpop.f32.mrf.mxu0
  %v2473 = vpop.f32.mrf.mxu0
  %v2474 = vadd.f32 0.0, %v2473
  %v2475 = vpop.f32.mrf.mxu0
  %2476 = vmatprep.mubr.bf16.mxu0 0
  %2477 = vmatmul.mubr.bf16.gmra.mxu0 %v2316
  %v2478 = vpop.f32.mrf.mxu0
  %v2479 = vadd.f32 0.0, %v2478
  %v2480 = vpop.f32.mrf.mxu0
  %v2481 = vpop.f32.mrf.mxu0
  %v2482 = vadd.f32 0.0, %v2481
  %v2483 = vpop.f32.mrf.mxu0
  %2484 = vmatprep.mubr.bf16.mxu0 0
  %2485 = vmatmul.mubr.bf16.gmra.mxu0 %v2319
  %v2486 = vpop.f32.mrf.mxu0
  %v2487 = vadd.f32 0.0, %v2486
  %v2488 = vpop.f32.mrf.mxu0
  %v2489 = vpop.f32.mrf.mxu0
  %v2490 = vadd.f32 0.0, %v2489
  %v2491 = vpop.f32.mrf.mxu0
  %2492 = vmatprep.mubr.bf16.mxu0 0
  %2493 = vmatmul.mubr.bf16.gmra.mxu0 %v2322
  %v2494 = vpop.f32.mrf.mxu0
  %v2495 = vadd.f32 0.0, %v2494
  %v2496 = vpop.f32.mrf.mxu0
  %v2497 = vpop.f32.mrf.mxu0
  %v2498 = vadd.f32 0.0, %v2497
  %v2499 = vpop.f32.mrf.mxu0
  %2500 = vmatprep.mubr.bf16.mxu0 0
  %2501 = vmatmul.mubr.bf16.gmra.mxu0 %v2325
  %v2502 = vpop.f32.mrf.mxu0
  %v2503 = vadd.f32 0.0, %v2502
  %v2504 = vpop.f32.mrf.mxu0
  %v2505 = vpop.f32.mrf.mxu0
  %v2506 = vadd.f32 0.0, %v2505
  %v2507 = vpop.f32.mrf.mxu0
  %2508 = vmatprep.mubr.bf16.mxu0 0
  %2509 = vmatmul.mubr.bf16.gmra.mxu0 %v2328
  %v2510 = vpop.f32.mrf.mxu0
  %v2511 = vadd.f32 0.0, %v2510
  %v2512 = vpop.f32.mrf.mxu0
  %v2513 = vpop.f32.mrf.mxu0
  %v2514 = vadd.f32 0.0, %v2513
  %v2515 = vpop.f32.mrf.mxu0
  %2516 = vmatprep.mubr.bf16.mxu0 0
  %2517 = vmatmul.mubr.bf16.gmra.mxu0 %v2331
  %v2518 = vpop.f32.mrf.mxu0
  %v2519 = vadd.f32 0.0, %v2518
  %v2520 = vpop.f32.mrf.mxu0
  %v2521 = vpop.f32.mrf.mxu0
  %v2522 = vadd.f32 0.0, %v2521
  %v2523 = vpop.f32.mrf.mxu0
  %2524 = vmatprep.mubr.bf16.mxu0 0
  %2525 = vmatmul.mubr.bf16.gmra.mxu0 %v2334
  %v2526 = vpop.f32.mrf.mxu0
  %v2527 = vadd.f32 0.0, %v2526
  %v2528 = vpop.f32.mrf.mxu0
  %v2529 = vpop.f32.mrf.mxu0
  %v2530 = vadd.f32 0.0, %v2529
  %v2531 = vpop.f32.mrf.mxu0
  %2532 = vmatprep.mubr.bf16.mxu0 0
  %2533 = vmatmul.mubr.bf16.gmra.mxu0 %v2337
  %v2534 = vpop.f32.mrf.mxu0
  %v2535 = vadd.f32 0.0, %v2534
  %v2536 = vpop.f32.mrf.mxu0
  %v2537 = vpop.f32.mrf.mxu0
  %v2538 = vadd.f32 0.0, %v2537
  %v2539 = vpop.f32.mrf.mxu0
  %2540 = vmatprep.mubr.bf16.mxu0 0
  %2541 = vmatmul.mubr.bf16.gmra.mxu0 %v2340
  %v2542 = vpop.f32.mrf.mxu0
  %v2543 = vadd.f32 0.0, %v2542
  %v2544 = vpop.f32.mrf.mxu0
  %v2545 = vpop.f32.mrf.mxu0
  %v2546 = vadd.f32 0.0, %v2545
  %v2547 = vpop.f32.mrf.mxu0
  %2548 = vmatprep.mubr.bf16.mxu0 0
  %2549 = vmatmul.mubr.bf16.gmra.mxu0 %v2343
  %v2550 = vpop.f32.mrf.mxu0
  %v2551 = vadd.f32 0.0, %v2550
  %v2552 = vpop.f32.mrf.mxu0
  %v2553 = vpop.f32.mrf.mxu0
  %v2554 = vadd.f32 0.0, %v2553
  %v2555 = vpop.f32.mrf.mxu0
  %2556 = vmatprep.mubr.bf16.mxu0 0
  %2557 = vmatmul.mubr.bf16.gmra.mxu0 %v2346
  %v2558 = vpop.f32.mrf.mxu0
  %v2559 = vadd.f32 0.0, %v2558
  %v2560 = vpop.f32.mrf.mxu0
  %v2561 = vpop.f32.mrf.mxu0
  %v2562 = vadd.f32 0.0, %v2561
  %v2563 = vpop.f32.mrf.mxu0
  %2564 = vmatprep.mubr.bf16.mxu0 0
  %2565 = vmatmul.mubr.bf16.gmra.mxu0 %v2349
  %v2566 = vpop.f32.mrf.mxu0
  %v2567 = vadd.f32 0.0, %v2566
  %v2568 = vpop.f32.mrf.mxu0
  %v2569 = vpop.f32.mrf.mxu0
  %v2570 = vadd.f32 0.0, %v2569
  %v2571 = vpop.f32.mrf.mxu0
  %2572 = vmatprep.mubr.bf16.mxu0 0
  %2573 = vmatmul.mubr.bf16.gmra.mxu0 %v2352
  %v2574 = vpop.f32.mrf.mxu0
  %v2575 = vadd.f32 0.0, %v2574
  %v2576 = vpop.f32.mrf.mxu0
  %v2577 = vpop.f32.mrf.mxu0
  %v2578 = vadd.f32 0.0, %v2577
  %v2579 = vpop.f32.mrf.mxu0
  %2580 = vmatprep.mubr.bf16.mxu0 0
  %2581 = vmatmul.mubr.bf16.gmra.mxu0 %v2355
  %v2582 = vpop.f32.mrf.mxu0
  %v2583 = vadd.f32 0.0, %v2582
  %v2584 = vpop.f32.mrf.mxu0
  %v2585 = vpop.f32.mrf.mxu0
  %v2586 = vadd.f32 0.0, %v2585
  %v2587 = vpop.f32.mrf.mxu0
  %2588 = vmatprep.mubr.bf16.mxu0 0
  %2589 = vmatmul.mubr.bf16.gmra.mxu0 %v2358
  %v2590 = vpop.f32.mrf.mxu0
  %v2591 = vadd.f32 0.0, %v2590
  %v2592 = vpop.f32.mrf.mxu0
  %v2593 = vpop.f32.mrf.mxu0
  %v2594 = vadd.f32 0.0, %v2593
  %v2595 = vpop.f32.mrf.mxu0
  %2596 = vmatprep.mubr.bf16.mxu0 0
  %2597 = vmatmul.mubr.bf16.gmra.mxu0 %v2361
  %v2598 = vpop.f32.mrf.mxu0
  %v2599 = vadd.f32 0.0, %v2598
  %v2600 = vpop.f32.mrf.mxu0
  %v2601 = vpop.f32.mrf.mxu0
  %v2602 = vadd.f32 0.0, %v2601
  %v2603 = vpop.f32.mrf.mxu0
  %2604 = vmatprep.mubr.bf16.mxu0 0
  %2605 = vmatmul.mubr.bf16.gmra.mxu0 %v2364
  %v2606 = vpop.f32.mrf.mxu0
  %v2607 = vadd.f32 0.0, %v2606
  %v2608 = vpop.f32.mrf.mxu0
  %v2609 = vpop.f32.mrf.mxu0
  %v2610 = vadd.f32 0.0, %v2609
  %v2611 = vpop.f32.mrf.mxu0
  %2612 = vmatprep.mubr.bf16.mxu0 0
  %2613 = vmatmul.mubr.bf16.gmra.mxu0 %v2367
  %v2614 = vpop.f32.mrf.mxu0
  %v2615 = vadd.f32 0.0, %v2614
  %v2616 = vpop.f32.mrf.mxu0
  %v2617 = vpop.f32.mrf.mxu0
  %v2618 = vadd.f32 0.0, %v2617
  %v2619 = vpop.f32.mrf.mxu0
  %2620 = vmatprep.mubr.bf16.mxu0 0
  %2621 = vmatmul.mubr.bf16.gmra.mxu0 %v2370
  %v2622 = vpop.f32.mrf.mxu0
  %v2623 = vadd.f32 0.0, %v2622
  %v2624 = vpop.f32.mrf.mxu0
  %v2625 = vpop.f32.mrf.mxu0
  %v2626 = vadd.f32 0.0, %v2625
  %v2627 = vpop.f32.mrf.mxu0
  %2628 = vmatprep.mubr.bf16.mxu0 0
  %2629 = vmatmul.mubr.bf16.gmra.mxu0 %v2373
  %v2630 = vpop.f32.mrf.mxu0
  %v2631 = vadd.f32 0.0, %v2630
  %v2632 = vpop.f32.mrf.mxu0
  %v2633 = vpop.f32.mrf.mxu0
  %v2634 = vadd.f32 0.0, %v2633
  %v2635 = vpop.f32.mrf.mxu0
  %2636 = vmatprep.mubr.bf16.mxu0 0
  %2637 = vmatmul.mubr.bf16.gmra.mxu0 %v2376
  %v2638 = vpop.f32.mrf.mxu0
  %v2639 = vadd.f32 0.0, %v2638
  %v2640 = vpop.f32.mrf.mxu0
  %v2641 = vpop.f32.mrf.mxu0
  %v2642 = vadd.f32 0.0, %v2641
  %v2643 = vpop.f32.mrf.mxu0
  %2644 = vmatprep.mubr.bf16.mxu0 0
  %2645 = vmatmul.mubr.bf16.gmra.mxu0 %v2379
  %v2646 = vpop.f32.mrf.mxu0
  %v2647 = vadd.f32 0.0, %v2646
  %v2648 = vpop.f32.mrf.mxu0
  %v2649 = vpop.f32.mrf.mxu0
  %v2650 = vadd.f32 0.0, %v2649
  %v2651 = vpop.f32.mrf.mxu0
  %2652 = vmatprep.mubr.bf16.mxu0 0
  %2653 = vmatmul.mubr.bf16.gmra.mxu0 %v2382
  %v2654 = vpop.f32.mrf.mxu0
  %v2655 = vadd.f32 0.0, %v2654
  %v2656 = vpop.f32.mrf.mxu0
  %v2657 = vpop.f32.mrf.mxu0
  %v2658 = vadd.f32 0.0, %v2657
  %v2659 = vpop.f32.mrf.mxu0
  %2660 = vmatprep.mubr.bf16.mxu0 0
  %2661 = vmatmul.mubr.bf16.gmra.mxu0 %v2385
  %v2662 = vpop.f32.mrf.mxu0
  %v2663 = vadd.f32 0.0, %v2662
  %v2664 = vpop.f32.mrf.mxu0
  %v2665 = vpop.f32.mrf.mxu0
  %v2666 = vadd.f32 0.0, %v2665
  %v2667 = vpop.f32.mrf.mxu0
  %2668 = vmatprep.mubr.bf16.mxu0 0
  %2669 = vmatmul.mubr.bf16.gmra.mxu0 %v2388
  %v2670 = vpop.f32.mrf.mxu0
  %v2671 = vadd.f32 0.0, %v2670
  %v2672 = vpop.f32.mrf.mxu0
  %v2673 = vpop.f32.mrf.mxu0
  %v2674 = vadd.f32 0.0, %v2673
  %v2675 = vpop.f32.mrf.mxu0
  %2676 = vmatprep.mubr.bf16.mxu0 0
  %2677 = vmatmul.mubr.bf16.gmra.mxu0 %v2391
  %v2678 = vpop.f32.mrf.mxu0
  %v2679 = vadd.f32 0.0, %v2678
  %v2680 = vpop.f32.mrf.mxu0
  %v2681 = vpop.f32.mrf.mxu0
  %v2682 = vadd.f32 0.0, %v2681
  %v2683 = vpop.f32.mrf.mxu0
  %2684 = vdwg.mxu0
  %v2685 = vadd.f32 %v1688, %v2431
  %v2686 = vadd.f32 %v1691, %v2434
  %v2687 = vadd.f32 %v1696, %v2439
  %v2688 = vadd.f32 %v1699, %v2442
  %v2689 = vadd.f32 %v1704, %v2447
  %v2690 = vadd.f32 %v1707, %v2450
  %v2691 = vadd.f32 %v1712, %v2455
  %v2692 = vadd.f32 %v1715, %v2458
  %v2693 = vadd.f32 %v1720, %v2463
  %v2694 = vadd.f32 %v1723, %v2466
  %v2695 = vadd.f32 %v1728, %v2471
  %v2696 = vadd.f32 %v1731, %v2474
  %v2697 = vadd.f32 %v1736, %v2479
  %v2698 = vadd.f32 %v1739, %v2482
  %v2699 = vadd.f32 %v1744, %v2487
  %v2700 = vadd.f32 %v1747, %v2490
  %v2701 = vadd.f32 %v1752, %v2495
  %v2702 = vadd.f32 %v1755, %v2498
  %v2703 = vadd.f32 %v1760, %v2503
  %v2704 = vadd.f32 %v1763, %v2506
  %v2705 = vadd.f32 %v1768, %v2511
  %v2706 = vadd.f32 %v1771, %v2514
  %v2707 = vadd.f32 %v1776, %v2519
  %v2708 = vadd.f32 %v1779, %v2522
  %v2709 = vadd.f32 %v1784, %v2527
  %v2710 = vadd.f32 %v1787, %v2530
  %v2711 = vadd.f32 %v1792, %v2535
  %v2712 = vadd.f32 %v1795, %v2538
  %v2713 = vadd.f32 %v1800, %v2543
  %v2714 = vadd.f32 %v1803, %v2546
  %v2715 = vadd.f32 %v1808, %v2551
  %v2716 = vadd.f32 %v1811, %v2554
  %v2717 = vadd.f32 %v1816, %v2559
  %v2718 = vadd.f32 %v1819, %v2562
  %v2719 = vadd.f32 %v1824, %v2567
  %v2720 = vadd.f32 %v1827, %v2570
  %v2721 = vadd.f32 %v1832, %v2575
  %v2722 = vadd.f32 %v1835, %v2578
  %v2723 = vadd.f32 %v1840, %v2583
  %v2724 = vadd.f32 %v1843, %v2586
  %v2725 = vadd.f32 %v1848, %v2591
  %v2726 = vadd.f32 %v1851, %v2594
  %v2727 = vadd.f32 %v1856, %v2599
  %v2728 = vadd.f32 %v1859, %v2602
  %v2729 = vadd.f32 %v1864, %v2607
  %v2730 = vadd.f32 %v1867, %v2610
  %v2731 = vadd.f32 %v1872, %v2615
  %v2732 = vadd.f32 %v1875, %v2618
  %v2733 = vadd.f32 %v1880, %v2623
  %v2734 = vadd.f32 %v1883, %v2626
  %v2735 = vadd.f32 %v1888, %v2631
  %v2736 = vadd.f32 %v1891, %v2634
  %v2737 = vadd.f32 %v1896, %v2639
  %v2738 = vadd.f32 %v1899, %v2642
  %v2739 = vadd.f32 %v1904, %v2647
  %v2740 = vadd.f32 %v1907, %v2650
  %v2741 = vadd.f32 %v1912, %v2655
  %v2742 = vadd.f32 %v1915, %v2658
  %v2743 = vadd.f32 %v1920, %v2663
  %v2744 = vadd.f32 %v1923, %v2666
  %v2745 = vadd.f32 %v1928, %v2671
  %v2746 = vadd.f32 %v1931, %v2674
  %v2747 = vadd.f32 %v1936, %v2679
  %v2748 = vadd.f32 %v1939, %v2682
  %v2753 = vunpack.c.l.b16 %v73
  %v2754 = vunpack.c.l.b16 %v74
  %v2755 = vunpack.c.l.b16 %v127
  %v2756 = vunpack.c.l.b16 %v128
  %v2757 = vpack.c.b16 %v2754, %v2753
  %v2758 = vpack.c.b16 %v2756, %v2755
  %v2760 = vunpack.c.l.b16 %v19
  %v2761 = vpack.c.b16 %v2760, %v2760
  %v2762 = vrot.slane %v2761, 2
  %v2764 = vsel %vm1004, %v2757, 0
  %v2767 = vsel %vm1004, %v2758, 0
  %v2770 = vsel %vm1101, %v2762, 0
  %2772 = vmatprep.subr.bf16.mxu0 0
  %2773 = vmatpush1.bf16.msra.mxu0 0
  %2774 = vmatprep.subr.bf16.mxu0 0
  %2775 = vmatpush1.bf16.msra.mxu0 0
  %2776 = vmatprep.subr.bf16.mxu0 0
  %2777 = vmatpush1.bf16.msra.mxu0 0
  %2778 = vmatprep.subr.bf16.mxu0 0
  %2779 = vmatpush1.bf16.msra.mxu0 0
  %2780 = vmatprep.subr.bf16.mxu0 0
  %2781 = vmatpush1.bf16.msra.mxu0 0
  %2782 = vmatprep.subr.bf16.mxu0 0
  %2783 = vmatpush1.bf16.msra.mxu0 0
  %2784 = vmatprep.subr.bf16.mxu0 0
  %2785 = vmatpush1.bf16.msra.mxu0 0
  %2786 = vmatprep.subr.bf16.mxu0 0
  %2787 = vmatpush1.bf16.msra.mxu0 %v2770
  %2788 = vmatprep.subr.bf16.mxu0 0
  %2789 = vmatpush2.bf16.msra.mxu0 0
  %2790 = vmatprep.subr.bf16.mxu0 0
  %2791 = vmatpush2.bf16.msra.mxu0 0
  %2792 = vmatprep.subr.bf16.mxu0 0
  %2793 = vmatpush2.bf16.msra.mxu0 0
  %2794 = vmatprep.subr.bf16.mxu0 0
  %2795 = vmatpush2.bf16.msra.mxu0 0
  %2796 = vmatprep.subr.bf16.mxu0 0
  %2797 = vmatpush2.bf16.msra.mxu0 0
  %2798 = vmatprep.subr.bf16.mxu0 0
  %2799 = vmatpush2.bf16.msra.mxu0 0
  %2800 = vmatprep.subr.bf16.mxu0 0
  %2801 = vmatpush2.bf16.msra.mxu0 0
  %2802 = vmatprep.subr.bf16.mxu0 0
  %2803 = vmatpush2.bf16.msra.mxu0 0
  %2804 = vmatprep.mubr.bf16.mxu0 0
  %2805 = vmatmul.mubr.bf16.gmra.mxu0 %v1558
  %v2806 = vpop.f32.mrf.mxu0
  %v2807 = vadd.f32 0.0, %v2806
  %v2808 = vpop.f32.mrf.mxu0
  %v2809 = vpop.f32.mrf.mxu0
  %v2810 = vadd.f32 0.0, %v2809
  %v2811 = vpop.f32.mrf.mxu0
  %2812 = vmatprep.mubr.bf16.mxu0 0
  %2813 = vmatmul.mubr.bf16.gmra.mxu0 %v1561
  %v2814 = vpop.f32.mrf.mxu0
  %v2815 = vadd.f32 0.0, %v2814
  %v2816 = vpop.f32.mrf.mxu0
  %v2817 = vpop.f32.mrf.mxu0
  %v2818 = vadd.f32 0.0, %v2817
  %v2819 = vpop.f32.mrf.mxu0
  %2820 = vmatprep.mubr.bf16.mxu0 0
  %2821 = vmatmul.mubr.bf16.gmra.mxu0 %v1564
  %v2822 = vpop.f32.mrf.mxu0
  %v2823 = vadd.f32 0.0, %v2822
  %v2824 = vpop.f32.mrf.mxu0
  %v2825 = vpop.f32.mrf.mxu0
  %v2826 = vadd.f32 0.0, %v2825
  %v2827 = vpop.f32.mrf.mxu0
  %2828 = vmatprep.mubr.bf16.mxu0 0
  %2829 = vmatmul.mubr.bf16.gmra.mxu0 %v1567
  %v2830 = vpop.f32.mrf.mxu0
  %v2831 = vadd.f32 0.0, %v2830
  %v2832 = vpop.f32.mrf.mxu0
  %v2833 = vpop.f32.mrf.mxu0
  %v2834 = vadd.f32 0.0, %v2833
  %v2835 = vpop.f32.mrf.mxu0
  %2836 = vmatprep.mubr.bf16.mxu0 0
  %2837 = vmatmul.mubr.bf16.gmra.mxu0 %v1570
  %v2838 = vpop.f32.mrf.mxu0
  %v2839 = vadd.f32 0.0, %v2838
  %v2840 = vpop.f32.mrf.mxu0
  %v2841 = vpop.f32.mrf.mxu0
  %v2842 = vadd.f32 0.0, %v2841
  %v2843 = vpop.f32.mrf.mxu0
  %2844 = vmatprep.mubr.bf16.mxu0 0
  %2845 = vmatmul.mubr.bf16.gmra.mxu0 %v1573
  %v2846 = vpop.f32.mrf.mxu0
  %v2847 = vadd.f32 0.0, %v2846
  %v2848 = vpop.f32.mrf.mxu0
  %v2849 = vpop.f32.mrf.mxu0
  %v2850 = vadd.f32 0.0, %v2849
  %v2851 = vpop.f32.mrf.mxu0
  %2852 = vmatprep.mubr.bf16.mxu0 0
  %2853 = vmatmul.mubr.bf16.gmra.mxu0 %v1576
  %v2854 = vpop.f32.mrf.mxu0
  %v2855 = vadd.f32 0.0, %v2854
  %v2856 = vpop.f32.mrf.mxu0
  %v2857 = vpop.f32.mrf.mxu0
  %v2858 = vadd.f32 0.0, %v2857
  %v2859 = vpop.f32.mrf.mxu0
  %2860 = vmatprep.mubr.bf16.mxu0 0
  %2861 = vmatmul.mubr.bf16.gmra.mxu0 %v1579
  %v2862 = vpop.f32.mrf.mxu0
  %v2863 = vadd.f32 0.0, %v2862
  %v2864 = vpop.f32.mrf.mxu0
  %v2865 = vpop.f32.mrf.mxu0
  %v2866 = vadd.f32 0.0, %v2865
  %v2867 = vpop.f32.mrf.mxu0
  %2868 = vmatprep.mubr.bf16.mxu0 0
  %2869 = vmatmul.mubr.bf16.gmra.mxu0 %v1582
  %v2870 = vpop.f32.mrf.mxu0
  %v2871 = vadd.f32 0.0, %v2870
  %v2872 = vpop.f32.mrf.mxu0
  %v2873 = vpop.f32.mrf.mxu0
  %v2874 = vadd.f32 0.0, %v2873
  %v2875 = vpop.f32.mrf.mxu0
  %2876 = vmatprep.mubr.bf16.mxu0 0
  %2877 = vmatmul.mubr.bf16.gmra.mxu0 %v1585
  %v2878 = vpop.f32.mrf.mxu0
  %v2879 = vadd.f32 0.0, %v2878
  %v2880 = vpop.f32.mrf.mxu0
  %v2881 = vpop.f32.mrf.mxu0
  %v2882 = vadd.f32 0.0, %v2881
  %v2883 = vpop.f32.mrf.mxu0
  %2884 = vmatprep.mubr.bf16.mxu0 0
  %2885 = vmatmul.mubr.bf16.gmra.mxu0 %v1588
  %v2886 = vpop.f32.mrf.mxu0
  %v2887 = vadd.f32 0.0, %v2886
  %v2888 = vpop.f32.mrf.mxu0
  %v2889 = vpop.f32.mrf.mxu0
  %v2890 = vadd.f32 0.0, %v2889
  %v2891 = vpop.f32.mrf.mxu0
  %2892 = vmatprep.mubr.bf16.mxu0 0
  %2893 = vmatmul.mubr.bf16.gmra.mxu0 %v1591
  %v2894 = vpop.f32.mrf.mxu0
  %v2895 = vadd.f32 0.0, %v2894
  %v2896 = vpop.f32.mrf.mxu0
  %v2897 = vpop.f32.mrf.mxu0
  %v2898 = vadd.f32 0.0, %v2897
  %v2899 = vpop.f32.mrf.mxu0
  %2900 = vmatprep.mubr.bf16.mxu0 0
  %2901 = vmatmul.mubr.bf16.gmra.mxu0 %v1594
  %v2902 = vpop.f32.mrf.mxu0
  %v2903 = vadd.f32 0.0, %v2902
  %v2904 = vpop.f32.mrf.mxu0
  %v2905 = vpop.f32.mrf.mxu0
  %v2906 = vadd.f32 0.0, %v2905
  %v2907 = vpop.f32.mrf.mxu0
  %2908 = vmatprep.mubr.bf16.mxu0 0
  %2909 = vmatmul.mubr.bf16.gmra.mxu0 %v1597
  %v2910 = vpop.f32.mrf.mxu0
  %v2911 = vadd.f32 0.0, %v2910
  %v2912 = vpop.f32.mrf.mxu0
  %v2913 = vpop.f32.mrf.mxu0
  %v2914 = vadd.f32 0.0, %v2913
  %v2915 = vpop.f32.mrf.mxu0
  %2916 = vmatprep.mubr.bf16.mxu0 0
  %2917 = vmatmul.mubr.bf16.gmra.mxu0 %v1600
  %v2918 = vpop.f32.mrf.mxu0
  %v2919 = vadd.f32 0.0, %v2918
  %v2920 = vpop.f32.mrf.mxu0
  %v2921 = vpop.f32.mrf.mxu0
  %v2922 = vadd.f32 0.0, %v2921
  %v2923 = vpop.f32.mrf.mxu0
  %2924 = vmatprep.mubr.bf16.mxu0 0
  %2925 = vmatmul.mubr.bf16.gmra.mxu0 %v2764
  %v2926 = vpop.f32.mrf.mxu0
  %v2927 = vadd.f32 0.0, %v2926
  %v2928 = vpop.f32.mrf.mxu0
  %v2929 = vpop.f32.mrf.mxu0
  %v2930 = vadd.f32 0.0, %v2929
  %v2931 = vpop.f32.mrf.mxu0
  %2932 = vmatprep.mubr.bf16.mxu0 0
  %2933 = vmatmul.mubr.bf16.gmra.mxu0 %v1606
  %v2934 = vpop.f32.mrf.mxu0
  %v2935 = vadd.f32 0.0, %v2934
  %v2936 = vpop.f32.mrf.mxu0
  %v2937 = vpop.f32.mrf.mxu0
  %v2938 = vadd.f32 0.0, %v2937
  %v2939 = vpop.f32.mrf.mxu0
  %2940 = vmatprep.mubr.bf16.mxu0 0
  %2941 = vmatmul.mubr.bf16.gmra.mxu0 %v1609
  %v2942 = vpop.f32.mrf.mxu0
  %v2943 = vadd.f32 0.0, %v2942
  %v2944 = vpop.f32.mrf.mxu0
  %v2945 = vpop.f32.mrf.mxu0
  %v2946 = vadd.f32 0.0, %v2945
  %v2947 = vpop.f32.mrf.mxu0
  %2948 = vmatprep.mubr.bf16.mxu0 0
  %2949 = vmatmul.mubr.bf16.gmra.mxu0 %v1612
  %v2950 = vpop.f32.mrf.mxu0
  %v2951 = vadd.f32 0.0, %v2950
  %v2952 = vpop.f32.mrf.mxu0
  %v2953 = vpop.f32.mrf.mxu0
  %v2954 = vadd.f32 0.0, %v2953
  %v2955 = vpop.f32.mrf.mxu0
  %2956 = vmatprep.mubr.bf16.mxu0 0
  %2957 = vmatmul.mubr.bf16.gmra.mxu0 %v1615
  %v2958 = vpop.f32.mrf.mxu0
  %v2959 = vadd.f32 0.0, %v2958
  %v2960 = vpop.f32.mrf.mxu0
  %v2961 = vpop.f32.mrf.mxu0
  %v2962 = vadd.f32 0.0, %v2961
  %v2963 = vpop.f32.mrf.mxu0
  %2964 = vmatprep.mubr.bf16.mxu0 0
  %2965 = vmatmul.mubr.bf16.gmra.mxu0 %v1618
  %v2966 = vpop.f32.mrf.mxu0
  %v2967 = vadd.f32 0.0, %v2966
  %v2968 = vpop.f32.mrf.mxu0
  %v2969 = vpop.f32.mrf.mxu0
  %v2970 = vadd.f32 0.0, %v2969
  %v2971 = vpop.f32.mrf.mxu0
  %2972 = vmatprep.mubr.bf16.mxu0 0
  %2973 = vmatmul.mubr.bf16.gmra.mxu0 %v1621
  %v2974 = vpop.f32.mrf.mxu0
  %v2975 = vadd.f32 0.0, %v2974
  %v2976 = vpop.f32.mrf.mxu0
  %v2977 = vpop.f32.mrf.mxu0
  %v2978 = vadd.f32 0.0, %v2977
  %v2979 = vpop.f32.mrf.mxu0
  %2980 = vmatprep.mubr.bf16.mxu0 0
  %2981 = vmatmul.mubr.bf16.gmra.mxu0 %v1624
  %v2982 = vpop.f32.mrf.mxu0
  %v2983 = vadd.f32 0.0, %v2982
  %v2984 = vpop.f32.mrf.mxu0
  %v2985 = vpop.f32.mrf.mxu0
  %v2986 = vadd.f32 0.0, %v2985
  %v2987 = vpop.f32.mrf.mxu0
  %2988 = vmatprep.mubr.bf16.mxu0 0
  %2989 = vmatmul.mubr.bf16.gmra.mxu0 %v1627
  %v2990 = vpop.f32.mrf.mxu0
  %v2991 = vadd.f32 0.0, %v2990
  %v2992 = vpop.f32.mrf.mxu0
  %v2993 = vpop.f32.mrf.mxu0
  %v2994 = vadd.f32 0.0, %v2993
  %v2995 = vpop.f32.mrf.mxu0
  %2996 = vmatprep.mubr.bf16.mxu0 0
  %2997 = vmatmul.mubr.bf16.gmra.mxu0 %v1630
  %v2998 = vpop.f32.mrf.mxu0
  %v2999 = vadd.f32 0.0, %v2998
  %v3000 = vpop.f32.mrf.mxu0
  %v3001 = vpop.f32.mrf.mxu0
  %v3002 = vadd.f32 0.0, %v3001
  %v3003 = vpop.f32.mrf.mxu0
  %3004 = vmatprep.mubr.bf16.mxu0 0
  %3005 = vmatmul.mubr.bf16.gmra.mxu0 %v1633
  %v3006 = vpop.f32.mrf.mxu0
  %v3007 = vadd.f32 0.0, %v3006
  %v3008 = vpop.f32.mrf.mxu0
  %v3009 = vpop.f32.mrf.mxu0
  %v3010 = vadd.f32 0.0, %v3009
  %v3011 = vpop.f32.mrf.mxu0
  %3012 = vmatprep.mubr.bf16.mxu0 0
  %3013 = vmatmul.mubr.bf16.gmra.mxu0 %v1636
  %v3014 = vpop.f32.mrf.mxu0
  %v3015 = vadd.f32 0.0, %v3014
  %v3016 = vpop.f32.mrf.mxu0
  %v3017 = vpop.f32.mrf.mxu0
  %v3018 = vadd.f32 0.0, %v3017
  %v3019 = vpop.f32.mrf.mxu0
  %3020 = vmatprep.mubr.bf16.mxu0 0
  %3021 = vmatmul.mubr.bf16.gmra.mxu0 %v1639
  %v3022 = vpop.f32.mrf.mxu0
  %v3023 = vadd.f32 0.0, %v3022
  %v3024 = vpop.f32.mrf.mxu0
  %v3025 = vpop.f32.mrf.mxu0
  %v3026 = vadd.f32 0.0, %v3025
  %v3027 = vpop.f32.mrf.mxu0
  %3028 = vmatprep.mubr.bf16.mxu0 0
  %3029 = vmatmul.mubr.bf16.gmra.mxu0 %v1642
  %v3030 = vpop.f32.mrf.mxu0
  %v3031 = vadd.f32 0.0, %v3030
  %v3032 = vpop.f32.mrf.mxu0
  %v3033 = vpop.f32.mrf.mxu0
  %v3034 = vadd.f32 0.0, %v3033
  %v3035 = vpop.f32.mrf.mxu0
  %3036 = vmatprep.mubr.bf16.mxu0 0
  %3037 = vmatmul.mubr.bf16.gmra.mxu0 %v1645
  %v3038 = vpop.f32.mrf.mxu0
  %v3039 = vadd.f32 0.0, %v3038
  %v3040 = vpop.f32.mrf.mxu0
  %v3041 = vpop.f32.mrf.mxu0
  %v3042 = vadd.f32 0.0, %v3041
  %v3043 = vpop.f32.mrf.mxu0
  %3044 = vmatprep.mubr.bf16.mxu0 0
  %3045 = vmatmul.mubr.bf16.gmra.mxu0 %v1648
  %v3046 = vpop.f32.mrf.mxu0
  %v3047 = vadd.f32 0.0, %v3046
  %v3048 = vpop.f32.mrf.mxu0
  %v3049 = vpop.f32.mrf.mxu0
  %v3050 = vadd.f32 0.0, %v3049
  %v3051 = vpop.f32.mrf.mxu0
  %3052 = vmatprep.mubr.bf16.mxu0 0
  %3053 = vmatmul.mubr.bf16.gmra.mxu0 %v2767
  %v3054 = vpop.f32.mrf.mxu0
  %v3055 = vadd.f32 0.0, %v3054
  %v3056 = vpop.f32.mrf.mxu0
  %v3057 = vpop.f32.mrf.mxu0
  %v3058 = vadd.f32 0.0, %v3057
  %v3059 = vpop.f32.mrf.mxu0
  %3060 = vdwg.mxu0
  %v3061 = vadd.f32 %v2685, %v2807
  %v3062 = vadd.f32 %v2686, %v2810
  %v3063 = vadd.f32 %v2687, %v2815
  %v3064 = vadd.f32 %v2688, %v2818
  %v3065 = vadd.f32 %v2689, %v2823
  %v3066 = vadd.f32 %v2690, %v2826
  %v3067 = vadd.f32 %v2691, %v2831
  %v3068 = vadd.f32 %v2692, %v2834
  %v3069 = vadd.f32 %v2693, %v2839
  %v3070 = vadd.f32 %v2694, %v2842
  %v3071 = vadd.f32 %v2695, %v2847
  %v3072 = vadd.f32 %v2696, %v2850
  %v3073 = vadd.f32 %v2697, %v2855
  %v3074 = vadd.f32 %v2698, %v2858
  %v3075 = vadd.f32 %v2699, %v2863
  %v3076 = vadd.f32 %v2700, %v2866
  %v3077 = vadd.f32 %v2701, %v2871
  %v3078 = vadd.f32 %v2702, %v2874
  %v3079 = vadd.f32 %v2703, %v2879
  %v3080 = vadd.f32 %v2704, %v2882
  %v3081 = vadd.f32 %v2705, %v2887
  %v3082 = vadd.f32 %v2706, %v2890
  %v3083 = vadd.f32 %v2707, %v2895
  %v3084 = vadd.f32 %v2708, %v2898
  %v3085 = vadd.f32 %v2709, %v2903
  %v3086 = vadd.f32 %v2710, %v2906
  %v3087 = vadd.f32 %v2711, %v2911
  %v3088 = vadd.f32 %v2712, %v2914
  %v3089 = vadd.f32 %v2713, %v2919
  %v3090 = vadd.f32 %v2714, %v2922
  %v3091 = vadd.f32 %v2715, %v2927
  %v3092 = vadd.f32 %v2716, %v2930
  %v3093 = vadd.f32 %v2717, %v2935
  %v3094 = vadd.f32 %v2718, %v2938
  %v3095 = vadd.f32 %v2719, %v2943
  %v3096 = vadd.f32 %v2720, %v2946
  %v3097 = vadd.f32 %v2721, %v2951
  %v3098 = vadd.f32 %v2722, %v2954
  %v3099 = vadd.f32 %v2723, %v2959
  %v3100 = vadd.f32 %v2724, %v2962
  %v3101 = vadd.f32 %v2725, %v2967
  %v3102 = vadd.f32 %v2726, %v2970
  %v3103 = vadd.f32 %v2727, %v2975
  %v3104 = vadd.f32 %v2728, %v2978
  %v3105 = vadd.f32 %v2729, %v2983
  %v3106 = vadd.f32 %v2730, %v2986
  %v3107 = vadd.f32 %v2731, %v2991
  %v3108 = vadd.f32 %v2732, %v2994
  %v3109 = vadd.f32 %v2733, %v2999
  %v3110 = vadd.f32 %v2734, %v3002
  %v3111 = vadd.f32 %v2735, %v3007
  %v3112 = vadd.f32 %v2736, %v3010
  %v3113 = vadd.f32 %v2737, %v3015
  %v3114 = vadd.f32 %v2738, %v3018
  %v3115 = vadd.f32 %v2739, %v3023
  %v3116 = vadd.f32 %v2740, %v3026
  %v3117 = vadd.f32 %v2741, %v3031
  %v3118 = vadd.f32 %v2742, %v3034
  %v3119 = vadd.f32 %v2743, %v3039
  %v3120 = vadd.f32 %v2744, %v3042
  %v3121 = vadd.f32 %v2745, %v3047
  %v3122 = vadd.f32 %v2746, %v3050
  %v3123 = vadd.f32 %v2747, %v3055
  %v3124 = vadd.f32 %v2748, %v3058
  %v3126 = vshrl.u32 %v73, 16
  %v3128 = vrot.slane %v3126, 4
  %v3129 = vshll.u32 %v73, 16
  %v3131 = vrot.slane %v3129, 5
  %v3132 = vor.u32 %v3128, %v3131
  %v3133 = vrot.slane %v3132, 4
  %v3135 = vshll.u32 %v74, 16
  %v3137 = vrot.slane %v3135, 5
  %v3138 = vsel %vm135, %v3133, %v3137
  %v3139 = vshrl.u32 %v74, 16
  %v3141 = vrot.slane %v3139, 4
  %v3142 = vor.u32 %v3141, %v3137
  %v3143 = vrot.slane %v3142, 4
  %v3145 = vshll.u32 %v75, 16
  %v3147 = vrot.slane %v3145, 5
  %v3148 = vsel %vm135, %v3143, %v3147
  %v3150 = vshrl.u32 %v127, 16
  %v3152 = vrot.slane %v3150, 4
  %v3153 = vshll.u32 %v127, 16
  %v3155 = vrot.slane %v3153, 5
  %v3156 = vor.u32 %v3152, %v3155
  %v3157 = vrot.slane %v3156, 4
  %v3159 = vshll.u32 %v128, 16
  %v3161 = vrot.slane %v3159, 5
  %v3162 = vsel %vm135, %v3157, %v3161
  %v3163 = vshrl.u32 %v128, 16
  %v3165 = vrot.slane %v3163, 4
  %v3166 = vor.u32 %v3165, %v3161
  %v3167 = vrot.slane %v3166, 4
  %v3169 = vshll.u32 %v129, 16
  %v3171 = vrot.slane %v3169, 5
  %v3172 = vsel %vm135, %v3167, %v3171
  %v3173 = vunpack.c.l.b16 %v3138
  %v3174 = vunpack.c.l.b16 %v3148
  %v3175 = vunpack.c.l.b16 %v3162
  %v3176 = vunpack.c.l.b16 %v3172
  %v3177 = vpack.c.b16 %v3174, %v3173
  %v3178 = vpack.c.b16 %v3176, %v3175
  %v3180 = vsel %vm1004, %v3177, 0
  %v3183 = vsel %vm1004, %v3178, 0
  %v3186 = vsel %vm1101, %v20, 0
  %3188 = vmatprep.subr.bf16.mxu0 0
  %3189 = vmatpush1.bf16.msra.mxu0 0
  %3190 = vmatprep.subr.bf16.mxu0 0
  %3191 = vmatpush1.bf16.msra.mxu0 0
  %3192 = vmatprep.subr.bf16.mxu0 0
  %3193 = vmatpush1.bf16.msra.mxu0 0
  %3194 = vmatprep.subr.bf16.mxu0 0
  %3195 = vmatpush1.bf16.msra.mxu0 0
  %3196 = vmatprep.subr.bf16.mxu0 0
  %3197 = vmatpush1.bf16.msra.mxu0 0
  %3198 = vmatprep.subr.bf16.mxu0 0
  %3199 = vmatpush1.bf16.msra.mxu0 0
  %3200 = vmatprep.subr.bf16.mxu0 0
  %3201 = vmatpush1.bf16.msra.mxu0 0
  %3202 = vmatprep.subr.bf16.mxu0 0
  %3203 = vmatpush1.bf16.msra.mxu0 %v3186
  %3204 = vmatprep.subr.bf16.mxu0 0
  %3205 = vmatpush2.bf16.msra.mxu0 0
  %3206 = vmatprep.subr.bf16.mxu0 0
  %3207 = vmatpush2.bf16.msra.mxu0 0
  %3208 = vmatprep.subr.bf16.mxu0 0
  %3209 = vmatpush2.bf16.msra.mxu0 0
  %3210 = vmatprep.subr.bf16.mxu0 0
  %3211 = vmatpush2.bf16.msra.mxu0 0
  %3212 = vmatprep.subr.bf16.mxu0 0
  %3213 = vmatpush2.bf16.msra.mxu0 0
  %3214 = vmatprep.subr.bf16.mxu0 0
  %3215 = vmatpush2.bf16.msra.mxu0 0
  %3216 = vmatprep.subr.bf16.mxu0 0
  %3217 = vmatpush2.bf16.msra.mxu0 0
  %3218 = vmatprep.subr.bf16.mxu0 0
  %3219 = vmatpush2.bf16.msra.mxu0 0
  %3220 = vmatprep.mubr.bf16.mxu0 0
  %3221 = vmatmul.mubr.bf16.gmra.mxu0 %v1009
  %v3222 = vpop.f32.mrf.mxu0
  %v3223 = vadd.f32 0.0, %v3222
  %v3224 = vpop.f32.mrf.mxu0
  %v3225 = vpop.f32.mrf.mxu0
  %v3226 = vadd.f32 0.0, %v3225
  %v3227 = vpop.f32.mrf.mxu0
  %3228 = vmatprep.mubr.bf16.mxu0 0
  %3229 = vmatmul.mubr.bf16.gmra.mxu0 %v1012
  %v3230 = vpop.f32.mrf.mxu0
  %v3231 = vadd.f32 0.0, %v3230
  %v3232 = vpop.f32.mrf.mxu0
  %v3233 = vpop.f32.mrf.mxu0
  %v3234 = vadd.f32 0.0, %v3233
  %v3235 = vpop.f32.mrf.mxu0
  %3236 = vmatprep.mubr.bf16.mxu0 0
  %3237 = vmatmul.mubr.bf16.gmra.mxu0 %v1015
  %v3238 = vpop.f32.mrf.mxu0
  %v3239 = vadd.f32 0.0, %v3238
  %v3240 = vpop.f32.mrf.mxu0
  %v3241 = vpop.f32.mrf.mxu0
  %v3242 = vadd.f32 0.0, %v3241
  %v3243 = vpop.f32.mrf.mxu0
  %3244 = vmatprep.mubr.bf16.mxu0 0
  %3245 = vmatmul.mubr.bf16.gmra.mxu0 %v1018
  %v3246 = vpop.f32.mrf.mxu0
  %v3247 = vadd.f32 0.0, %v3246
  %v3248 = vpop.f32.mrf.mxu0
  %v3249 = vpop.f32.mrf.mxu0
  %v3250 = vadd.f32 0.0, %v3249
  %v3251 = vpop.f32.mrf.mxu0
  %3252 = vmatprep.mubr.bf16.mxu0 0
  %3253 = vmatmul.mubr.bf16.gmra.mxu0 %v1021
  %v3254 = vpop.f32.mrf.mxu0
  %v3255 = vadd.f32 0.0, %v3254
  %v3256 = vpop.f32.mrf.mxu0
  %v3257 = vpop.f32.mrf.mxu0
  %v3258 = vadd.f32 0.0, %v3257
  %v3259 = vpop.f32.mrf.mxu0
  %3260 = vmatprep.mubr.bf16.mxu0 0
  %3261 = vmatmul.mubr.bf16.gmra.mxu0 %v1024
  %v3262 = vpop.f32.mrf.mxu0
  %v3263 = vadd.f32 0.0, %v3262
  %v3264 = vpop.f32.mrf.mxu0
  %v3265 = vpop.f32.mrf.mxu0
  %v3266 = vadd.f32 0.0, %v3265
  %v3267 = vpop.f32.mrf.mxu0
  %3268 = vmatprep.mubr.bf16.mxu0 0
  %3269 = vmatmul.mubr.bf16.gmra.mxu0 %v1027
  %v3270 = vpop.f32.mrf.mxu0
  %v3271 = vadd.f32 0.0, %v3270
  %v3272 = vpop.f32.mrf.mxu0
  %v3273 = vpop.f32.mrf.mxu0
  %v3274 = vadd.f32 0.0, %v3273
  %v3275 = vpop.f32.mrf.mxu0
  %3276 = vmatprep.mubr.bf16.mxu0 0
  %3277 = vmatmul.mubr.bf16.gmra.mxu0 %v1030
  %v3278 = vpop.f32.mrf.mxu0
  %v3279 = vadd.f32 0.0, %v3278
  %v3280 = vpop.f32.mrf.mxu0
  %v3281 = vpop.f32.mrf.mxu0
  %v3282 = vadd.f32 0.0, %v3281
  %v3283 = vpop.f32.mrf.mxu0
  %3284 = vmatprep.mubr.bf16.mxu0 0
  %3285 = vmatmul.mubr.bf16.gmra.mxu0 %v1033
  %v3286 = vpop.f32.mrf.mxu0
  %v3287 = vadd.f32 0.0, %v3286
  %v3288 = vpop.f32.mrf.mxu0
  %v3289 = vpop.f32.mrf.mxu0
  %v3290 = vadd.f32 0.0, %v3289
  %v3291 = vpop.f32.mrf.mxu0
  %3292 = vmatprep.mubr.bf16.mxu0 0
  %3293 = vmatmul.mubr.bf16.gmra.mxu0 %v1036
  %v3294 = vpop.f32.mrf.mxu0
  %v3295 = vadd.f32 0.0, %v3294
  %v3296 = vpop.f32.mrf.mxu0
  %v3297 = vpop.f32.mrf.mxu0
  %v3298 = vadd.f32 0.0, %v3297
  %v3299 = vpop.f32.mrf.mxu0
  %3300 = vmatprep.mubr.bf16.mxu0 0
  %3301 = vmatmul.mubr.bf16.gmra.mxu0 %v1039
  %v3302 = vpop.f32.mrf.mxu0
  %v3303 = vadd.f32 0.0, %v3302
  %v3304 = vpop.f32.mrf.mxu0
  %v3305 = vpop.f32.mrf.mxu0
  %v3306 = vadd.f32 0.0, %v3305
  %v3307 = vpop.f32.mrf.mxu0
  %3308 = vmatprep.mubr.bf16.mxu0 0
  %3309 = vmatmul.mubr.bf16.gmra.mxu0 %v1042
  %v3310 = vpop.f32.mrf.mxu0
  %v3311 = vadd.f32 0.0, %v3310
  %v3312 = vpop.f32.mrf.mxu0
  %v3313 = vpop.f32.mrf.mxu0
  %v3314 = vadd.f32 0.0, %v3313
  %v3315 = vpop.f32.mrf.mxu0
  %3316 = vmatprep.mubr.bf16.mxu0 0
  %3317 = vmatmul.mubr.bf16.gmra.mxu0 %v1045
  %v3318 = vpop.f32.mrf.mxu0
  %v3319 = vadd.f32 0.0, %v3318
  %v3320 = vpop.f32.mrf.mxu0
  %v3321 = vpop.f32.mrf.mxu0
  %v3322 = vadd.f32 0.0, %v3321
  %v3323 = vpop.f32.mrf.mxu0
  %3324 = vmatprep.mubr.bf16.mxu0 0
  %3325 = vmatmul.mubr.bf16.gmra.mxu0 %v1048
  %v3326 = vpop.f32.mrf.mxu0
  %v3327 = vadd.f32 0.0, %v3326
  %v3328 = vpop.f32.mrf.mxu0
  %v3329 = vpop.f32.mrf.mxu0
  %v3330 = vadd.f32 0.0, %v3329
  %v3331 = vpop.f32.mrf.mxu0
  %3332 = vmatprep.mubr.bf16.mxu0 0
  %3333 = vmatmul.mubr.bf16.gmra.mxu0 %v1051
  %v3334 = vpop.f32.mrf.mxu0
  %v3335 = vadd.f32 0.0, %v3334
  %v3336 = vpop.f32.mrf.mxu0
  %v3337 = vpop.f32.mrf.mxu0
  %v3338 = vadd.f32 0.0, %v3337
  %v3339 = vpop.f32.mrf.mxu0
  %3340 = vmatprep.mubr.bf16.mxu0 0
  %3341 = vmatmul.mubr.bf16.gmra.mxu0 %v3180
  %v3342 = vpop.f32.mrf.mxu0
  %v3343 = vadd.f32 0.0, %v3342
  %v3344 = vpop.f32.mrf.mxu0
  %v3345 = vpop.f32.mrf.mxu0
  %v3346 = vadd.f32 0.0, %v3345
  %v3347 = vpop.f32.mrf.mxu0
  %3348 = vmatprep.mubr.bf16.mxu0 0
  %3349 = vmatmul.mubr.bf16.gmra.mxu0 %v1057
  %v3350 = vpop.f32.mrf.mxu0
  %v3351 = vadd.f32 0.0, %v3350
  %v3352 = vpop.f32.mrf.mxu0
  %v3353 = vpop.f32.mrf.mxu0
  %v3354 = vadd.f32 0.0, %v3353
  %v3355 = vpop.f32.mrf.mxu0
  %3356 = vmatprep.mubr.bf16.mxu0 0
  %3357 = vmatmul.mubr.bf16.gmra.mxu0 %v1060
  %v3358 = vpop.f32.mrf.mxu0
  %v3359 = vadd.f32 0.0, %v3358
  %v3360 = vpop.f32.mrf.mxu0
  %v3361 = vpop.f32.mrf.mxu0
  %v3362 = vadd.f32 0.0, %v3361
  %v3363 = vpop.f32.mrf.mxu0
  %3364 = vmatprep.mubr.bf16.mxu0 0
  %3365 = vmatmul.mubr.bf16.gmra.mxu0 %v1063
  %v3366 = vpop.f32.mrf.mxu0
  %v3367 = vadd.f32 0.0, %v3366
  %v3368 = vpop.f32.mrf.mxu0
  %v3369 = vpop.f32.mrf.mxu0
  %v3370 = vadd.f32 0.0, %v3369
  %v3371 = vpop.f32.mrf.mxu0
  %3372 = vmatprep.mubr.bf16.mxu0 0
  %3373 = vmatmul.mubr.bf16.gmra.mxu0 %v1066
  %v3374 = vpop.f32.mrf.mxu0
  %v3375 = vadd.f32 0.0, %v3374
  %v3376 = vpop.f32.mrf.mxu0
  %v3377 = vpop.f32.mrf.mxu0
  %v3378 = vadd.f32 0.0, %v3377
  %v3379 = vpop.f32.mrf.mxu0
  %3380 = vmatprep.mubr.bf16.mxu0 0
  %3381 = vmatmul.mubr.bf16.gmra.mxu0 %v1069
  %v3382 = vpop.f32.mrf.mxu0
  %v3383 = vadd.f32 0.0, %v3382
  %v3384 = vpop.f32.mrf.mxu0
  %v3385 = vpop.f32.mrf.mxu0
  %v3386 = vadd.f32 0.0, %v3385
  %v3387 = vpop.f32.mrf.mxu0
  %3388 = vmatprep.mubr.bf16.mxu0 0
  %3389 = vmatmul.mubr.bf16.gmra.mxu0 %v1072
  %v3390 = vpop.f32.mrf.mxu0
  %v3391 = vadd.f32 0.0, %v3390
  %v3392 = vpop.f32.mrf.mxu0
  %v3393 = vpop.f32.mrf.mxu0
  %v3394 = vadd.f32 0.0, %v3393
  %v3395 = vpop.f32.mrf.mxu0
  %3396 = vmatprep.mubr.bf16.mxu0 0
  %3397 = vmatmul.mubr.bf16.gmra.mxu0 %v1075
  %v3398 = vpop.f32.mrf.mxu0
  %v3399 = vadd.f32 0.0, %v3398
  %v3400 = vpop.f32.mrf.mxu0
  %v3401 = vpop.f32.mrf.mxu0
  %v3402 = vadd.f32 0.0, %v3401
  %v3403 = vpop.f32.mrf.mxu0
  %3404 = vmatprep.mubr.bf16.mxu0 0
  %3405 = vmatmul.mubr.bf16.gmra.mxu0 %v1078
  %v3406 = vpop.f32.mrf.mxu0
  %v3407 = vadd.f32 0.0, %v3406
  %v3408 = vpop.f32.mrf.mxu0
  %v3409 = vpop.f32.mrf.mxu0
  %v3410 = vadd.f32 0.0, %v3409
  %v3411 = vpop.f32.mrf.mxu0
  %3412 = vmatprep.mubr.bf16.mxu0 0
  %3413 = vmatmul.mubr.bf16.gmra.mxu0 %v1081
  %v3414 = vpop.f32.mrf.mxu0
  %v3415 = vadd.f32 0.0, %v3414
  %v3416 = vpop.f32.mrf.mxu0
  %v3417 = vpop.f32.mrf.mxu0
  %v3418 = vadd.f32 0.0, %v3417
  %v3419 = vpop.f32.mrf.mxu0
  %3420 = vmatprep.mubr.bf16.mxu0 0
  %3421 = vmatmul.mubr.bf16.gmra.mxu0 %v1084
  %v3422 = vpop.f32.mrf.mxu0
  %v3423 = vadd.f32 0.0, %v3422
  %v3424 = vpop.f32.mrf.mxu0
  %v3425 = vpop.f32.mrf.mxu0
  %v3426 = vadd.f32 0.0, %v3425
  %v3427 = vpop.f32.mrf.mxu0
  %3428 = vmatprep.mubr.bf16.mxu0 0
  %3429 = vmatmul.mubr.bf16.gmra.mxu0 %v1087
  %v3430 = vpop.f32.mrf.mxu0
  %v3431 = vadd.f32 0.0, %v3430
  %v3432 = vpop.f32.mrf.mxu0
  %v3433 = vpop.f32.mrf.mxu0
  %v3434 = vadd.f32 0.0, %v3433
  %v3435 = vpop.f32.mrf.mxu0
  %3436 = vmatprep.mubr.bf16.mxu0 0
  %3437 = vmatmul.mubr.bf16.gmra.mxu0 %v1090
  %v3438 = vpop.f32.mrf.mxu0
  %v3439 = vadd.f32 0.0, %v3438
  %v3440 = vpop.f32.mrf.mxu0
  %v3441 = vpop.f32.mrf.mxu0
  %v3442 = vadd.f32 0.0, %v3441
  %v3443 = vpop.f32.mrf.mxu0
  %3444 = vmatprep.mubr.bf16.mxu0 0
  %3445 = vmatmul.mubr.bf16.gmra.mxu0 %v1093
  %v3446 = vpop.f32.mrf.mxu0
  %v3447 = vadd.f32 0.0, %v3446
  %v3448 = vpop.f32.mrf.mxu0
  %v3449 = vpop.f32.mrf.mxu0
  %v3450 = vadd.f32 0.0, %v3449
  %v3451 = vpop.f32.mrf.mxu0
  %3452 = vmatprep.mubr.bf16.mxu0 0
  %3453 = vmatmul.mubr.bf16.gmra.mxu0 %v1096
  %v3454 = vpop.f32.mrf.mxu0
  %v3455 = vadd.f32 0.0, %v3454
  %v3456 = vpop.f32.mrf.mxu0
  %v3457 = vpop.f32.mrf.mxu0
  %v3458 = vadd.f32 0.0, %v3457
  %v3459 = vpop.f32.mrf.mxu0
  %3460 = vmatprep.mubr.bf16.mxu0 0
  %3461 = vmatmul.mubr.bf16.gmra.mxu0 %v1099
  %v3462 = vpop.f32.mrf.mxu0
  %v3463 = vadd.f32 0.0, %v3462
  %v3464 = vpop.f32.mrf.mxu0
  %v3465 = vpop.f32.mrf.mxu0
  %v3466 = vadd.f32 0.0, %v3465
  %v3467 = vpop.f32.mrf.mxu0
  %3468 = vmatprep.mubr.bf16.mxu0 0
  %3469 = vmatmul.mubr.bf16.gmra.mxu0 %v3183
  %v3470 = vpop.f32.mrf.mxu0
  %v3471 = vadd.f32 0.0, %v3470
  %v3472 = vpop.f32.mrf.mxu0
  %v3473 = vpop.f32.mrf.mxu0
  %v3474 = vadd.f32 0.0, %v3473
  %v3475 = vpop.f32.mrf.mxu0
  %3476 = vdwg.mxu0
  %v3477 = vadd.f32 %v3061, %v3223
  %v3478 = vadd.f32 %v3062, %v3226
  %v3479 = vadd.f32 %v3063, %v3231
  %v3480 = vadd.f32 %v3064, %v3234
  %v3481 = vadd.f32 %v3065, %v3239
  %v3482 = vadd.f32 %v3066, %v3242
  %v3483 = vadd.f32 %v3067, %v3247
  %v3484 = vadd.f32 %v3068, %v3250
  %v3485 = vadd.f32 %v3069, %v3255
  %v3486 = vadd.f32 %v3070, %v3258
  %v3487 = vadd.f32 %v3071, %v3263
  %v3488 = vadd.f32 %v3072, %v3266
  %v3489 = vadd.f32 %v3073, %v3271
  %v3490 = vadd.f32 %v3074, %v3274
  %v3491 = vadd.f32 %v3075, %v3279
  %v3492 = vadd.f32 %v3076, %v3282
  %v3493 = vadd.f32 %v3077, %v3287
  %v3494 = vadd.f32 %v3078, %v3290
  %v3495 = vadd.f32 %v3079, %v3295
  %v3496 = vadd.f32 %v3080, %v3298
  %v3497 = vadd.f32 %v3081, %v3303
  %v3498 = vadd.f32 %v3082, %v3306
  %v3499 = vadd.f32 %v3083, %v3311
  %v3500 = vadd.f32 %v3084, %v3314
  %v3501 = vadd.f32 %v3085, %v3319
  %v3502 = vadd.f32 %v3086, %v3322
  %v3503 = vadd.f32 %v3087, %v3327
  %v3504 = vadd.f32 %v3088, %v3330
  %v3505 = vadd.f32 %v3089, %v3335
  %v3506 = vadd.f32 %v3090, %v3338
  %v3507 = vadd.f32 %v3091, %v3343
  %v3508 = vadd.f32 %v3092, %v3346
  %v3509 = vadd.f32 %v3093, %v3351
  %v3510 = vadd.f32 %v3094, %v3354
  %v3511 = vadd.f32 %v3095, %v3359
  %v3512 = vadd.f32 %v3096, %v3362
  %v3513 = vadd.f32 %v3097, %v3367
  %v3514 = vadd.f32 %v3098, %v3370
  %v3515 = vadd.f32 %v3099, %v3375
  %v3516 = vadd.f32 %v3100, %v3378
  %v3517 = vadd.f32 %v3101, %v3383
  %v3518 = vadd.f32 %v3102, %v3386
  %v3519 = vadd.f32 %v3103, %v3391
  %v3520 = vadd.f32 %v3104, %v3394
  %v3521 = vadd.f32 %v3105, %v3399
  %v3522 = vadd.f32 %v3106, %v3402
  %v3523 = vadd.f32 %v3107, %v3407
  %v3524 = vadd.f32 %v3108, %v3410
  %v3525 = vadd.f32 %v3109, %v3415
  %v3526 = vadd.f32 %v3110, %v3418
  %v3527 = vadd.f32 %v3111, %v3423
  %v3528 = vadd.f32 %v3112, %v3426
  %v3529 = vadd.f32 %v3113, %v3431
  %v3530 = vadd.f32 %v3114, %v3434
  %v3531 = vadd.f32 %v3115, %v3439
  %v3532 = vadd.f32 %v3116, %v3442
  %v3533 = vadd.f32 %v3117, %v3447
  %v3534 = vadd.f32 %v3118, %v3450
  %v3535 = vadd.f32 %v3119, %v3455
  %v3536 = vadd.f32 %v3120, %v3458
  %v3537 = vadd.f32 %v3121, %v3463
  %v3538 = vadd.f32 %v3122, %v3466
  %v3539 = vadd.f32 %v3123, %v3471
  %v3540 = vadd.f32 %v3124, %v3474
  %v3543 = vrot.slane %v73, 5
  %v3544 = vrot.slane %v3543, 4
  %v3545 = vrot.slane %v74, 5
  %v3546 = vsel %vm1976, %v3544, %v3545
  %v3547 = vrot.slane %v3545, 4
  %v3548 = vrot.slane %v75, 5
  %v3549 = vsel %vm1976, %v3547, %v3548
  %v3550 = vrot.slane %v127, 5
  %v3551 = vrot.slane %v3550, 4
  %v3552 = vrot.slane %v128, 5
  %v3553 = vsel %vm1976, %v3551, %v3552
  %v3554 = vrot.slane %v3552, 4
  %v3555 = vrot.slane %v129, 5
  %v3556 = vsel %vm1976, %v3554, %v3555
  %v3557 = vunpack.c.l.b16 %v3546
  %v3558 = vunpack.c.l.b16 %v3549
  %v3559 = vunpack.c.l.b16 %v3553
  %v3560 = vunpack.c.l.b16 %v3556
  %v3561 = vpack.c.b16 %v3558, %v3557
  %v3562 = vpack.c.b16 %v3560, %v3559
  %v3564 = vunpack.c.l.b16 %v21
  %v3565 = vpack.c.b16 %v3564, %v3564
  %v3566 = vrot.slane %v3565, 2
  %v3568 = vsel %vm1004, %v3561, 0
  %v3571 = vsel %vm1004, %v3562, 0
  %v3574 = vsel %vm1101, %v3566, 0
  %3576 = vmatprep.subr.bf16.mxu0 0
  %3577 = vmatpush1.bf16.msra.mxu0 0
  %3578 = vmatprep.subr.bf16.mxu0 0
  %3579 = vmatpush1.bf16.msra.mxu0 0
  %3580 = vmatprep.subr.bf16.mxu0 0
  %3581 = vmatpush1.bf16.msra.mxu0 0
  %3582 = vmatprep.subr.bf16.mxu0 0
  %3583 = vmatpush1.bf16.msra.mxu0 0
  %3584 = vmatprep.subr.bf16.mxu0 0
  %3585 = vmatpush1.bf16.msra.mxu0 0
  %3586 = vmatprep.subr.bf16.mxu0 0
  %3587 = vmatpush1.bf16.msra.mxu0 0
  %3588 = vmatprep.subr.bf16.mxu0 0
  %3589 = vmatpush1.bf16.msra.mxu0 0
  %3590 = vmatprep.subr.bf16.mxu0 0
  %3591 = vmatpush1.bf16.msra.mxu0 %v3574
  %3592 = vmatprep.subr.bf16.mxu0 0
  %3593 = vmatpush2.bf16.msra.mxu0 0
  %3594 = vmatprep.subr.bf16.mxu0 0
  %3595 = vmatpush2.bf16.msra.mxu0 0
  %3596 = vmatprep.subr.bf16.mxu0 0
  %3597 = vmatpush2.bf16.msra.mxu0 0
  %3598 = vmatprep.subr.bf16.mxu0 0
  %3599 = vmatpush2.bf16.msra.mxu0 0
  %3600 = vmatprep.subr.bf16.mxu0 0
  %3601 = vmatpush2.bf16.msra.mxu0 0
  %3602 = vmatprep.subr.bf16.mxu0 0
  %3603 = vmatpush2.bf16.msra.mxu0 0
  %3604 = vmatprep.subr.bf16.mxu0 0
  %3605 = vmatpush2.bf16.msra.mxu0 0
  %3606 = vmatprep.subr.bf16.mxu0 0
  %3607 = vmatpush2.bf16.msra.mxu0 0
  %3608 = vmatprep.mubr.bf16.mxu0 0
  %3609 = vmatmul.mubr.bf16.gmra.mxu0 %v2301
  %v3610 = vpop.f32.mrf.mxu0
  %v3611 = vadd.f32 0.0, %v3610
  %v3612 = vpop.f32.mrf.mxu0
  %v3613 = vpop.f32.mrf.mxu0
  %v3614 = vadd.f32 0.0, %v3613
  %v3615 = vpop.f32.mrf.mxu0
  %3616 = vmatprep.mubr.bf16.mxu0 0
  %3617 = vmatmul.mubr.bf16.gmra.mxu0 %v2304
  %v3618 = vpop.f32.mrf.mxu0
  %v3619 = vadd.f32 0.0, %v3618
  %v3620 = vpop.f32.mrf.mxu0
  %v3621 = vpop.f32.mrf.mxu0
  %v3622 = vadd.f32 0.0, %v3621
  %v3623 = vpop.f32.mrf.mxu0
  %3624 = vmatprep.mubr.bf16.mxu0 0
  %3625 = vmatmul.mubr.bf16.gmra.mxu0 %v2307
  %v3626 = vpop.f32.mrf.mxu0
  %v3627 = vadd.f32 0.0, %v3626
  %v3628 = vpop.f32.mrf.mxu0
  %v3629 = vpop.f32.mrf.mxu0
  %v3630 = vadd.f32 0.0, %v3629
  %v3631 = vpop.f32.mrf.mxu0
  %3632 = vmatprep.mubr.bf16.mxu0 0
  %3633 = vmatmul.mubr.bf16.gmra.mxu0 %v2310
  %v3634 = vpop.f32.mrf.mxu0
  %v3635 = vadd.f32 0.0, %v3634
  %v3636 = vpop.f32.mrf.mxu0
  %v3637 = vpop.f32.mrf.mxu0
  %v3638 = vadd.f32 0.0, %v3637
  %v3639 = vpop.f32.mrf.mxu0
  %3640 = vmatprep.mubr.bf16.mxu0 0
  %3641 = vmatmul.mubr.bf16.gmra.mxu0 %v2313
  %v3642 = vpop.f32.mrf.mxu0
  %v3643 = vadd.f32 0.0, %v3642
  %v3644 = vpop.f32.mrf.mxu0
  %v3645 = vpop.f32.mrf.mxu0
  %v3646 = vadd.f32 0.0, %v3645
  %v3647 = vpop.f32.mrf.mxu0
  %3648 = vmatprep.mubr.bf16.mxu0 0
  %3649 = vmatmul.mubr.bf16.gmra.mxu0 %v2316
  %v3650 = vpop.f32.mrf.mxu0
  %v3651 = vadd.f32 0.0, %v3650
  %v3652 = vpop.f32.mrf.mxu0
  %v3653 = vpop.f32.mrf.mxu0
  %v3654 = vadd.f32 0.0, %v3653
  %v3655 = vpop.f32.mrf.mxu0
  %3656 = vmatprep.mubr.bf16.mxu0 0
  %3657 = vmatmul.mubr.bf16.gmra.mxu0 %v2319
  %v3658 = vpop.f32.mrf.mxu0
  %v3659 = vadd.f32 0.0, %v3658
  %v3660 = vpop.f32.mrf.mxu0
  %v3661 = vpop.f32.mrf.mxu0
  %v3662 = vadd.f32 0.0, %v3661
  %v3663 = vpop.f32.mrf.mxu0
  %3664 = vmatprep.mubr.bf16.mxu0 0
  %3665 = vmatmul.mubr.bf16.gmra.mxu0 %v2322
  %v3666 = vpop.f32.mrf.mxu0
  %v3667 = vadd.f32 0.0, %v3666
  %v3668 = vpop.f32.mrf.mxu0
  %v3669 = vpop.f32.mrf.mxu0
  %v3670 = vadd.f32 0.0, %v3669
  %v3671 = vpop.f32.mrf.mxu0
  %3672 = vmatprep.mubr.bf16.mxu0 0
  %3673 = vmatmul.mubr.bf16.gmra.mxu0 %v2325
  %v3674 = vpop.f32.mrf.mxu0
  %v3675 = vadd.f32 0.0, %v3674
  %v3676 = vpop.f32.mrf.mxu0
  %v3677 = vpop.f32.mrf.mxu0
  %v3678 = vadd.f32 0.0, %v3677
  %v3679 = vpop.f32.mrf.mxu0
  %3680 = vmatprep.mubr.bf16.mxu0 0
  %3681 = vmatmul.mubr.bf16.gmra.mxu0 %v2328
  %v3682 = vpop.f32.mrf.mxu0
  %v3683 = vadd.f32 0.0, %v3682
  %v3684 = vpop.f32.mrf.mxu0
  %v3685 = vpop.f32.mrf.mxu0
  %v3686 = vadd.f32 0.0, %v3685
  %v3687 = vpop.f32.mrf.mxu0
  %3688 = vmatprep.mubr.bf16.mxu0 0
  %3689 = vmatmul.mubr.bf16.gmra.mxu0 %v2331
  %v3690 = vpop.f32.mrf.mxu0
  %v3691 = vadd.f32 0.0, %v3690
  %v3692 = vpop.f32.mrf.mxu0
  %v3693 = vpop.f32.mrf.mxu0
  %v3694 = vadd.f32 0.0, %v3693
  %v3695 = vpop.f32.mrf.mxu0
  %3696 = vmatprep.mubr.bf16.mxu0 0
  %3697 = vmatmul.mubr.bf16.gmra.mxu0 %v2334
  %v3698 = vpop.f32.mrf.mxu0
  %v3699 = vadd.f32 0.0, %v3698
  %v3700 = vpop.f32.mrf.mxu0
  %v3701 = vpop.f32.mrf.mxu0
  %v3702 = vadd.f32 0.0, %v3701
  %v3703 = vpop.f32.mrf.mxu0
  %3704 = vmatprep.mubr.bf16.mxu0 0
  %3705 = vmatmul.mubr.bf16.gmra.mxu0 %v2337
  %v3706 = vpop.f32.mrf.mxu0
  %v3707 = vadd.f32 0.0, %v3706
  %v3708 = vpop.f32.mrf.mxu0
  %v3709 = vpop.f32.mrf.mxu0
  %v3710 = vadd.f32 0.0, %v3709
  %v3711 = vpop.f32.mrf.mxu0
  %3712 = vmatprep.mubr.bf16.mxu0 0
  %3713 = vmatmul.mubr.bf16.gmra.mxu0 %v2340
  %v3714 = vpop.f32.mrf.mxu0
  %v3715 = vadd.f32 0.0, %v3714
  %v3716 = vpop.f32.mrf.mxu0
  %v3717 = vpop.f32.mrf.mxu0
  %v3718 = vadd.f32 0.0, %v3717
  %v3719 = vpop.f32.mrf.mxu0
  %3720 = vmatprep.mubr.bf16.mxu0 0
  %3721 = vmatmul.mubr.bf16.gmra.mxu0 %v2343
  %v3722 = vpop.f32.mrf.mxu0
  %v3723 = vadd.f32 0.0, %v3722
  %v3724 = vpop.f32.mrf.mxu0
  %v3725 = vpop.f32.mrf.mxu0
  %v3726 = vadd.f32 0.0, %v3725
  %v3727 = vpop.f32.mrf.mxu0
  %3728 = vmatprep.mubr.bf16.mxu0 0
  %3729 = vmatmul.mubr.bf16.gmra.mxu0 %v3568
  %v3730 = vpop.f32.mrf.mxu0
  %v3731 = vadd.f32 0.0, %v3730
  %v3732 = vpop.f32.mrf.mxu0
  %v3733 = vpop.f32.mrf.mxu0
  %v3734 = vadd.f32 0.0, %v3733
  %v3735 = vpop.f32.mrf.mxu0
  %3736 = vmatprep.mubr.bf16.mxu0 0
  %3737 = vmatmul.mubr.bf16.gmra.mxu0 %v2349
  %v3738 = vpop.f32.mrf.mxu0
  %v3739 = vadd.f32 0.0, %v3738
  %v3740 = vpop.f32.mrf.mxu0
  %v3741 = vpop.f32.mrf.mxu0
  %v3742 = vadd.f32 0.0, %v3741
  %v3743 = vpop.f32.mrf.mxu0
  %3744 = vmatprep.mubr.bf16.mxu0 0
  %3745 = vmatmul.mubr.bf16.gmra.mxu0 %v2352
  %v3746 = vpop.f32.mrf.mxu0
  %v3747 = vadd.f32 0.0, %v3746
  %v3748 = vpop.f32.mrf.mxu0
  %v3749 = vpop.f32.mrf.mxu0
  %v3750 = vadd.f32 0.0, %v3749
  %v3751 = vpop.f32.mrf.mxu0
  %3752 = vmatprep.mubr.bf16.mxu0 0
  %3753 = vmatmul.mubr.bf16.gmra.mxu0 %v2355
  %v3754 = vpop.f32.mrf.mxu0
  %v3755 = vadd.f32 0.0, %v3754
  %v3756 = vpop.f32.mrf.mxu0
  %v3757 = vpop.f32.mrf.mxu0
  %v3758 = vadd.f32 0.0, %v3757
  %v3759 = vpop.f32.mrf.mxu0
  %3760 = vmatprep.mubr.bf16.mxu0 0
  %3761 = vmatmul.mubr.bf16.gmra.mxu0 %v2358
  %v3762 = vpop.f32.mrf.mxu0
  %v3763 = vadd.f32 0.0, %v3762
  %v3764 = vpop.f32.mrf.mxu0
  %v3765 = vpop.f32.mrf.mxu0
  %v3766 = vadd.f32 0.0, %v3765
  %v3767 = vpop.f32.mrf.mxu0
  %3768 = vmatprep.mubr.bf16.mxu0 0
  %3769 = vmatmul.mubr.bf16.gmra.mxu0 %v2361
  %v3770 = vpop.f32.mrf.mxu0
  %v3771 = vadd.f32 0.0, %v3770
  %v3772 = vpop.f32.mrf.mxu0
  %v3773 = vpop.f32.mrf.mxu0
  %v3774 = vadd.f32 0.0, %v3773
  %v3775 = vpop.f32.mrf.mxu0
  %3776 = vmatprep.mubr.bf16.mxu0 0
  %3777 = vmatmul.mubr.bf16.gmra.mxu0 %v2364
  %v3778 = vpop.f32.mrf.mxu0
  %v3779 = vadd.f32 0.0, %v3778
  %v3780 = vpop.f32.mrf.mxu0
  %v3781 = vpop.f32.mrf.mxu0
  %v3782 = vadd.f32 0.0, %v3781
  %v3783 = vpop.f32.mrf.mxu0
  %3784 = vmatprep.mubr.bf16.mxu0 0
  %3785 = vmatmul.mubr.bf16.gmra.mxu0 %v2367
  %v3786 = vpop.f32.mrf.mxu0
  %v3787 = vadd.f32 0.0, %v3786
  %v3788 = vpop.f32.mrf.mxu0
  %v3789 = vpop.f32.mrf.mxu0
  %v3790 = vadd.f32 0.0, %v3789
  %v3791 = vpop.f32.mrf.mxu0
  %3792 = vmatprep.mubr.bf16.mxu0 0
  %3793 = vmatmul.mubr.bf16.gmra.mxu0 %v2370
  %v3794 = vpop.f32.mrf.mxu0
  %v3795 = vadd.f32 0.0, %v3794
  %v3796 = vpop.f32.mrf.mxu0
  %v3797 = vpop.f32.mrf.mxu0
  %v3798 = vadd.f32 0.0, %v3797
  %v3799 = vpop.f32.mrf.mxu0
  %3800 = vmatprep.mubr.bf16.mxu0 0
  %3801 = vmatmul.mubr.bf16.gmra.mxu0 %v2373
  %v3802 = vpop.f32.mrf.mxu0
  %v3803 = vadd.f32 0.0, %v3802
  %v3804 = vpop.f32.mrf.mxu0
  %v3805 = vpop.f32.mrf.mxu0
  %v3806 = vadd.f32 0.0, %v3805
  %v3807 = vpop.f32.mrf.mxu0
  %3808 = vmatprep.mubr.bf16.mxu0 0
  %3809 = vmatmul.mubr.bf16.gmra.mxu0 %v2376
  %v3810 = vpop.f32.mrf.mxu0
  %v3811 = vadd.f32 0.0, %v3810
  %v3812 = vpop.f32.mrf.mxu0
  %v3813 = vpop.f32.mrf.mxu0
  %v3814 = vadd.f32 0.0, %v3813
  %v3815 = vpop.f32.mrf.mxu0
  %3816 = vmatprep.mubr.bf16.mxu0 0
  %3817 = vmatmul.mubr.bf16.gmra.mxu0 %v2379
  %v3818 = vpop.f32.mrf.mxu0
  %v3819 = vadd.f32 0.0, %v3818
  %v3820 = vpop.f32.mrf.mxu0
  %v3821 = vpop.f32.mrf.mxu0
  %v3822 = vadd.f32 0.0, %v3821
  %v3823 = vpop.f32.mrf.mxu0
  %3824 = vmatprep.mubr.bf16.mxu0 0
  %3825 = vmatmul.mubr.bf16.gmra.mxu0 %v2382
  %v3826 = vpop.f32.mrf.mxu0
  %v3827 = vadd.f32 0.0, %v3826
  %v3828 = vpop.f32.mrf.mxu0
  %v3829 = vpop.f32.mrf.mxu0
  %v3830 = vadd.f32 0.0, %v3829
  %v3831 = vpop.f32.mrf.mxu0
  %3832 = vmatprep.mubr.bf16.mxu0 0
  %3833 = vmatmul.mubr.bf16.gmra.mxu0 %v2385
  %v3834 = vpop.f32.mrf.mxu0
  %v3835 = vadd.f32 0.0, %v3834
  %v3836 = vpop.f32.mrf.mxu0
  %v3837 = vpop.f32.mrf.mxu0
  %v3838 = vadd.f32 0.0, %v3837
  %v3839 = vpop.f32.mrf.mxu0
  %3840 = vmatprep.mubr.bf16.mxu0 0
  %3841 = vmatmul.mubr.bf16.gmra.mxu0 %v2388
  %v3842 = vpop.f32.mrf.mxu0
  %v3843 = vadd.f32 0.0, %v3842
  %v3844 = vpop.f32.mrf.mxu0
  %v3845 = vpop.f32.mrf.mxu0
  %v3846 = vadd.f32 0.0, %v3845
  %v3847 = vpop.f32.mrf.mxu0
  %3848 = vmatprep.mubr.bf16.mxu0 0
  %3849 = vmatmul.mubr.bf16.gmra.mxu0 %v2391
  %v3850 = vpop.f32.mrf.mxu0
  %v3851 = vadd.f32 0.0, %v3850
  %v3852 = vpop.f32.mrf.mxu0
  %v3853 = vpop.f32.mrf.mxu0
  %v3854 = vadd.f32 0.0, %v3853
  %v3855 = vpop.f32.mrf.mxu0
  %3856 = vmatprep.mubr.bf16.mxu0 0
  %3857 = vmatmul.mubr.bf16.gmra.mxu0 %v3571
  %v3858 = vpop.f32.mrf.mxu0
  %v3859 = vadd.f32 0.0, %v3858
  %v3860 = vpop.f32.mrf.mxu0
  %v3861 = vpop.f32.mrf.mxu0
  %v3862 = vadd.f32 0.0, %v3861
  %v3863 = vpop.f32.mrf.mxu0
  %3864 = vdwg.mxu0
  %v3865 = vadd.f32 %v3477, %v3611
  %v3866 = vadd.f32 %v3478, %v3614
  %v3867 = vadd.f32 %v3479, %v3619
  %v3868 = vadd.f32 %v3480, %v3622
  %v3869 = vadd.f32 %v3481, %v3627
  %v3870 = vadd.f32 %v3482, %v3630
  %v3871 = vadd.f32 %v3483, %v3635
  %v3872 = vadd.f32 %v3484, %v3638
  %v3873 = vadd.f32 %v3485, %v3643
  %v3874 = vadd.f32 %v3486, %v3646
  %v3875 = vadd.f32 %v3487, %v3651
  %v3876 = vadd.f32 %v3488, %v3654
  %v3877 = vadd.f32 %v3489, %v3659
  %v3878 = vadd.f32 %v3490, %v3662
  %v3879 = vadd.f32 %v3491, %v3667
  %v3880 = vadd.f32 %v3492, %v3670
  %v3881 = vadd.f32 %v3493, %v3675
  %v3882 = vadd.f32 %v3494, %v3678
  %v3883 = vadd.f32 %v3495, %v3683
  %v3884 = vadd.f32 %v3496, %v3686
  %v3885 = vadd.f32 %v3497, %v3691
  %v3886 = vadd.f32 %v3498, %v3694
  %v3887 = vadd.f32 %v3499, %v3699
  %v3888 = vadd.f32 %v3500, %v3702
  %v3889 = vadd.f32 %v3501, %v3707
  %v3890 = vadd.f32 %v3502, %v3710
  %v3891 = vadd.f32 %v3503, %v3715
  %v3892 = vadd.f32 %v3504, %v3718
  %v3893 = vadd.f32 %v3505, %v3723
  %v3894 = vadd.f32 %v3506, %v3726
  %v3895 = vadd.f32 %v3507, %v3731
  %v3896 = vadd.f32 %v3508, %v3734
  %v3897 = vadd.f32 %v3509, %v3739
  %v3898 = vadd.f32 %v3510, %v3742
  %v3899 = vadd.f32 %v3511, %v3747
  %v3900 = vadd.f32 %v3512, %v3750
  %v3901 = vadd.f32 %v3513, %v3755
  %v3902 = vadd.f32 %v3514, %v3758
  %v3903 = vadd.f32 %v3515, %v3763
  %v3904 = vadd.f32 %v3516, %v3766
  %v3905 = vadd.f32 %v3517, %v3771
  %v3906 = vadd.f32 %v3518, %v3774
  %v3907 = vadd.f32 %v3519, %v3779
  %v3908 = vadd.f32 %v3520, %v3782
  %v3909 = vadd.f32 %v3521, %v3787
  %v3910 = vadd.f32 %v3522, %v3790
  %v3911 = vadd.f32 %v3523, %v3795
  %v3912 = vadd.f32 %v3524, %v3798
  %v3913 = vadd.f32 %v3525, %v3803
  %v3914 = vadd.f32 %v3526, %v3806
  %v3915 = vadd.f32 %v3527, %v3811
  %v3916 = vadd.f32 %v3528, %v3814
  %v3917 = vadd.f32 %v3529, %v3819
  %v3918 = vadd.f32 %v3530, %v3822
  %v3919 = vadd.f32 %v3531, %v3827
  %v3920 = vadd.f32 %v3532, %v3830
  %v3921 = vadd.f32 %v3533, %v3835
  %v3922 = vadd.f32 %v3534, %v3838
  %v3923 = vadd.f32 %v3535, %v3843
  %v3924 = vadd.f32 %v3536, %v3846
  %v3925 = vadd.f32 %v3537, %v3851
  %v3926 = vadd.f32 %v3538, %v3854
  %v3927 = vadd.f32 %v3539, %v3859
  %v3928 = vadd.f32 %v3540, %v3862
  %v3933 = vunpack.c.l.b16 %v76
  %v3934 = vunpack.c.l.b16 %v77
  %v3935 = vunpack.c.l.b16 %v130
  %v3936 = vunpack.c.l.b16 %v131
  %v3937 = vpack.c.b16 %v3934, %v3933
  %v3938 = vpack.c.b16 %v3936, %v3935
  %v3940 = vsel %vm1004, %v3937, 0
  %v3943 = vsel %vm1004, %v3938, 0
  %v3946 = vsel %vm1101, %v22, 0
  %3948 = vmatprep.subr.bf16.mxu0 0
  %3949 = vmatpush1.bf16.msra.mxu0 0
  %3950 = vmatprep.subr.bf16.mxu0 0
  %3951 = vmatpush1.bf16.msra.mxu0 0
  %3952 = vmatprep.subr.bf16.mxu0 0
  %3953 = vmatpush1.bf16.msra.mxu0 0
  %3954 = vmatprep.subr.bf16.mxu0 0
  %3955 = vmatpush1.bf16.msra.mxu0 0
  %3956 = vmatprep.subr.bf16.mxu0 0
  %3957 = vmatpush1.bf16.msra.mxu0 0
  %3958 = vmatprep.subr.bf16.mxu0 0
  %3959 = vmatpush1.bf16.msra.mxu0 0
  %3960 = vmatprep.subr.bf16.mxu0 0
  %3961 = vmatpush1.bf16.msra.mxu0 0
  %3962 = vmatprep.subr.bf16.mxu0 0
  %3963 = vmatpush1.bf16.msra.mxu0 %v3946
  %3964 = vmatprep.subr.bf16.mxu0 0
  %3965 = vmatpush2.bf16.msra.mxu0 0
  %3966 = vmatprep.subr.bf16.mxu0 0
  %3967 = vmatpush2.bf16.msra.mxu0 0
  %3968 = vmatprep.subr.bf16.mxu0 0
  %3969 = vmatpush2.bf16.msra.mxu0 0
  %3970 = vmatprep.subr.bf16.mxu0 0
  %3971 = vmatpush2.bf16.msra.mxu0 0
  %3972 = vmatprep.subr.bf16.mxu0 0
  %3973 = vmatpush2.bf16.msra.mxu0 0
  %3974 = vmatprep.subr.bf16.mxu0 0
  %3975 = vmatpush2.bf16.msra.mxu0 0
  %3976 = vmatprep.subr.bf16.mxu0 0
  %3977 = vmatpush2.bf16.msra.mxu0 0
  %3978 = vmatprep.subr.bf16.mxu0 0
  %3979 = vmatpush2.bf16.msra.mxu0 0
  %3980 = vmatprep.mubr.bf16.mxu0 0
  %3981 = vmatmul.mubr.bf16.gmra.mxu0 %v1561
  %v3982 = vpop.f32.mrf.mxu0
  %v3983 = vadd.f32 0.0, %v3982
  %v3984 = vpop.f32.mrf.mxu0
  %v3985 = vpop.f32.mrf.mxu0
  %v3986 = vadd.f32 0.0, %v3985
  %v3987 = vpop.f32.mrf.mxu0
  %3988 = vmatprep.mubr.bf16.mxu0 0
  %3989 = vmatmul.mubr.bf16.gmra.mxu0 %v1564
  %v3990 = vpop.f32.mrf.mxu0
  %v3991 = vadd.f32 0.0, %v3990
  %v3992 = vpop.f32.mrf.mxu0
  %v3993 = vpop.f32.mrf.mxu0
  %v3994 = vadd.f32 0.0, %v3993
  %v3995 = vpop.f32.mrf.mxu0
  %3996 = vmatprep.mubr.bf16.mxu0 0
  %3997 = vmatmul.mubr.bf16.gmra.mxu0 %v1567
  %v3998 = vpop.f32.mrf.mxu0
  %v3999 = vadd.f32 0.0, %v3998
  %v4000 = vpop.f32.mrf.mxu0
  %v4001 = vpop.f32.mrf.mxu0
  %v4002 = vadd.f32 0.0, %v4001
  %v4003 = vpop.f32.mrf.mxu0
  %4004 = vmatprep.mubr.bf16.mxu0 0
  %4005 = vmatmul.mubr.bf16.gmra.mxu0 %v1570
  %v4006 = vpop.f32.mrf.mxu0
  %v4007 = vadd.f32 0.0, %v4006
  %v4008 = vpop.f32.mrf.mxu0
  %v4009 = vpop.f32.mrf.mxu0
  %v4010 = vadd.f32 0.0, %v4009
  %v4011 = vpop.f32.mrf.mxu0
  %4012 = vmatprep.mubr.bf16.mxu0 0
  %4013 = vmatmul.mubr.bf16.gmra.mxu0 %v1573
  %v4014 = vpop.f32.mrf.mxu0
  %v4015 = vadd.f32 0.0, %v4014
  %v4016 = vpop.f32.mrf.mxu0
  %v4017 = vpop.f32.mrf.mxu0
  %v4018 = vadd.f32 0.0, %v4017
  %v4019 = vpop.f32.mrf.mxu0
  %4020 = vmatprep.mubr.bf16.mxu0 0
  %4021 = vmatmul.mubr.bf16.gmra.mxu0 %v1576
  %v4022 = vpop.f32.mrf.mxu0
  %v4023 = vadd.f32 0.0, %v4022
  %v4024 = vpop.f32.mrf.mxu0
  %v4025 = vpop.f32.mrf.mxu0
  %v4026 = vadd.f32 0.0, %v4025
  %v4027 = vpop.f32.mrf.mxu0
  %4028 = vmatprep.mubr.bf16.mxu0 0
  %4029 = vmatmul.mubr.bf16.gmra.mxu0 %v1579
  %v4030 = vpop.f32.mrf.mxu0
  %v4031 = vadd.f32 0.0, %v4030
  %v4032 = vpop.f32.mrf.mxu0
  %v4033 = vpop.f32.mrf.mxu0
  %v4034 = vadd.f32 0.0, %v4033
  %v4035 = vpop.f32.mrf.mxu0
  %4036 = vmatprep.mubr.bf16.mxu0 0
  %4037 = vmatmul.mubr.bf16.gmra.mxu0 %v1582
  %v4038 = vpop.f32.mrf.mxu0
  %v4039 = vadd.f32 0.0, %v4038
  %v4040 = vpop.f32.mrf.mxu0
  %v4041 = vpop.f32.mrf.mxu0
  %v4042 = vadd.f32 0.0, %v4041
  %v4043 = vpop.f32.mrf.mxu0
  %4044 = vmatprep.mubr.bf16.mxu0 0
  %4045 = vmatmul.mubr.bf16.gmra.mxu0 %v1585
  %v4046 = vpop.f32.mrf.mxu0
  %v4047 = vadd.f32 0.0, %v4046
  %v4048 = vpop.f32.mrf.mxu0
  %v4049 = vpop.f32.mrf.mxu0
  %v4050 = vadd.f32 0.0, %v4049
  %v4051 = vpop.f32.mrf.mxu0
  %4052 = vmatprep.mubr.bf16.mxu0 0
  %4053 = vmatmul.mubr.bf16.gmra.mxu0 %v1588
  %v4054 = vpop.f32.mrf.mxu0
  %v4055 = vadd.f32 0.0, %v4054
  %v4056 = vpop.f32.mrf.mxu0
  %v4057 = vpop.f32.mrf.mxu0
  %v4058 = vadd.f32 0.0, %v4057
  %v4059 = vpop.f32.mrf.mxu0
  %4060 = vmatprep.mubr.bf16.mxu0 0
  %4061 = vmatmul.mubr.bf16.gmra.mxu0 %v1591
  %v4062 = vpop.f32.mrf.mxu0
  %v4063 = vadd.f32 0.0, %v4062
  %v4064 = vpop.f32.mrf.mxu0
  %v4065 = vpop.f32.mrf.mxu0
  %v4066 = vadd.f32 0.0, %v4065
  %v4067 = vpop.f32.mrf.mxu0
  %4068 = vmatprep.mubr.bf16.mxu0 0
  %4069 = vmatmul.mubr.bf16.gmra.mxu0 %v1594
  %v4070 = vpop.f32.mrf.mxu0
  %v4071 = vadd.f32 0.0, %v4070
  %v4072 = vpop.f32.mrf.mxu0
  %v4073 = vpop.f32.mrf.mxu0
  %v4074 = vadd.f32 0.0, %v4073
  %v4075 = vpop.f32.mrf.mxu0
  %4076 = vmatprep.mubr.bf16.mxu0 0
  %4077 = vmatmul.mubr.bf16.gmra.mxu0 %v1597
  %v4078 = vpop.f32.mrf.mxu0
  %v4079 = vadd.f32 0.0, %v4078
  %v4080 = vpop.f32.mrf.mxu0
  %v4081 = vpop.f32.mrf.mxu0
  %v4082 = vadd.f32 0.0, %v4081
  %v4083 = vpop.f32.mrf.mxu0
  %4084 = vmatprep.mubr.bf16.mxu0 0
  %4085 = vmatmul.mubr.bf16.gmra.mxu0 %v1600
  %v4086 = vpop.f32.mrf.mxu0
  %v4087 = vadd.f32 0.0, %v4086
  %v4088 = vpop.f32.mrf.mxu0
  %v4089 = vpop.f32.mrf.mxu0
  %v4090 = vadd.f32 0.0, %v4089
  %v4091 = vpop.f32.mrf.mxu0
  %4092 = vmatprep.mubr.bf16.mxu0 0
  %4093 = vmatmul.mubr.bf16.gmra.mxu0 %v2764
  %v4094 = vpop.f32.mrf.mxu0
  %v4095 = vadd.f32 0.0, %v4094
  %v4096 = vpop.f32.mrf.mxu0
  %v4097 = vpop.f32.mrf.mxu0
  %v4098 = vadd.f32 0.0, %v4097
  %v4099 = vpop.f32.mrf.mxu0
  %4100 = vmatprep.mubr.bf16.mxu0 0
  %4101 = vmatmul.mubr.bf16.gmra.mxu0 %v3940
  %v4102 = vpop.f32.mrf.mxu0
  %v4103 = vadd.f32 0.0, %v4102
  %v4104 = vpop.f32.mrf.mxu0
  %v4105 = vpop.f32.mrf.mxu0
  %v4106 = vadd.f32 0.0, %v4105
  %v4107 = vpop.f32.mrf.mxu0
  %4108 = vmatprep.mubr.bf16.mxu0 0
  %4109 = vmatmul.mubr.bf16.gmra.mxu0 %v1609
  %v4110 = vpop.f32.mrf.mxu0
  %v4111 = vadd.f32 0.0, %v4110
  %v4112 = vpop.f32.mrf.mxu0
  %v4113 = vpop.f32.mrf.mxu0
  %v4114 = vadd.f32 0.0, %v4113
  %v4115 = vpop.f32.mrf.mxu0
  %4116 = vmatprep.mubr.bf16.mxu0 0
  %4117 = vmatmul.mubr.bf16.gmra.mxu0 %v1612
  %v4118 = vpop.f32.mrf.mxu0
  %v4119 = vadd.f32 0.0, %v4118
  %v4120 = vpop.f32.mrf.mxu0
  %v4121 = vpop.f32.mrf.mxu0
  %v4122 = vadd.f32 0.0, %v4121
  %v4123 = vpop.f32.mrf.mxu0
  %4124 = vmatprep.mubr.bf16.mxu0 0
  %4125 = vmatmul.mubr.bf16.gmra.mxu0 %v1615
  %v4126 = vpop.f32.mrf.mxu0
  %v4127 = vadd.f32 0.0, %v4126
  %v4128 = vpop.f32.mrf.mxu0
  %v4129 = vpop.f32.mrf.mxu0
  %v4130 = vadd.f32 0.0, %v4129
  %v4131 = vpop.f32.mrf.mxu0
  %4132 = vmatprep.mubr.bf16.mxu0 0
  %4133 = vmatmul.mubr.bf16.gmra.mxu0 %v1618
  %v4134 = vpop.f32.mrf.mxu0
  %v4135 = vadd.f32 0.0, %v4134
  %v4136 = vpop.f32.mrf.mxu0
  %v4137 = vpop.f32.mrf.mxu0
  %v4138 = vadd.f32 0.0, %v4137
  %v4139 = vpop.f32.mrf.mxu0
  %4140 = vmatprep.mubr.bf16.mxu0 0
  %4141 = vmatmul.mubr.bf16.gmra.mxu0 %v1621
  %v4142 = vpop.f32.mrf.mxu0
  %v4143 = vadd.f32 0.0, %v4142
  %v4144 = vpop.f32.mrf.mxu0
  %v4145 = vpop.f32.mrf.mxu0
  %v4146 = vadd.f32 0.0, %v4145
  %v4147 = vpop.f32.mrf.mxu0
  %4148 = vmatprep.mubr.bf16.mxu0 0
  %4149 = vmatmul.mubr.bf16.gmra.mxu0 %v1624
  %v4150 = vpop.f32.mrf.mxu0
  %v4151 = vadd.f32 0.0, %v4150
  %v4152 = vpop.f32.mrf.mxu0
  %v4153 = vpop.f32.mrf.mxu0
  %v4154 = vadd.f32 0.0, %v4153
  %v4155 = vpop.f32.mrf.mxu0
  %4156 = vmatprep.mubr.bf16.mxu0 0
  %4157 = vmatmul.mubr.bf16.gmra.mxu0 %v1627
  %v4158 = vpop.f32.mrf.mxu0
  %v4159 = vadd.f32 0.0, %v4158
  %v4160 = vpop.f32.mrf.mxu0
  %v4161 = vpop.f32.mrf.mxu0
  %v4162 = vadd.f32 0.0, %v4161
  %v4163 = vpop.f32.mrf.mxu0
  %4164 = vmatprep.mubr.bf16.mxu0 0
  %4165 = vmatmul.mubr.bf16.gmra.mxu0 %v1630
  %v4166 = vpop.f32.mrf.mxu0
  %v4167 = vadd.f32 0.0, %v4166
  %v4168 = vpop.f32.mrf.mxu0
  %v4169 = vpop.f32.mrf.mxu0
  %v4170 = vadd.f32 0.0, %v4169
  %v4171 = vpop.f32.mrf.mxu0
  %4172 = vmatprep.mubr.bf16.mxu0 0
  %4173 = vmatmul.mubr.bf16.gmra.mxu0 %v1633
  %v4174 = vpop.f32.mrf.mxu0
  %v4175 = vadd.f32 0.0, %v4174
  %v4176 = vpop.f32.mrf.mxu0
  %v4177 = vpop.f32.mrf.mxu0
  %v4178 = vadd.f32 0.0, %v4177
  %v4179 = vpop.f32.mrf.mxu0
  %4180 = vmatprep.mubr.bf16.mxu0 0
  %4181 = vmatmul.mubr.bf16.gmra.mxu0 %v1636
  %v4182 = vpop.f32.mrf.mxu0
  %v4183 = vadd.f32 0.0, %v4182
  %v4184 = vpop.f32.mrf.mxu0
  %v4185 = vpop.f32.mrf.mxu0
  %v4186 = vadd.f32 0.0, %v4185
  %v4187 = vpop.f32.mrf.mxu0
  %4188 = vmatprep.mubr.bf16.mxu0 0
  %4189 = vmatmul.mubr.bf16.gmra.mxu0 %v1639
  %v4190 = vpop.f32.mrf.mxu0
  %v4191 = vadd.f32 0.0, %v4190
  %v4192 = vpop.f32.mrf.mxu0
  %v4193 = vpop.f32.mrf.mxu0
  %v4194 = vadd.f32 0.0, %v4193
  %v4195 = vpop.f32.mrf.mxu0
  %4196 = vmatprep.mubr.bf16.mxu0 0
  %4197 = vmatmul.mubr.bf16.gmra.mxu0 %v1642
  %v4198 = vpop.f32.mrf.mxu0
  %v4199 = vadd.f32 0.0, %v4198
  %v4200 = vpop.f32.mrf.mxu0
  %v4201 = vpop.f32.mrf.mxu0
  %v4202 = vadd.f32 0.0, %v4201
  %v4203 = vpop.f32.mrf.mxu0
  %4204 = vmatprep.mubr.bf16.mxu0 0
  %4205 = vmatmul.mubr.bf16.gmra.mxu0 %v1645
  %v4206 = vpop.f32.mrf.mxu0
  %v4207 = vadd.f32 0.0, %v4206
  %v4208 = vpop.f32.mrf.mxu0
  %v4209 = vpop.f32.mrf.mxu0
  %v4210 = vadd.f32 0.0, %v4209
  %v4211 = vpop.f32.mrf.mxu0
  %4212 = vmatprep.mubr.bf16.mxu0 0
  %4213 = vmatmul.mubr.bf16.gmra.mxu0 %v1648
  %v4214 = vpop.f32.mrf.mxu0
  %v4215 = vadd.f32 0.0, %v4214
  %v4216 = vpop.f32.mrf.mxu0
  %v4217 = vpop.f32.mrf.mxu0
  %v4218 = vadd.f32 0.0, %v4217
  %v4219 = vpop.f32.mrf.mxu0
  %4220 = vmatprep.mubr.bf16.mxu0 0
  %4221 = vmatmul.mubr.bf16.gmra.mxu0 %v2767
  %v4222 = vpop.f32.mrf.mxu0
  %v4223 = vadd.f32 0.0, %v4222
  %v4224 = vpop.f32.mrf.mxu0
  %v4225 = vpop.f32.mrf.mxu0
  %v4226 = vadd.f32 0.0, %v4225
  %v4227 = vpop.f32.mrf.mxu0
  %4228 = vmatprep.mubr.bf16.mxu0 0
  %4229 = vmatmul.mubr.bf16.gmra.mxu0 %v3943
  %v4230 = vpop.f32.mrf.mxu0
  %v4231 = vadd.f32 0.0, %v4230
  %v4232 = vpop.f32.mrf.mxu0
  %v4233 = vpop.f32.mrf.mxu0
  %v4234 = vadd.f32 0.0, %v4233
  %v4235 = vpop.f32.mrf.mxu0
  %4236 = vdwg.mxu0
  %v4237 = vadd.f32 %v3865, %v3983
  %v4238 = vadd.f32 %v3866, %v3986
  %v4239 = vadd.f32 %v3867, %v3991
  %v4240 = vadd.f32 %v3868, %v3994
  %v4241 = vadd.f32 %v3869, %v3999
  %v4242 = vadd.f32 %v3870, %v4002
  %v4243 = vadd.f32 %v3871, %v4007
  %v4244 = vadd.f32 %v3872, %v4010
  %v4245 = vadd.f32 %v3873, %v4015
  %v4246 = vadd.f32 %v3874, %v4018
  %v4247 = vadd.f32 %v3875, %v4023
  %v4248 = vadd.f32 %v3876, %v4026
  %v4249 = vadd.f32 %v3877, %v4031
  %v4250 = vadd.f32 %v3878, %v4034
  %v4251 = vadd.f32 %v3879, %v4039
  %v4252 = vadd.f32 %v3880, %v4042
  %v4253 = vadd.f32 %v3881, %v4047
  %v4254 = vadd.f32 %v3882, %v4050
  %v4255 = vadd.f32 %v3883, %v4055
  %v4256 = vadd.f32 %v3884, %v4058
  %v4257 = vadd.f32 %v3885, %v4063
  %v4258 = vadd.f32 %v3886, %v4066
  %v4259 = vadd.f32 %v3887, %v4071
  %v4260 = vadd.f32 %v3888, %v4074
  %v4261 = vadd.f32 %v3889, %v4079
  %v4262 = vadd.f32 %v3890, %v4082
  %v4263 = vadd.f32 %v3891, %v4087
  %v4264 = vadd.f32 %v3892, %v4090
  %v4265 = vadd.f32 %v3893, %v4095
  %v4266 = vadd.f32 %v3894, %v4098
  %v4267 = vadd.f32 %v3895, %v4103
  %v4268 = vadd.f32 %v3896, %v4106
  %v4269 = vadd.f32 %v3897, %v4111
  %v4270 = vadd.f32 %v3898, %v4114
  %v4271 = vadd.f32 %v3899, %v4119
  %v4272 = vadd.f32 %v3900, %v4122
  %v4273 = vadd.f32 %v3901, %v4127
  %v4274 = vadd.f32 %v3902, %v4130
  %v4275 = vadd.f32 %v3903, %v4135
  %v4276 = vadd.f32 %v3904, %v4138
  %v4277 = vadd.f32 %v3905, %v4143
  %v4278 = vadd.f32 %v3906, %v4146
  %v4279 = vadd.f32 %v3907, %v4151
  %v4280 = vadd.f32 %v3908, %v4154
  %v4281 = vadd.f32 %v3909, %v4159
  %v4282 = vadd.f32 %v3910, %v4162
  %v4283 = vadd.f32 %v3911, %v4167
  %v4284 = vadd.f32 %v3912, %v4170
  %v4285 = vadd.f32 %v3913, %v4175
  %v4286 = vadd.f32 %v3914, %v4178
  %v4287 = vadd.f32 %v3915, %v4183
  %v4288 = vadd.f32 %v3916, %v4186
  %v4289 = vadd.f32 %v3917, %v4191
  %v4290 = vadd.f32 %v3918, %v4194
  %v4291 = vadd.f32 %v3919, %v4199
  %v4292 = vadd.f32 %v3920, %v4202
  %v4293 = vadd.f32 %v3921, %v4207
  %v4294 = vadd.f32 %v3922, %v4210
  %v4295 = vadd.f32 %v3923, %v4215
  %v4296 = vadd.f32 %v3924, %v4218
  %v4297 = vadd.f32 %v3925, %v4223
  %v4298 = vadd.f32 %v3926, %v4226
  %v4299 = vadd.f32 %v3927, %v4231
  %v4300 = vadd.f32 %v3928, %v4234
  %v4302 = vshrl.u32 %v76, 16
  %v4304 = vrot.slane %v4302, 4
  %v4305 = vshll.u32 %v76, 16
  %v4307 = vrot.slane %v4305, 5
  %v4308 = vor.u32 %v4304, %v4307
  %v4309 = vrot.slane %v4308, 4
  %v4311 = vshll.u32 %v77, 16
  %v4313 = vrot.slane %v4311, 5
  %v4314 = vsel %vm135, %v4309, %v4313
  %v4315 = vshrl.u32 %v77, 16
  %v4317 = vrot.slane %v4315, 4
  %v4318 = vor.u32 %v4317, %v4313
  %v4319 = vrot.slane %v4318, 4
  %v4321 = vshll.u32 %v78, 16
  %v4323 = vrot.slane %v4321, 5
  %v4324 = vsel %vm135, %v4319, %v4323
  %v4326 = vshrl.u32 %v130, 16
  %v4328 = vrot.slane %v4326, 4
  %v4329 = vshll.u32 %v130, 16
  %v4331 = vrot.slane %v4329, 5
  %v4332 = vor.u32 %v4328, %v4331
  %v4333 = vrot.slane %v4332, 4
  %v4335 = vshll.u32 %v131, 16
  %v4337 = vrot.slane %v4335, 5
  %v4338 = vsel %vm135, %v4333, %v4337
  %v4339 = vshrl.u32 %v131, 16
  %v4341 = vrot.slane %v4339, 4
  %v4342 = vor.u32 %v4341, %v4337
  %v4343 = vrot.slane %v4342, 4
  %v4345 = vshll.u32 %v132, 16
  %v4347 = vrot.slane %v4345, 5
  %v4348 = vsel %vm135, %v4343, %v4347
  %v4349 = vunpack.c.l.b16 %v4314
  %v4350 = vunpack.c.l.b16 %v4324
  %v4351 = vunpack.c.l.b16 %v4338
  %v4352 = vunpack.c.l.b16 %v4348
  %v4353 = vpack.c.b16 %v4350, %v4349
  %v4354 = vpack.c.b16 %v4352, %v4351
  %v4356 = vunpack.c.l.b16 %v23
  %v4357 = vpack.c.b16 %v4356, %v4356
  %v4358 = vrot.slane %v4357, 2
  %v4360 = vsel %vm1004, %v4353, 0
  %v4363 = vsel %vm1004, %v4354, 0
  %v4366 = vsel %vm1101, %v4358, 0
  %4368 = vmatprep.subr.bf16.mxu0 0
  %4369 = vmatpush1.bf16.msra.mxu0 0
  %4370 = vmatprep.subr.bf16.mxu0 0
  %4371 = vmatpush1.bf16.msra.mxu0 0
  %4372 = vmatprep.subr.bf16.mxu0 0
  %4373 = vmatpush1.bf16.msra.mxu0 0
  %4374 = vmatprep.subr.bf16.mxu0 0
  %4375 = vmatpush1.bf16.msra.mxu0 0
  %4376 = vmatprep.subr.bf16.mxu0 0
  %4377 = vmatpush1.bf16.msra.mxu0 0
  %4378 = vmatprep.subr.bf16.mxu0 0
  %4379 = vmatpush1.bf16.msra.mxu0 0
  %4380 = vmatprep.subr.bf16.mxu0 0
  %4381 = vmatpush1.bf16.msra.mxu0 0
  %4382 = vmatprep.subr.bf16.mxu0 0
  %4383 = vmatpush1.bf16.msra.mxu0 %v4366
  %4384 = vmatprep.subr.bf16.mxu0 0
  %4385 = vmatpush2.bf16.msra.mxu0 0
  %4386 = vmatprep.subr.bf16.mxu0 0
  %4387 = vmatpush2.bf16.msra.mxu0 0
  %4388 = vmatprep.subr.bf16.mxu0 0
  %4389 = vmatpush2.bf16.msra.mxu0 0
  %4390 = vmatprep.subr.bf16.mxu0 0
  %4391 = vmatpush2.bf16.msra.mxu0 0
  %4392 = vmatprep.subr.bf16.mxu0 0
  %4393 = vmatpush2.bf16.msra.mxu0 0
  %4394 = vmatprep.subr.bf16.mxu0 0
  %4395 = vmatpush2.bf16.msra.mxu0 0
  %4396 = vmatprep.subr.bf16.mxu0 0
  %4397 = vmatpush2.bf16.msra.mxu0 0
  %4398 = vmatprep.subr.bf16.mxu0 0
  %4399 = vmatpush2.bf16.msra.mxu0 0
  %4400 = vmatprep.mubr.bf16.mxu0 0
  %4401 = vmatmul.mubr.bf16.gmra.mxu0 %v1012
  %v4402 = vpop.f32.mrf.mxu0
  %v4403 = vadd.f32 0.0, %v4402
  %v4404 = vpop.f32.mrf.mxu0
  %v4405 = vpop.f32.mrf.mxu0
  %v4406 = vadd.f32 0.0, %v4405
  %v4407 = vpop.f32.mrf.mxu0
  %4408 = vmatprep.mubr.bf16.mxu0 0
  %4409 = vmatmul.mubr.bf16.gmra.mxu0 %v1015
  %v4410 = vpop.f32.mrf.mxu0
  %v4411 = vadd.f32 0.0, %v4410
  %v4412 = vpop.f32.mrf.mxu0
  %v4413 = vpop.f32.mrf.mxu0
  %v4414 = vadd.f32 0.0, %v4413
  %v4415 = vpop.f32.mrf.mxu0
  %4416 = vmatprep.mubr.bf16.mxu0 0
  %4417 = vmatmul.mubr.bf16.gmra.mxu0 %v1018
  %v4418 = vpop.f32.mrf.mxu0
  %v4419 = vadd.f32 0.0, %v4418
  %v4420 = vpop.f32.mrf.mxu0
  %v4421 = vpop.f32.mrf.mxu0
  %v4422 = vadd.f32 0.0, %v4421
  %v4423 = vpop.f32.mrf.mxu0
  %4424 = vmatprep.mubr.bf16.mxu0 0
  %4425 = vmatmul.mubr.bf16.gmra.mxu0 %v1021
  %v4426 = vpop.f32.mrf.mxu0
  %v4427 = vadd.f32 0.0, %v4426
  %v4428 = vpop.f32.mrf.mxu0
  %v4429 = vpop.f32.mrf.mxu0
  %v4430 = vadd.f32 0.0, %v4429
  %v4431 = vpop.f32.mrf.mxu0
  %4432 = vmatprep.mubr.bf16.mxu0 0
  %4433 = vmatmul.mubr.bf16.gmra.mxu0 %v1024
  %v4434 = vpop.f32.mrf.mxu0
  %v4435 = vadd.f32 0.0, %v4434
  %v4436 = vpop.f32.mrf.mxu0
  %v4437 = vpop.f32.mrf.mxu0
  %v4438 = vadd.f32 0.0, %v4437
  %v4439 = vpop.f32.mrf.mxu0
  %4440 = vmatprep.mubr.bf16.mxu0 0
  %4441 = vmatmul.mubr.bf16.gmra.mxu0 %v1027
  %v4442 = vpop.f32.mrf.mxu0
  %v4443 = vadd.f32 0.0, %v4442
  %v4444 = vpop.f32.mrf.mxu0
  %v4445 = vpop.f32.mrf.mxu0
  %v4446 = vadd.f32 0.0, %v4445
  %v4447 = vpop.f32.mrf.mxu0
  %4448 = vmatprep.mubr.bf16.mxu0 0
  %4449 = vmatmul.mubr.bf16.gmra.mxu0 %v1030
  %v4450 = vpop.f32.mrf.mxu0
  %v4451 = vadd.f32 0.0, %v4450
  %v4452 = vpop.f32.mrf.mxu0
  %v4453 = vpop.f32.mrf.mxu0
  %v4454 = vadd.f32 0.0, %v4453
  %v4455 = vpop.f32.mrf.mxu0
  %4456 = vmatprep.mubr.bf16.mxu0 0
  %4457 = vmatmul.mubr.bf16.gmra.mxu0 %v1033
  %v4458 = vpop.f32.mrf.mxu0
  %v4459 = vadd.f32 0.0, %v4458
  %v4460 = vpop.f32.mrf.mxu0
  %v4461 = vpop.f32.mrf.mxu0
  %v4462 = vadd.f32 0.0, %v4461
  %v4463 = vpop.f32.mrf.mxu0
  %4464 = vmatprep.mubr.bf16.mxu0 0
  %4465 = vmatmul.mubr.bf16.gmra.mxu0 %v1036
  %v4466 = vpop.f32.mrf.mxu0
  %v4467 = vadd.f32 0.0, %v4466
  %v4468 = vpop.f32.mrf.mxu0
  %v4469 = vpop.f32.mrf.mxu0
  %v4470 = vadd.f32 0.0, %v4469
  %v4471 = vpop.f32.mrf.mxu0
  %4472 = vmatprep.mubr.bf16.mxu0 0
  %4473 = vmatmul.mubr.bf16.gmra.mxu0 %v1039
  %v4474 = vpop.f32.mrf.mxu0
  %v4475 = vadd.f32 0.0, %v4474
  %v4476 = vpop.f32.mrf.mxu0
  %v4477 = vpop.f32.mrf.mxu0
  %v4478 = vadd.f32 0.0, %v4477
  %v4479 = vpop.f32.mrf.mxu0
  %4480 = vmatprep.mubr.bf16.mxu0 0
  %4481 = vmatmul.mubr.bf16.gmra.mxu0 %v1042
  %v4482 = vpop.f32.mrf.mxu0
  %v4483 = vadd.f32 0.0, %v4482
  %v4484 = vpop.f32.mrf.mxu0
  %v4485 = vpop.f32.mrf.mxu0
  %v4486 = vadd.f32 0.0, %v4485
  %v4487 = vpop.f32.mrf.mxu0
  %4488 = vmatprep.mubr.bf16.mxu0 0
  %4489 = vmatmul.mubr.bf16.gmra.mxu0 %v1045
  %v4490 = vpop.f32.mrf.mxu0
  %v4491 = vadd.f32 0.0, %v4490
  %v4492 = vpop.f32.mrf.mxu0
  %v4493 = vpop.f32.mrf.mxu0
  %v4494 = vadd.f32 0.0, %v4493
  %v4495 = vpop.f32.mrf.mxu0
  %4496 = vmatprep.mubr.bf16.mxu0 0
  %4497 = vmatmul.mubr.bf16.gmra.mxu0 %v1048
  %v4498 = vpop.f32.mrf.mxu0
  %v4499 = vadd.f32 0.0, %v4498
  %v4500 = vpop.f32.mrf.mxu0
  %v4501 = vpop.f32.mrf.mxu0
  %v4502 = vadd.f32 0.0, %v4501
  %v4503 = vpop.f32.mrf.mxu0
  %4504 = vmatprep.mubr.bf16.mxu0 0
  %4505 = vmatmul.mubr.bf16.gmra.mxu0 %v1051
  %v4506 = vpop.f32.mrf.mxu0
  %v4507 = vadd.f32 0.0, %v4506
  %v4508 = vpop.f32.mrf.mxu0
  %v4509 = vpop.f32.mrf.mxu0
  %v4510 = vadd.f32 0.0, %v4509
  %v4511 = vpop.f32.mrf.mxu0
  %4512 = vmatprep.mubr.bf16.mxu0 0
  %4513 = vmatmul.mubr.bf16.gmra.mxu0 %v3180
  %v4514 = vpop.f32.mrf.mxu0
  %v4515 = vadd.f32 0.0, %v4514
  %v4516 = vpop.f32.mrf.mxu0
  %v4517 = vpop.f32.mrf.mxu0
  %v4518 = vadd.f32 0.0, %v4517
  %v4519 = vpop.f32.mrf.mxu0
  %4520 = vmatprep.mubr.bf16.mxu0 0
  %4521 = vmatmul.mubr.bf16.gmra.mxu0 %v4360
  %v4522 = vpop.f32.mrf.mxu0
  %v4523 = vadd.f32 0.0, %v4522
  %v4524 = vpop.f32.mrf.mxu0
  %v4525 = vpop.f32.mrf.mxu0
  %v4526 = vadd.f32 0.0, %v4525
  %v4527 = vpop.f32.mrf.mxu0
  %4528 = vmatprep.mubr.bf16.mxu0 0
  %4529 = vmatmul.mubr.bf16.gmra.mxu0 %v1060
  %v4530 = vpop.f32.mrf.mxu0
  %v4531 = vadd.f32 0.0, %v4530
  %v4532 = vpop.f32.mrf.mxu0
  %v4533 = vpop.f32.mrf.mxu0
  %v4534 = vadd.f32 0.0, %v4533
  %v4535 = vpop.f32.mrf.mxu0
  %4536 = vmatprep.mubr.bf16.mxu0 0
  %4537 = vmatmul.mubr.bf16.gmra.mxu0 %v1063
  %v4538 = vpop.f32.mrf.mxu0
  %v4539 = vadd.f32 0.0, %v4538
  %v4540 = vpop.f32.mrf.mxu0
  %v4541 = vpop.f32.mrf.mxu0
  %v4542 = vadd.f32 0.0, %v4541
  %v4543 = vpop.f32.mrf.mxu0
  %4544 = vmatprep.mubr.bf16.mxu0 0
  %4545 = vmatmul.mubr.bf16.gmra.mxu0 %v1066
  %v4546 = vpop.f32.mrf.mxu0
  %v4547 = vadd.f32 0.0, %v4546
  %v4548 = vpop.f32.mrf.mxu0
  %v4549 = vpop.f32.mrf.mxu0
  %v4550 = vadd.f32 0.0, %v4549
  %v4551 = vpop.f32.mrf.mxu0
  %4552 = vmatprep.mubr.bf16.mxu0 0
  %4553 = vmatmul.mubr.bf16.gmra.mxu0 %v1069
  %v4554 = vpop.f32.mrf.mxu0
  %v4555 = vadd.f32 0.0, %v4554
  %v4556 = vpop.f32.mrf.mxu0
  %v4557 = vpop.f32.mrf.mxu0
  %v4558 = vadd.f32 0.0, %v4557
  %v4559 = vpop.f32.mrf.mxu0
  %4560 = vmatprep.mubr.bf16.mxu0 0
  %4561 = vmatmul.mubr.bf16.gmra.mxu0 %v1072
  %v4562 = vpop.f32.mrf.mxu0
  %v4563 = vadd.f32 0.0, %v4562
  %v4564 = vpop.f32.mrf.mxu0
  %v4565 = vpop.f32.mrf.mxu0
  %v4566 = vadd.f32 0.0, %v4565
  %v4567 = vpop.f32.mrf.mxu0
  %4568 = vmatprep.mubr.bf16.mxu0 0
  %4569 = vmatmul.mubr.bf16.gmra.mxu0 %v1075
  %v4570 = vpop.f32.mrf.mxu0
  %v4571 = vadd.f32 0.0, %v4570
  %v4572 = vpop.f32.mrf.mxu0
  %v4573 = vpop.f32.mrf.mxu0
  %v4574 = vadd.f32 0.0, %v4573
  %v4575 = vpop.f32.mrf.mxu0
  %4576 = vmatprep.mubr.bf16.mxu0 0
  %4577 = vmatmul.mubr.bf16.gmra.mxu0 %v1078
  %v4578 = vpop.f32.mrf.mxu0
  %v4579 = vadd.f32 0.0, %v4578
  %v4580 = vpop.f32.mrf.mxu0
  %v4581 = vpop.f32.mrf.mxu0
  %v4582 = vadd.f32 0.0, %v4581
  %v4583 = vpop.f32.mrf.mxu0
  %4584 = vmatprep.mubr.bf16.mxu0 0
  %4585 = vmatmul.mubr.bf16.gmra.mxu0 %v1081
  %v4586 = vpop.f32.mrf.mxu0
  %v4587 = vadd.f32 0.0, %v4586
  %v4588 = vpop.f32.mrf.mxu0
  %v4589 = vpop.f32.mrf.mxu0
  %v4590 = vadd.f32 0.0, %v4589
  %v4591 = vpop.f32.mrf.mxu0
  %4592 = vmatprep.mubr.bf16.mxu0 0
  %4593 = vmatmul.mubr.bf16.gmra.mxu0 %v1084
  %v4594 = vpop.f32.mrf.mxu0
  %v4595 = vadd.f32 0.0, %v4594
  %v4596 = vpop.f32.mrf.mxu0
  %v4597 = vpop.f32.mrf.mxu0
  %v4598 = vadd.f32 0.0, %v4597
  %v4599 = vpop.f32.mrf.mxu0
  %4600 = vmatprep.mubr.bf16.mxu0 0
  %4601 = vmatmul.mubr.bf16.gmra.mxu0 %v1087
  %v4602 = vpop.f32.mrf.mxu0
  %v4603 = vadd.f32 0.0, %v4602
  %v4604 = vpop.f32.mrf.mxu0
  %v4605 = vpop.f32.mrf.mxu0
  %v4606 = vadd.f32 0.0, %v4605
  %v4607 = vpop.f32.mrf.mxu0
  %4608 = vmatprep.mubr.bf16.mxu0 0
  %4609 = vmatmul.mubr.bf16.gmra.mxu0 %v1090
  %v4610 = vpop.f32.mrf.mxu0
  %v4611 = vadd.f32 0.0, %v4610
  %v4612 = vpop.f32.mrf.mxu0
  %v4613 = vpop.f32.mrf.mxu0
  %v4614 = vadd.f32 0.0, %v4613
  %v4615 = vpop.f32.mrf.mxu0
  %4616 = vmatprep.mubr.bf16.mxu0 0
  %4617 = vmatmul.mubr.bf16.gmra.mxu0 %v1093
  %v4618 = vpop.f32.mrf.mxu0
  %v4619 = vadd.f32 0.0, %v4618
  %v4620 = vpop.f32.mrf.mxu0
  %v4621 = vpop.f32.mrf.mxu0
  %v4622 = vadd.f32 0.0, %v4621
  %v4623 = vpop.f32.mrf.mxu0
  %4624 = vmatprep.mubr.bf16.mxu0 0
  %4625 = vmatmul.mubr.bf16.gmra.mxu0 %v1096
  %v4626 = vpop.f32.mrf.mxu0
  %v4627 = vadd.f32 0.0, %v4626
  %v4628 = vpop.f32.mrf.mxu0
  %v4629 = vpop.f32.mrf.mxu0
  %v4630 = vadd.f32 0.0, %v4629
  %v4631 = vpop.f32.mrf.mxu0
  %4632 = vmatprep.mubr.bf16.mxu0 0
  %4633 = vmatmul.mubr.bf16.gmra.mxu0 %v1099
  %v4634 = vpop.f32.mrf.mxu0
  %v4635 = vadd.f32 0.0, %v4634
  %v4636 = vpop.f32.mrf.mxu0
  %v4637 = vpop.f32.mrf.mxu0
  %v4638 = vadd.f32 0.0, %v4637
  %v4639 = vpop.f32.mrf.mxu0
  %4640 = vmatprep.mubr.bf16.mxu0 0
  %4641 = vmatmul.mubr.bf16.gmra.mxu0 %v3183
  %v4642 = vpop.f32.mrf.mxu0
  %v4643 = vadd.f32 0.0, %v4642
  %v4644 = vpop.f32.mrf.mxu0
  %v4645 = vpop.f32.mrf.mxu0
  %v4646 = vadd.f32 0.0, %v4645
  %v4647 = vpop.f32.mrf.mxu0
  %4648 = vmatprep.mubr.bf16.mxu0 0
  %4649 = vmatmul.mubr.bf16.gmra.mxu0 %v4363
  %v4650 = vpop.f32.mrf.mxu0
  %v4651 = vadd.f32 0.0, %v4650
  %v4652 = vpop.f32.mrf.mxu0
  %v4653 = vpop.f32.mrf.mxu0
  %v4654 = vadd.f32 0.0, %v4653
  %v4655 = vpop.f32.mrf.mxu0
  %4656 = vdwg.mxu0
  %v4657 = vadd.f32 %v4237, %v4403
  %v4658 = vadd.f32 %v4238, %v4406
  %v4659 = vadd.f32 %v4239, %v4411
  %v4660 = vadd.f32 %v4240, %v4414
  %v4661 = vadd.f32 %v4241, %v4419
  %v4662 = vadd.f32 %v4242, %v4422
  %v4663 = vadd.f32 %v4243, %v4427
  %v4664 = vadd.f32 %v4244, %v4430
  %v4665 = vadd.f32 %v4245, %v4435
  %v4666 = vadd.f32 %v4246, %v4438
  %v4667 = vadd.f32 %v4247, %v4443
  %v4668 = vadd.f32 %v4248, %v4446
  %v4669 = vadd.f32 %v4249, %v4451
  %v4670 = vadd.f32 %v4250, %v4454
  %v4671 = vadd.f32 %v4251, %v4459
  %v4672 = vadd.f32 %v4252, %v4462
  %v4673 = vadd.f32 %v4253, %v4467
  %v4674 = vadd.f32 %v4254, %v4470
  %v4675 = vadd.f32 %v4255, %v4475
  %v4676 = vadd.f32 %v4256, %v4478
  %v4677 = vadd.f32 %v4257, %v4483
  %v4678 = vadd.f32 %v4258, %v4486
  %v4679 = vadd.f32 %v4259, %v4491
  %v4680 = vadd.f32 %v4260, %v4494
  %v4681 = vadd.f32 %v4261, %v4499
  %v4682 = vadd.f32 %v4262, %v4502
  %v4683 = vadd.f32 %v4263, %v4507
  %v4684 = vadd.f32 %v4264, %v4510
  %v4685 = vadd.f32 %v4265, %v4515
  %v4686 = vadd.f32 %v4266, %v4518
  %v4687 = vadd.f32 %v4267, %v4523
  %v4688 = vadd.f32 %v4268, %v4526
  %v4689 = vadd.f32 %v4269, %v4531
  %v4690 = vadd.f32 %v4270, %v4534
  %v4691 = vadd.f32 %v4271, %v4539
  %v4692 = vadd.f32 %v4272, %v4542
  %v4693 = vadd.f32 %v4273, %v4547
  %v4694 = vadd.f32 %v4274, %v4550
  %v4695 = vadd.f32 %v4275, %v4555
  %v4696 = vadd.f32 %v4276, %v4558
  %v4697 = vadd.f32 %v4277, %v4563
  %v4698 = vadd.f32 %v4278, %v4566
  %v4699 = vadd.f32 %v4279, %v4571
  %v4700 = vadd.f32 %v4280, %v4574
  %v4701 = vadd.f32 %v4281, %v4579
  %v4702 = vadd.f32 %v4282, %v4582
  %v4703 = vadd.f32 %v4283, %v4587
  %v4704 = vadd.f32 %v4284, %v4590
  %v4705 = vadd.f32 %v4285, %v4595
  %v4706 = vadd.f32 %v4286, %v4598
  %v4707 = vadd.f32 %v4287, %v4603
  %v4708 = vadd.f32 %v4288, %v4606
  %v4709 = vadd.f32 %v4289, %v4611
  %v4710 = vadd.f32 %v4290, %v4614
  %v4711 = vadd.f32 %v4291, %v4619
  %v4712 = vadd.f32 %v4292, %v4622
  %v4713 = vadd.f32 %v4293, %v4627
  %v4714 = vadd.f32 %v4294, %v4630
  %v4715 = vadd.f32 %v4295, %v4635
  %v4716 = vadd.f32 %v4296, %v4638
  %v4717 = vadd.f32 %v4297, %v4643
  %v4718 = vadd.f32 %v4298, %v4646
  %v4719 = vadd.f32 %v4299, %v4651
  %v4720 = vadd.f32 %v4300, %v4654
  %v4723 = vrot.slane %v76, 5
  %v4724 = vrot.slane %v4723, 4
  %v4725 = vrot.slane %v77, 5
  %v4726 = vsel %vm1976, %v4724, %v4725
  %v4727 = vrot.slane %v4725, 4
  %v4728 = vrot.slane %v78, 5
  %v4729 = vsel %vm1976, %v4727, %v4728
  %v4730 = vrot.slane %v130, 5
  %v4731 = vrot.slane %v4730, 4
  %v4732 = vrot.slane %v131, 5
  %v4733 = vsel %vm1976, %v4731, %v4732
  %v4734 = vrot.slane %v4732, 4
  %v4735 = vrot.slane %v132, 5
  %v4736 = vsel %vm1976, %v4734, %v4735
  %v4737 = vunpack.c.l.b16 %v4726
  %v4738 = vunpack.c.l.b16 %v4729
  %v4739 = vunpack.c.l.b16 %v4733
  %v4740 = vunpack.c.l.b16 %v4736
  %v4741 = vpack.c.b16 %v4738, %v4737
  %v4742 = vpack.c.b16 %v4740, %v4739
  %v4744 = vsel %vm1004, %v4741, 0
  %v4747 = vsel %vm1004, %v4742, 0
  %v4750 = vsel %vm1101, %v24, 0
  %4752 = vmatprep.subr.bf16.mxu0 0
  %4753 = vmatpush1.bf16.msra.mxu0 0
  %4754 = vmatprep.subr.bf16.mxu0 0
  %4755 = vmatpush1.bf16.msra.mxu0 0
  %4756 = vmatprep.subr.bf16.mxu0 0
  %4757 = vmatpush1.bf16.msra.mxu0 0
  %4758 = vmatprep.subr.bf16.mxu0 0
  %4759 = vmatpush1.bf16.msra.mxu0 0
  %4760 = vmatprep.subr.bf16.mxu0 0
  %4761 = vmatpush1.bf16.msra.mxu0 0
  %4762 = vmatprep.subr.bf16.mxu0 0
  %4763 = vmatpush1.bf16.msra.mxu0 0
  %4764 = vmatprep.subr.bf16.mxu0 0
  %4765 = vmatpush1.bf16.msra.mxu0 0
  %4766 = vmatprep.subr.bf16.mxu0 0
  %4767 = vmatpush1.bf16.msra.mxu0 %v4750
  %4768 = vmatprep.subr.bf16.mxu0 0
  %4769 = vmatpush2.bf16.msra.mxu0 0
  %4770 = vmatprep.subr.bf16.mxu0 0
  %4771 = vmatpush2.bf16.msra.mxu0 0
  %4772 = vmatprep.subr.bf16.mxu0 0
  %4773 = vmatpush2.bf16.msra.mxu0 0
  %4774 = vmatprep.subr.bf16.mxu0 0
  %4775 = vmatpush2.bf16.msra.mxu0 0
  %4776 = vmatprep.subr.bf16.mxu0 0
  %4777 = vmatpush2.bf16.msra.mxu0 0
  %4778 = vmatprep.subr.bf16.mxu0 0
  %4779 = vmatpush2.bf16.msra.mxu0 0
  %4780 = vmatprep.subr.bf16.mxu0 0
  %4781 = vmatpush2.bf16.msra.mxu0 0
  %4782 = vmatprep.subr.bf16.mxu0 0
  %4783 = vmatpush2.bf16.msra.mxu0 0
  %4784 = vmatprep.mubr.bf16.mxu0 0
  %4785 = vmatmul.mubr.bf16.gmra.mxu0 %v2304
  %v4786 = vpop.f32.mrf.mxu0
  %v4787 = vadd.f32 0.0, %v4786
  %v4788 = vpop.f32.mrf.mxu0
  %v4789 = vpop.f32.mrf.mxu0
  %v4790 = vadd.f32 0.0, %v4789
  %v4791 = vpop.f32.mrf.mxu0
  %4792 = vmatprep.mubr.bf16.mxu0 0
  %4793 = vmatmul.mubr.bf16.gmra.mxu0 %v2307
  %v4794 = vpop.f32.mrf.mxu0
  %v4795 = vadd.f32 0.0, %v4794
  %v4796 = vpop.f32.mrf.mxu0
  %v4797 = vpop.f32.mrf.mxu0
  %v4798 = vadd.f32 0.0, %v4797
  %v4799 = vpop.f32.mrf.mxu0
  %4800 = vmatprep.mubr.bf16.mxu0 0
  %4801 = vmatmul.mubr.bf16.gmra.mxu0 %v2310
  %v4802 = vpop.f32.mrf.mxu0
  %v4803 = vadd.f32 0.0, %v4802
  %v4804 = vpop.f32.mrf.mxu0
  %v4805 = vpop.f32.mrf.mxu0
  %v4806 = vadd.f32 0.0, %v4805
  %v4807 = vpop.f32.mrf.mxu0
  %4808 = vmatprep.mubr.bf16.mxu0 0
  %4809 = vmatmul.mubr.bf16.gmra.mxu0 %v2313
  %v4810 = vpop.f32.mrf.mxu0
  %v4811 = vadd.f32 0.0, %v4810
  %v4812 = vpop.f32.mrf.mxu0
  %v4813 = vpop.f32.mrf.mxu0
  %v4814 = vadd.f32 0.0, %v4813
  %v4815 = vpop.f32.mrf.mxu0
  %4816 = vmatprep.mubr.bf16.mxu0 0
  %4817 = vmatmul.mubr.bf16.gmra.mxu0 %v2316
  %v4818 = vpop.f32.mrf.mxu0
  %v4819 = vadd.f32 0.0, %v4818
  %v4820 = vpop.f32.mrf.mxu0
  %v4821 = vpop.f32.mrf.mxu0
  %v4822 = vadd.f32 0.0, %v4821
  %v4823 = vpop.f32.mrf.mxu0
  %4824 = vmatprep.mubr.bf16.mxu0 0
  %4825 = vmatmul.mubr.bf16.gmra.mxu0 %v2319
  %v4826 = vpop.f32.mrf.mxu0
  %v4827 = vadd.f32 0.0, %v4826
  %v4828 = vpop.f32.mrf.mxu0
  %v4829 = vpop.f32.mrf.mxu0
  %v4830 = vadd.f32 0.0, %v4829
  %v4831 = vpop.f32.mrf.mxu0
  %4832 = vmatprep.mubr.bf16.mxu0 0
  %4833 = vmatmul.mubr.bf16.gmra.mxu0 %v2322
  %v4834 = vpop.f32.mrf.mxu0
  %v4835 = vadd.f32 0.0, %v4834
  %v4836 = vpop.f32.mrf.mxu0
  %v4837 = vpop.f32.mrf.mxu0
  %v4838 = vadd.f32 0.0, %v4837
  %v4839 = vpop.f32.mrf.mxu0
  %4840 = vmatprep.mubr.bf16.mxu0 0
  %4841 = vmatmul.mubr.bf16.gmra.mxu0 %v2325
  %v4842 = vpop.f32.mrf.mxu0
  %v4843 = vadd.f32 0.0, %v4842
  %v4844 = vpop.f32.mrf.mxu0
  %v4845 = vpop.f32.mrf.mxu0
  %v4846 = vadd.f32 0.0, %v4845
  %v4847 = vpop.f32.mrf.mxu0
  %4848 = vmatprep.mubr.bf16.mxu0 0
  %4849 = vmatmul.mubr.bf16.gmra.mxu0 %v2328
  %v4850 = vpop.f32.mrf.mxu0
  %v4851 = vadd.f32 0.0, %v4850
  %v4852 = vpop.f32.mrf.mxu0
  %v4853 = vpop.f32.mrf.mxu0
  %v4854 = vadd.f32 0.0, %v4853
  %v4855 = vpop.f32.mrf.mxu0
  %4856 = vmatprep.mubr.bf16.mxu0 0
  %4857 = vmatmul.mubr.bf16.gmra.mxu0 %v2331
  %v4858 = vpop.f32.mrf.mxu0
  %v4859 = vadd.f32 0.0, %v4858
  %v4860 = vpop.f32.mrf.mxu0
  %v4861 = vpop.f32.mrf.mxu0
  %v4862 = vadd.f32 0.0, %v4861
  %v4863 = vpop.f32.mrf.mxu0
  %4864 = vmatprep.mubr.bf16.mxu0 0
  %4865 = vmatmul.mubr.bf16.gmra.mxu0 %v2334
  %v4866 = vpop.f32.mrf.mxu0
  %v4867 = vadd.f32 0.0, %v4866
  %v4868 = vpop.f32.mrf.mxu0
  %v4869 = vpop.f32.mrf.mxu0
  %v4870 = vadd.f32 0.0, %v4869
  %v4871 = vpop.f32.mrf.mxu0
  %4872 = vmatprep.mubr.bf16.mxu0 0
  %4873 = vmatmul.mubr.bf16.gmra.mxu0 %v2337
  %v4874 = vpop.f32.mrf.mxu0
  %v4875 = vadd.f32 0.0, %v4874
  %v4876 = vpop.f32.mrf.mxu0
  %v4877 = vpop.f32.mrf.mxu0
  %v4878 = vadd.f32 0.0, %v4877
  %v4879 = vpop.f32.mrf.mxu0
  %4880 = vmatprep.mubr.bf16.mxu0 0
  %4881 = vmatmul.mubr.bf16.gmra.mxu0 %v2340
  %v4882 = vpop.f32.mrf.mxu0
  %v4883 = vadd.f32 0.0, %v4882
  %v4884 = vpop.f32.mrf.mxu0
  %v4885 = vpop.f32.mrf.mxu0
  %v4886 = vadd.f32 0.0, %v4885
  %v4887 = vpop.f32.mrf.mxu0
  %4888 = vmatprep.mubr.bf16.mxu0 0
  %4889 = vmatmul.mubr.bf16.gmra.mxu0 %v2343
  %v4890 = vpop.f32.mrf.mxu0
  %v4891 = vadd.f32 0.0, %v4890
  %v4892 = vpop.f32.mrf.mxu0
  %v4893 = vpop.f32.mrf.mxu0
  %v4894 = vadd.f32 0.0, %v4893
  %v4895 = vpop.f32.mrf.mxu0
  %4896 = vmatprep.mubr.bf16.mxu0 0
  %4897 = vmatmul.mubr.bf16.gmra.mxu0 %v3568
  %v4898 = vpop.f32.mrf.mxu0
  %v4899 = vadd.f32 0.0, %v4898
  %v4900 = vpop.f32.mrf.mxu0
  %v4901 = vpop.f32.mrf.mxu0
  %v4902 = vadd.f32 0.0, %v4901
  %v4903 = vpop.f32.mrf.mxu0
  %4904 = vmatprep.mubr.bf16.mxu0 0
  %4905 = vmatmul.mubr.bf16.gmra.mxu0 %v4744
  %v4906 = vpop.f32.mrf.mxu0
  %v4907 = vadd.f32 0.0, %v4906
  %v4908 = vpop.f32.mrf.mxu0
  %v4909 = vpop.f32.mrf.mxu0
  %v4910 = vadd.f32 0.0, %v4909
  %v4911 = vpop.f32.mrf.mxu0
  %4912 = vmatprep.mubr.bf16.mxu0 0
  %4913 = vmatmul.mubr.bf16.gmra.mxu0 %v2352
  %v4914 = vpop.f32.mrf.mxu0
  %v4915 = vadd.f32 0.0, %v4914
  %v4916 = vpop.f32.mrf.mxu0
  %v4917 = vpop.f32.mrf.mxu0
  %v4918 = vadd.f32 0.0, %v4917
  %v4919 = vpop.f32.mrf.mxu0
  %4920 = vmatprep.mubr.bf16.mxu0 0
  %4921 = vmatmul.mubr.bf16.gmra.mxu0 %v2355
  %v4922 = vpop.f32.mrf.mxu0
  %v4923 = vadd.f32 0.0, %v4922
  %v4924 = vpop.f32.mrf.mxu0
  %v4925 = vpop.f32.mrf.mxu0
  %v4926 = vadd.f32 0.0, %v4925
  %v4927 = vpop.f32.mrf.mxu0
  %4928 = vmatprep.mubr.bf16.mxu0 0
  %4929 = vmatmul.mubr.bf16.gmra.mxu0 %v2358
  %v4930 = vpop.f32.mrf.mxu0
  %v4931 = vadd.f32 0.0, %v4930
  %v4932 = vpop.f32.mrf.mxu0
  %v4933 = vpop.f32.mrf.mxu0
  %v4934 = vadd.f32 0.0, %v4933
  %v4935 = vpop.f32.mrf.mxu0
  %4936 = vmatprep.mubr.bf16.mxu0 0
  %4937 = vmatmul.mubr.bf16.gmra.mxu0 %v2361
  %v4938 = vpop.f32.mrf.mxu0
  %v4939 = vadd.f32 0.0, %v4938
  %v4940 = vpop.f32.mrf.mxu0
  %v4941 = vpop.f32.mrf.mxu0
  %v4942 = vadd.f32 0.0, %v4941
  %v4943 = vpop.f32.mrf.mxu0
  %4944 = vmatprep.mubr.bf16.mxu0 0
  %4945 = vmatmul.mubr.bf16.gmra.mxu0 %v2364
  %v4946 = vpop.f32.mrf.mxu0
  %v4947 = vadd.f32 0.0, %v4946
  %v4948 = vpop.f32.mrf.mxu0
  %v4949 = vpop.f32.mrf.mxu0
  %v4950 = vadd.f32 0.0, %v4949
  %v4951 = vpop.f32.mrf.mxu0
  %4952 = vmatprep.mubr.bf16.mxu0 0
  %4953 = vmatmul.mubr.bf16.gmra.mxu0 %v2367
  %v4954 = vpop.f32.mrf.mxu0
  %v4955 = vadd.f32 0.0, %v4954
  %v4956 = vpop.f32.mrf.mxu0
  %v4957 = vpop.f32.mrf.mxu0
  %v4958 = vadd.f32 0.0, %v4957
  %v4959 = vpop.f32.mrf.mxu0
  %4960 = vmatprep.mubr.bf16.mxu0 0
  %4961 = vmatmul.mubr.bf16.gmra.mxu0 %v2370
  %v4962 = vpop.f32.mrf.mxu0
  %v4963 = vadd.f32 0.0, %v4962
  %v4964 = vpop.f32.mrf.mxu0
  %v4965 = vpop.f32.mrf.mxu0
  %v4966 = vadd.f32 0.0, %v4965
  %v4967 = vpop.f32.mrf.mxu0
  %4968 = vmatprep.mubr.bf16.mxu0 0
  %4969 = vmatmul.mubr.bf16.gmra.mxu0 %v2373
  %v4970 = vpop.f32.mrf.mxu0
  %v4971 = vadd.f32 0.0, %v4970
  %v4972 = vpop.f32.mrf.mxu0
  %v4973 = vpop.f32.mrf.mxu0
  %v4974 = vadd.f32 0.0, %v4973
  %v4975 = vpop.f32.mrf.mxu0
  %4976 = vmatprep.mubr.bf16.mxu0 0
  %4977 = vmatmul.mubr.bf16.gmra.mxu0 %v2376
  %v4978 = vpop.f32.mrf.mxu0
  %v4979 = vadd.f32 0.0, %v4978
  %v4980 = vpop.f32.mrf.mxu0
  %v4981 = vpop.f32.mrf.mxu0
  %v4982 = vadd.f32 0.0, %v4981
  %v4983 = vpop.f32.mrf.mxu0
  %4984 = vmatprep.mubr.bf16.mxu0 0
  %4985 = vmatmul.mubr.bf16.gmra.mxu0 %v2379
  %v4986 = vpop.f32.mrf.mxu0
  %v4987 = vadd.f32 0.0, %v4986
  %v4988 = vpop.f32.mrf.mxu0
  %v4989 = vpop.f32.mrf.mxu0
  %v4990 = vadd.f32 0.0, %v4989
  %v4991 = vpop.f32.mrf.mxu0
  %4992 = vmatprep.mubr.bf16.mxu0 0
  %4993 = vmatmul.mubr.bf16.gmra.mxu0 %v2382
  %v4994 = vpop.f32.mrf.mxu0
  %v4995 = vadd.f32 0.0, %v4994
  %v4996 = vpop.f32.mrf.mxu0
  %v4997 = vpop.f32.mrf.mxu0
  %v4998 = vadd.f32 0.0, %v4997
  %v4999 = vpop.f32.mrf.mxu0
  %5000 = vmatprep.mubr.bf16.mxu0 0
  %5001 = vmatmul.mubr.bf16.gmra.mxu0 %v2385
  %v5002 = vpop.f32.mrf.mxu0
  %v5003 = vadd.f32 0.0, %v5002
  %v5004 = vpop.f32.mrf.mxu0
  %v5005 = vpop.f32.mrf.mxu0
  %v5006 = vadd.f32 0.0, %v5005
  %v5007 = vpop.f32.mrf.mxu0
  %5008 = vmatprep.mubr.bf16.mxu0 0
  %5009 = vmatmul.mubr.bf16.gmra.mxu0 %v2388
  %v5010 = vpop.f32.mrf.mxu0
  %v5011 = vadd.f32 0.0, %v5010
  %v5012 = vpop.f32.mrf.mxu0
  %v5013 = vpop.f32.mrf.mxu0
  %v5014 = vadd.f32 0.0, %v5013
  %v5015 = vpop.f32.mrf.mxu0
  %5016 = vmatprep.mubr.bf16.mxu0 0
  %5017 = vmatmul.mubr.bf16.gmra.mxu0 %v2391
  %v5018 = vpop.f32.mrf.mxu0
  %v5019 = vadd.f32 0.0, %v5018
  %v5020 = vpop.f32.mrf.mxu0
  %v5021 = vpop.f32.mrf.mxu0
  %v5022 = vadd.f32 0.0, %v5021
  %v5023 = vpop.f32.mrf.mxu0
  %5024 = vmatprep.mubr.bf16.mxu0 0
  %5025 = vmatmul.mubr.bf16.gmra.mxu0 %v3571
  %v5026 = vpop.f32.mrf.mxu0
  %v5027 = vadd.f32 0.0, %v5026
  %v5028 = vpop.f32.mrf.mxu0
  %v5029 = vpop.f32.mrf.mxu0
  %v5030 = vadd.f32 0.0, %v5029
  %v5031 = vpop.f32.mrf.mxu0
  %5032 = vmatprep.mubr.bf16.mxu0 0
  %5033 = vmatmul.mubr.bf16.gmra.mxu0 %v4747
  %v5034 = vpop.f32.mrf.mxu0
  %v5035 = vadd.f32 0.0, %v5034
  %v5036 = vpop.f32.mrf.mxu0
  %v5037 = vpop.f32.mrf.mxu0
  %v5038 = vadd.f32 0.0, %v5037
  %v5039 = vpop.f32.mrf.mxu0
  %5040 = vdwg.mxu0
  %v5041 = vadd.f32 %v4657, %v4787
  %v5042 = vadd.f32 %v4658, %v4790
  %v5043 = vadd.f32 %v4659, %v4795
  %v5044 = vadd.f32 %v4660, %v4798
  %v5045 = vadd.f32 %v4661, %v4803
  %v5046 = vadd.f32 %v4662, %v4806
  %v5047 = vadd.f32 %v4663, %v4811
  %v5048 = vadd.f32 %v4664, %v4814
  %v5049 = vadd.f32 %v4665, %v4819
  %v5050 = vadd.f32 %v4666, %v4822
  %v5051 = vadd.f32 %v4667, %v4827
  %v5052 = vadd.f32 %v4668, %v4830
  %v5053 = vadd.f32 %v4669, %v4835
  %v5054 = vadd.f32 %v4670, %v4838
  %v5055 = vadd.f32 %v4671, %v4843
  %v5056 = vadd.f32 %v4672, %v4846
  %v5057 = vadd.f32 %v4673, %v4851
  %v5058 = vadd.f32 %v4674, %v4854
  %v5059 = vadd.f32 %v4675, %v4859
  %v5060 = vadd.f32 %v4676, %v4862
  %v5061 = vadd.f32 %v4677, %v4867
  %v5062 = vadd.f32 %v4678, %v4870
  %v5063 = vadd.f32 %v4679, %v4875
  %v5064 = vadd.f32 %v4680, %v4878
  %v5065 = vadd.f32 %v4681, %v4883
  %v5066 = vadd.f32 %v4682, %v4886
  %v5067 = vadd.f32 %v4683, %v4891
  %v5068 = vadd.f32 %v4684, %v4894
  %v5069 = vadd.f32 %v4685, %v4899
  %v5070 = vadd.f32 %v4686, %v4902
  %v5071 = vadd.f32 %v4687, %v4907
  %v5072 = vadd.f32 %v4688, %v4910
  %v5073 = vadd.f32 %v4689, %v4915
  %v5074 = vadd.f32 %v4690, %v4918
  %v5075 = vadd.f32 %v4691, %v4923
  %v5076 = vadd.f32 %v4692, %v4926
  %v5077 = vadd.f32 %v4693, %v4931
  %v5078 = vadd.f32 %v4694, %v4934
  %v5079 = vadd.f32 %v4695, %v4939
  %v5080 = vadd.f32 %v4696, %v4942
  %v5081 = vadd.f32 %v4697, %v4947
  %v5082 = vadd.f32 %v4698, %v4950
  %v5083 = vadd.f32 %v4699, %v4955
  %v5084 = vadd.f32 %v4700, %v4958
  %v5085 = vadd.f32 %v4701, %v4963
  %v5086 = vadd.f32 %v4702, %v4966
  %v5087 = vadd.f32 %v4703, %v4971
  %v5088 = vadd.f32 %v4704, %v4974
  %v5089 = vadd.f32 %v4705, %v4979
  %v5090 = vadd.f32 %v4706, %v4982
  %v5091 = vadd.f32 %v4707, %v4987
  %v5092 = vadd.f32 %v4708, %v4990
  %v5093 = vadd.f32 %v4709, %v4995
  %v5094 = vadd.f32 %v4710, %v4998
  %v5095 = vadd.f32 %v4711, %v5003
  %v5096 = vadd.f32 %v4712, %v5006
  %v5097 = vadd.f32 %v4713, %v5011
  %v5098 = vadd.f32 %v4714, %v5014
  %v5099 = vadd.f32 %v4715, %v5019
  %v5100 = vadd.f32 %v4716, %v5022
  %v5101 = vadd.f32 %v4717, %v5027
  %v5102 = vadd.f32 %v4718, %v5030
  %v5103 = vadd.f32 %v4719, %v5035
  %v5104 = vadd.f32 %v4720, %v5038
  %v5106 = vlaneseq
  %v5107 = vshrl.u32 %v5106, 7
  %v5108 = vsub.s32 0, %v5107
  %v5109 = vrot.slane %v15, %v5108
  %v5111 = vadd.f32 %v5041, %v5109
  %v5112 = vadd.f32 %v5042, %v5109
  %v5113 = vadd.f32 %v5043, %v5109
  %v5114 = vadd.f32 %v5044, %v5109
  %v5115 = vadd.f32 %v5045, %v5109
  %v5116 = vadd.f32 %v5046, %v5109
  %v5117 = vadd.f32 %v5047, %v5109
  %v5118 = vadd.f32 %v5048, %v5109
  %v5119 = vadd.f32 %v5049, %v5109
  %v5120 = vadd.f32 %v5050, %v5109
  %v5121 = vadd.f32 %v5051, %v5109
  %v5122 = vadd.f32 %v5052, %v5109
  %v5123 = vadd.f32 %v5053, %v5109
  %v5124 = vadd.f32 %v5054, %v5109
  %v5125 = vadd.f32 %v5055, %v5109
  %v5126 = vadd.f32 %v5056, %v5109
  %v5127 = vadd.f32 %v5057, %v5109
  %v5128 = vadd.f32 %v5058, %v5109
  %v5129 = vadd.f32 %v5059, %v5109
  %v5130 = vadd.f32 %v5060, %v5109
  %v5131 = vadd.f32 %v5061, %v5109
  %v5132 = vadd.f32 %v5062, %v5109
  %v5133 = vadd.f32 %v5063, %v5109
  %v5134 = vadd.f32 %v5064, %v5109
  %v5135 = vadd.f32 %v5065, %v5109
  %v5136 = vadd.f32 %v5066, %v5109
  %v5137 = vadd.f32 %v5067, %v5109
  %v5138 = vadd.f32 %v5068, %v5109
  %v5139 = vadd.f32 %v5069, %v5109
  %v5140 = vadd.f32 %v5070, %v5109
  %v5141 = vadd.f32 %v5071, %v5109
  %v5142 = vadd.f32 %v5072, %v5109
  %v5143 = vadd.f32 %v5073, %v5109
  %v5144 = vadd.f32 %v5074, %v5109
  %v5145 = vadd.f32 %v5075, %v5109
  %v5146 = vadd.f32 %v5076, %v5109
  %v5147 = vadd.f32 %v5077, %v5109
  %v5148 = vadd.f32 %v5078, %v5109
  %v5149 = vadd.f32 %v5079, %v5109
  %v5150 = vadd.f32 %v5080, %v5109
  %v5151 = vadd.f32 %v5081, %v5109
  %v5152 = vadd.f32 %v5082, %v5109
  %v5153 = vadd.f32 %v5083, %v5109
  %v5154 = vadd.f32 %v5084, %v5109
  %v5155 = vadd.f32 %v5085, %v5109
  %v5156 = vadd.f32 %v5086, %v5109
  %v5157 = vadd.f32 %v5087, %v5109
  %v5158 = vadd.f32 %v5088, %v5109
  %v5159 = vadd.f32 %v5089, %v5109
  %v5160 = vadd.f32 %v5090, %v5109
  %v5161 = vadd.f32 %v5091, %v5109
  %v5162 = vadd.f32 %v5092, %v5109
  %v5163 = vadd.f32 %v5093, %v5109
  %v5164 = vadd.f32 %v5094, %v5109
  %v5165 = vadd.f32 %v5095, %v5109
  %v5166 = vadd.f32 %v5096, %v5109
  %v5167 = vadd.f32 %v5097, %v5109
  %v5168 = vadd.f32 %v5098, %v5109
  %v5169 = vadd.f32 %v5099, %v5109
  %v5170 = vadd.f32 %v5100, %v5109
  %v5171 = vadd.f32 %v5101, %v5109
  %v5172 = vadd.f32 %v5102, %v5109
  %v5173 = vadd.f32 %v5103, %v5109
  %v5174 = vadd.f32 %v5104, %v5109
  %v5175 = vmax.f32 %v5111, 0.0
  %v5176 = vmax.f32 %v5112, 0.0
  %v5177 = vmax.f32 %v5113, 0.0
  %v5178 = vmax.f32 %v5114, 0.0
  %v5179 = vmax.f32 %v5115, 0.0
  %v5180 = vmax.f32 %v5116, 0.0
  %v5181 = vmax.f32 %v5117, 0.0
  %v5182 = vmax.f32 %v5118, 0.0
  %v5183 = vmax.f32 %v5119, 0.0
  %v5184 = vmax.f32 %v5120, 0.0
  %v5185 = vmax.f32 %v5121, 0.0
  %v5186 = vmax.f32 %v5122, 0.0
  %v5187 = vmax.f32 %v5123, 0.0
  %v5188 = vmax.f32 %v5124, 0.0
  %v5189 = vmax.f32 %v5125, 0.0
  %v5190 = vmax.f32 %v5126, 0.0
  %v5191 = vmax.f32 %v5127, 0.0
  %v5192 = vmax.f32 %v5128, 0.0
  %v5193 = vmax.f32 %v5129, 0.0
  %v5194 = vmax.f32 %v5130, 0.0
  %v5195 = vmax.f32 %v5131, 0.0
  %v5196 = vmax.f32 %v5132, 0.0
  %v5197 = vmax.f32 %v5133, 0.0
  %v5198 = vmax.f32 %v5134, 0.0
  %v5199 = vmax.f32 %v5135, 0.0
  %v5200 = vmax.f32 %v5136, 0.0
  %v5201 = vmax.f32 %v5137, 0.0
  %v5202 = vmax.f32 %v5138, 0.0
  %v5203 = vmax.f32 %v5139, 0.0
  %v5204 = vmax.f32 %v5140, 0.0
  %v5205 = vmax.f32 %v5141, 0.0
  %v5206 = vmax.f32 %v5142, 0.0
  %v5207 = vmax.f32 %v5143, 0.0
  %v5208 = vmax.f32 %v5144, 0.0
  %v5209 = vmax.f32 %v5145, 0.0
  %v5210 = vmax.f32 %v5146, 0.0
  %v5211 = vmax.f32 %v5147, 0.0
  %v5212 = vmax.f32 %v5148, 0.0
  %v5213 = vmax.f32 %v5149, 0.0
  %v5214 = vmax.f32 %v5150, 0.0
  %v5215 = vmax.f32 %v5151, 0.0
  %v5216 = vmax.f32 %v5152, 0.0
  %v5217 = vmax.f32 %v5153, 0.0
  %v5218 = vmax.f32 %v5154, 0.0
  %v5219 = vmax.f32 %v5155, 0.0
  %v5220 = vmax.f32 %v5156, 0.0
  %v5221 = vmax.f32 %v5157, 0.0
  %v5222 = vmax.f32 %v5158, 0.0
  %v5223 = vmax.f32 %v5159, 0.0
  %v5224 = vmax.f32 %v5160, 0.0
  %v5225 = vmax.f32 %v5161, 0.0
  %v5226 = vmax.f32 %v5162, 0.0
  %v5227 = vmax.f32 %v5163, 0.0
  %v5228 = vmax.f32 %v5164, 0.0
  %v5229 = vmax.f32 %v5165, 0.0
  %v5230 = vmax.f32 %v5166, 0.0
  %v5231 = vmax.f32 %v5167, 0.0
  %v5232 = vmax.f32 %v5168, 0.0
  %v5233 = vmax.f32 %v5169, 0.0
  %v5234 = vmax.f32 %v5170, 0.0
  %v5235 = vmax.f32 %v5171, 0.0
  %v5236 = vmax.f32 %v5172, 0.0
  %v5237 = vmax.f32 %v5173, 0.0
  %v5238 = vmax.f32 %v5174, 0.0
  %v5239 = vadd.f32 %v5175, %v5176
  %v5240 = vadd.f32 %v5239, %v5177
  %v5241 = vadd.f32 %v5240, %v5178
  %v5242 = vadd.f32 %v5241, %v5179
  %v5243 = vadd.f32 %v5242, %v5180
  %v5244 = vadd.f32 %v5243, %v5181
  %v5245 = vadd.f32 %v5244, %v5182
  %v5246 = vadd.f32 %v5245, %v5183
  %v5247 = vadd.f32 %v5246, %v5184
  %v5248 = vadd.f32 %v5247, %v5185
  %v5249 = vadd.f32 %v5248, %v5186
  %v5250 = vadd.f32 %v5249, %v5187
  %v5251 = vadd.f32 %v5250, %v5188
  %v5252 = vadd.f32 %v5251, %v5189
  %v5253 = vadd.f32 %v5252, %v5190
  %v5254 = vadd.f32 %v5253, %v5191
  %v5255 = vadd.f32 %v5254, %v5192
  %v5256 = vadd.f32 %v5255, %v5193
  %v5257 = vadd.f32 %v5256, %v5194
  %v5258 = vadd.f32 %v5257, %v5195
  %v5259 = vadd.f32 %v5258, %v5196
  %v5260 = vadd.f32 %v5259, %v5197
  %v5261 = vadd.f32 %v5260, %v5198
  %v5262 = vadd.f32 %v5261, %v5199
  %v5263 = vadd.f32 %v5262, %v5200
  %v5264 = vadd.f32 %v5263, %v5201
  %v5265 = vadd.f32 %v5264, %v5202
  %v5266 = vadd.f32 %v5265, %v5203
  %v5267 = vadd.f32 %v5266, %v5204
  %v5268 = vadd.f32 %v5267, %v5205
  %v5269 = vadd.f32 %v5268, %v5206
  %v5270 = vrot.slane %v5269, 4
  %v5271 = vadd.f32 %v5269, %v5270
  %v5272 = vrot.slane %v5271, 2
  %v5273 = vadd.f32 %v5271, %v5272
  %v5274 = vrot.slane %v5273, 1
  %v5275 = vadd.f32 %v5273, %v5274
  %v5276 = vadd.f32 %v5207, %v5208
  %v5277 = vadd.f32 %v5276, %v5209
  %v5278 = vadd.f32 %v5277, %v5210
  %v5279 = vadd.f32 %v5278, %v5211
  %v5280 = vadd.f32 %v5279, %v5212
  %v5281 = vadd.f32 %v5280, %v5213
  %v5282 = vadd.f32 %v5281, %v5214
  %v5283 = vadd.f32 %v5282, %v5215
  %v5284 = vadd.f32 %v5283, %v5216
  %v5285 = vadd.f32 %v5284, %v5217
  %v5286 = vadd.f32 %v5285, %v5218
  %v5287 = vadd.f32 %v5286, %v5219
  %v5288 = vadd.f32 %v5287, %v5220
  %v5289 = vadd.f32 %v5288, %v5221
  %v5290 = vadd.f32 %v5289, %v5222
  %v5291 = vadd.f32 %v5290, %v5223
  %v5292 = vadd.f32 %v5291, %v5224
  %v5293 = vadd.f32 %v5292, %v5225
  %v5294 = vadd.f32 %v5293, %v5226
  %v5295 = vadd.f32 %v5294, %v5227
  %v5296 = vadd.f32 %v5295, %v5228
  %v5297 = vadd.f32 %v5296, %v5229
  %v5298 = vadd.f32 %v5297, %v5230
  %v5299 = vadd.f32 %v5298, %v5231
  %v5300 = vadd.f32 %v5299, %v5232
  %v5301 = vadd.f32 %v5300, %v5233
  %v5302 = vadd.f32 %v5301, %v5234
  %v5303 = vadd.f32 %v5302, %v5235
  %v5304 = vadd.f32 %v5303, %v5236
  %v5305 = vadd.f32 %v5304, %v5237
  %v5306 = vadd.f32 %v5305, %v5238
  %v5307 = vrot.slane %v5306, 4
  %v5308 = vadd.f32 %v5306, %v5307
  %v5309 = vrot.slane %v5308, 2
  %v5310 = vadd.f32 %v5308, %v5309
  %v5311 = vrot.slane %v5310, 1
  %v5312 = vadd.f32 %v5310, %v5311
  %v5313 = vadd.f32 %v5275, 0.0
  %v5314 = vadd.f32 %v5312, 0.0
  %v5315 = vmul.f32 %v5313, 0.00390625
  %v5316 = vmul.f32 %v5314, 0.00390625
  %vm5319 = vcmask 1041409
  %v5320 = vsel %vm5319, %v5316, %v5315
  %5322 = vst [vmem:[%s3] sm:$0x3] %v5320
  // Predicated region
  $region14: #{mocov3_forward.2} parent=0 // pred_check
    _
  $region15: #{mocov3_forward.2} parent=0 // pred_check_branch
    %5324 = sbr.rel (0) target = $region17
  $region16: #{mocov3_forward.2} parent=0 // pred_region
    _
  $region17: #{mocov3_forward.2} parent=0 // pred_fallthru
    _
  // Predicated region
  $region18: #{mocov3_forward.2} parent=0 // pred_check
    _
  $region19: #{mocov3_forward.2} parent=0 // pred_check_branch
    %5326 = sbr.rel (0) target = $region21
  $region20: #{mocov3_forward.2} parent=0 // pred_region
    _
  $region21: #{mocov3_forward.2} parent=0 // pred_fallthru
    _

</llo_original>
